<compile_context>
chip_gen: v7x
topology: tpu7x:2x2x1
jax: 0.10.0
libtpu: 0.0.40
codegen_flags: <defaults>
</compile_context>

<pallas_src>
import functools

import jax
import jax.numpy as jnp
from jax.experimental import pallas as pl
from jax.experimental.pallas import tpu as pltpu


def _attention_kernel(x_ref, wqkv_ref, bqkv_ref, wout_ref, bout_ref, o_ref, *,
                      bt, seq, heads, dim_head, eps, approx_recip, use_einshape):
    rows = bt * seq
    inner = heads * dim_head
    cdt = wqkv_ref.dtype                                   # MXU compute dtype (bf16 or f32)

    x = x_ref[...].astype(jnp.float32)                     # (rows, D), f32 VPU path

    # LayerNorm statistics in f32 (eps matches torch default); the affine gamma/beta is folded
    # into W_qkv / b_qkv at prepare_params time, so no per-step multiply-add here.
    mean = jnp.mean(x, axis=-1, keepdims=True)
    var = jnp.mean(jnp.square(x - mean), axis=-1, keepdims=True)
    xn = (x - mean) * jax.lax.rsqrt(var + eps)

    # Fused QKV projection (LN affine + softmax scale pre-folded), f32 accumulation on the MXU.
    qkv = jnp.dot(xn.astype(cdt), wqkv_ref[...], preferred_element_type=jnp.float32)
    qkv = (qkv + bqkv_ref[...]).astype(cdt)                # (rows, 3*inner)

    # Head split '(bt n)(h d) -> (bt h) n d': one lane-aware relayout per tensor.
    if use_einshape:
        def split(t):
            return pltpu.einshape("(bn)(hd)->(bh)nd", t,
                                  b=bt, n=seq, h=heads, d=dim_head)
    else:
        # Fallback path (bt == 1): per-head lane slices stacked on a new leading axis.
        def split(t):
            return jnp.stack(
                [t[:, h * dim_head:(h + 1) * dim_head] for h in range(heads)], axis=0)

    q = split(qkv[:, :inner])                              # (G, seq, dim_head), G = bt*heads
    k = split(qkv[:, inner:2 * inner])
    v = split(qkv[:, 2 * inner:])

    # Scores for every (batch, head) pair in one batched MXU call, f32 accumulation.
    # NOTE: contraction depth is dim_head, so these two matmuls underfill the MXU
    # (dim_head/128 on v5e, dim_head/256 on v6e/v7x); the bulk of the FLOPs stays in the
    # full-D projection matmuls above/below.
    s = jnp.einsum("gnd,gmd->gnm", q, k, preferred_element_type=jnp.float32)

    # Softmax numerator only; the denominator is applied after the PV matmul (dim_head-wide
    # multiply instead of seq-wide), with the reciprocal on the EUP slot.
    s = s - jnp.max(s, axis=-1, keepdims=True)
    e = jnp.exp(s)
    denom = jnp.sum(e, axis=-1, keepdims=True)             # (G, seq, 1)

    out = jnp.einsum("gnm,gmd->gnd", e.astype(cdt), v, preferred_element_type=jnp.float32)
    out = out * pl.reciprocal(denom, approx=approx_recip)  # (G, seq, dim_head), f32

    # Merge heads back '(bt h) n d -> (bt n)(h d)' and apply the output projection.
    if use_einshape:
        out2 = pltpu.einshape("(bh)nd->(bn)(hd)", out.astype(cdt),
                              b=bt, h=heads, n=seq, d=dim_head)
    else:
        out2 = jnp.concatenate([out[h] for h in range(heads)], axis=-1).astype(cdt)

    y = jnp.dot(out2, wout_ref[...], preferred_element_type=jnp.float32) + bout_ref[...]
    o_ref[...] = y.astype(o_ref.dtype)

    # TODO(synk): for long sequences (N >= ~512) add a key-block grid axis ("arbitrary") with
    # flash-style online softmax (m/l/acc VMEM scratch) instead of materializing (G, N, N)
    # scores, plus a parallel query-tile axis so both v7x TensorCores stay busy at small/odd B.


def _choose_bt(batch, seq, row_target=256):
    """Largest Bt dividing batch with Bt*seq <= max(row_target, seq) and Bt*seq % 8 == 0."""
    cand = [bt for bt in range(1, batch + 1)
            if batch % bt == 0 and (bt * seq) % 8 == 0]
    if not cand:
        return batch                  # a single full-size block is always a legal BlockSpec
    good = [bt for bt in cand if bt * seq <= max(row_target, seq)]
    return max(good) if good else min(cand)


def _attention_call(x2, params, *, seq, heads, dim_head, bt, use_einshape,
                    single_buffer_params, approx_recip):
    rows_total, d_model = x2.shape
    inner = heads * dim_head
    rows_blk = bt * seq
    grid = (rows_total // rows_blk,)

    kernel = functools.partial(
        _attention_kernel, bt=bt, seq=seq, heads=heads, dim_head=dim_head,
        eps=1e-5, approx_recip=approx_recip, use_einshape=use_einshape)

    def param_spec(shape):
        # Constant index map: the same block every grid step.  Single-buffering (when the
        # lowering supports it) halves the weights' VMEM residency -- matters at ViT-L on v7x.
        if single_buffer_params:
            return pl.BlockSpec(shape, lambda i: (0, 0), pipeline_mode=pl.Buffered(1))
        return pl.BlockSpec(shape, lambda i: (0, 0))

    param_bytes = sum(int(p.size) * p.dtype.itemsize
                      for p in (params["w_qkv"], params["b_qkv"],
                                params["w_out"], params["b_out"]))
    # Right-sized VMEM request (v7x has only 64 MiB physical per TensorCore): streamed x/o
    # blocks (double buffered) + parameters + f32 intermediates, 2x headroom, capped at 48 MiB.
    interm_bytes = 4 * (rows_blk * 3 * inner             # qkv (f32)
                        + 3 * rows_blk * inner           # q, k, v
                        + 2 * bt * heads * seq * seq     # scores + exp
                        + bt * heads * seq * dim_head    # pv output
                        + 2 * rows_blk * d_model)        # x (f32 copy) + y
    need = 4 * rows_blk * d_model * 4 + 2 * param_bytes + interm_bytes
    vmem_limit = int(min(48 * 1024 * 1024, max(16 * 1024 * 1024, 2 * need)))

    cost = pl.CostEstimate(
        flops=int(2 * rows_total * d_model * 3 * inner       # QKV projection
                  + 4 * rows_total * seq * inner             # scores + PV matmuls
                  + 2 * rows_total * inner * d_model),       # output projection
        transcendentals=int(rows_total * seq * heads),
        bytes_accessed=int(2 * rows_total * d_model * 4 + param_bytes),
    )

    return pl.pallas_call(
        kernel,
        out_shape=jax.ShapeDtypeStruct((rows_total, d_model), x2.dtype),
        grid_spec=pltpu.PrefetchScalarGridSpec(
            num_scalar_prefetch=0,
            grid=grid,
            in_specs=[
                pl.BlockSpec((rows_blk, d_model), lambda i: (i, 0)),  # x rows (lane-dense)
                param_spec((d_model, 3 * inner)),                     # W_qkv (LN+scale folded)
                param_spec((1, 3 * inner)),                           # b_qkv (f32)
                param_spec((inner, d_model)),                         # W_out
                param_spec((1, d_model)),                             # b_out (f32)
            ],
            out_specs=pl.BlockSpec((rows_blk, d_model), lambda i: (i, 0)),
        ),
        compiler_params=pltpu.CompilerParams(
            dimension_semantics=("parallel",),
            vmem_limit_bytes=vmem_limit,
        ),
        cost_estimate=cost,
    )(x2, params["w_qkv"], params["b_qkv"], params["w_out"], params["b_out"])


def attention_forward(x, params, *, heads, dim_head, approx_recip=True):
    """x: (B, N, D) f32.  params: output of prepare_params.  Returns (B, N, D)."""
    B, N, D = x.shape
    x2 = x.reshape(B * N, D)               # free relayout outside the kernel
    bt = _choose_bt(B, N)

    # Preferred configuration first; fall back to progressively more conservative ones if this
    # JAX build lacks the pltpu.einshape relayout or pl.Buffered(1) single-buffering lowerings.
    configs = (
        dict(bt=bt, use_einshape=True, single_buffer_params=True),
        dict(bt=bt, use_einshape=True, single_buffer_params=False),
        dict(bt=1, use_einshape=False, single_buffer_params=False),
    )
    last_err = None
    for cfg in configs:
        try:
            y2 = jax.block_until_ready(
                _attention_call(x2, params, seq=N, heads=heads, dim_head=dim_head,
                                approx_recip=approx_recip, **cfg))
            return y2.reshape(B, N, D)
        except Exception as err:            # pragma: no cover -- portability fallback
            last_err = err
    raise last_err


def init_params(key, dim, heads, dim_head):
    """f32 'master' parameters mirroring the PyTorch module (linear weights stored as (in, out))."""
    inner = heads * dim_head
    k1, k2, k3, k4, k5 = jax.random.split(key, 5)
    return {
        "gamma": (1.0 + 0.1 * jax.random.normal(k1, (1, dim))).astype(jnp.float32),
        "beta": (0.1 * jax.random.normal(k2, (1, dim))).astype(jnp.float32),
        "w_qkv": (jax.random.normal(k3, (dim, 3 * inner)) / jnp.sqrt(dim)).astype(jnp.float32),
        "w_out": (jax.random.normal(k4, (inner, dim)) / jnp.sqrt(inner)).astype(jnp.float32),
        "b_out": (0.05 * jax.random.normal(k5, (1, dim))).astype(jnp.float32),
    }


def prepare_params(params, *, heads, dim_head, compute_dtype=jnp.bfloat16):
    """One-time transform (in f32):
         * fold the softmax scale dim_head**-0.5 into the Q columns of W_qkv,
         * fold the LayerNorm affine: W_qkv <- diag(gamma) @ W_qkv,  b_qkv = beta @ W_qkv,
       then cast the matmul weights to the MXU compute dtype.  Biases stay f32."""
    inner = heads * dim_head
    w = params["w_qkv"].astype(jnp.float32)
    w = w.at[:, :inner].multiply(dim_head ** -0.5)
    gamma = params["gamma"].astype(jnp.float32)            # (1, D)
    beta = params["beta"].astype(jnp.float32)              # (1, D)
    return {
        "w_qkv": (gamma.reshape(-1, 1) * w).astype(compute_dtype),
        "b_qkv": beta @ w,                                  # (1, 3*inner), f32
        "w_out": params["w_out"].astype(compute_dtype),
        "b_out": params["b_out"].astype(jnp.float32),
    }


def _reference(x, params, *, heads, dim_head):
    """Pure-JAX f32 reference mirroring the PyTorch forward (dropout=0), unprepared params."""
    B, N, _ = x.shape
    scale = dim_head ** -0.5
    mean = jnp.mean(x, axis=-1, keepdims=True)
    var = jnp.mean((x - mean) ** 2, axis=-1, keepdims=True)
    xn = (x - mean) / jnp.sqrt(var + 1e-5) * params["gamma"][0] + params["beta"][0]
    qkv = xn @ params["w_qkv"]
    q, k, v = jnp.split(qkv, 3, axis=-1)
    reshape = lambda t: t.reshape(B, N, heads, dim_head).transpose(0, 2, 1, 3)
    q, k, v = map(reshape, (q, k, v))
    dots = jnp.einsum("bhnd,bhmd->bhnm", q, k) * scale
    attn = jax.nn.softmax(dots, axis=-1)
    out = jnp.einsum("bhnm,bhmd->bhnd", attn, v)
    out = out.transpose(0, 2, 1, 3).reshape(B, N, heads * dim_head)
    return out @ params["w_out"] + params["b_out"][0]


if __name__ == "__main__":
    # Small but MXU/lane-friendly shapes: D and inner are multiples of 128, and the row
    # batching packs Bt*N = 256 rows per grid step (grid of two "parallel" steps).
    B, N, D = 32, 16, 128
    heads, dim_head = 8, 64                 # PyTorch module defaults (inner = 512)

    key = jax.random.PRNGKey(0)
    kx, kp = jax.random.split(key)
    x = jax.random.normal(kx, (B, N, D), dtype=jnp.float32)
    params = init_params(kp, D, heads, dim_head)

    with jax.default_matmul_precision("highest"):
        y_ref = jax.block_until_ready(_reference(x, params, heads=heads, dim_head=dim_head))

    # (1) f32 compute dtype + exact reciprocal: structural correctness check.
    #     Tolerance covers MXU pass decomposition differences vs the XLA reference.
    p_f32 = prepare_params(params, heads=heads, dim_head=dim_head, compute_dtype=jnp.float32)
    y_f32 = jax.block_until_ready(
        attention_forward(x, p_f32, heads=heads, dim_head=dim_head, approx_recip=False))
    assert jnp.allclose(y_f32, y_ref, atol=2e-2, rtol=2e-2), "f32 path mismatch vs reference"

    # (2) bf16 MXU path + EUP approx reciprocal: the performance configuration.
    p_bf16 = prepare_params(params, heads=heads, dim_head=dim_head, compute_dtype=jnp.bfloat16)
    y_bf16 = jax.block_until_ready(
        attention_forward(x, p_bf16, heads=heads, dim_head=dim_head, approx_recip=True))
    assert jnp.allclose(y_bf16, y_ref, atol=5e-2, rtol=5e-2), "bf16 path mismatch vs reference"

    print("KERNEL_OK")
</pallas_src>

<mosaic_0001>
module attributes {stable_mosaic.version = 11 : i64} {
  func.func @_attention_kernel(%arg0: i32, %arg1: memref<16x128xf32, #tpu.memory_space<vmem>>, %arg2: memref<128x1536xf32, #tpu.memory_space<vmem>>, %arg3: memref<1x1536xf32, #tpu.memory_space<vmem>>, %arg4: memref<512x128xf32, #tpu.memory_space<vmem>>, %arg5: memref<1x128xf32, #tpu.memory_space<vmem>>, %arg6: memref<16x128xf32, #tpu.memory_space<vmem>>) attributes {dimension_semantics = [#tpu.dimension_semantics<parallel>], iteration_bounds = array<i64: 32>, scalar_prefetch = 0 : i64, scratch_operands = 0 : i64, tpu.core_type = #tpu.core_type<tc>, window_params = [{transform_indices = @transform_0, window_bounds = array<i64: 16, 128>}, {pipeline_mode = #tpu.pipeline_mode<synchronous>, transform_indices = @transform_1, window_bounds = array<i64: 128, 1536>}, {pipeline_mode = #tpu.pipeline_mode<synchronous>, transform_indices = @transform_2, window_bounds = array<i64: 1, 1536>}, {pipeline_mode = #tpu.pipeline_mode<synchronous>, transform_indices = @transform_3, window_bounds = array<i64: 512, 128>}, {pipeline_mode = #tpu.pipeline_mode<synchronous>, transform_indices = @transform_4, window_bounds = array<i64: 1, 128>}, {transform_indices = @transform_5, window_bounds = array<i64: 16, 128>}]} {
    %c0 = arith.constant 0 : index
    %c0_0 = arith.constant 0 : index
    %0 = vector.load %arg1[%c0, %c0_0] : memref<16x128xf32, #tpu.memory_space<vmem>>, vector<16x128xf32>
    %cst = arith.constant dense<0.000000e+00> : vector<16xf32>
    %1 = vector.multi_reduction <add>, %0, %cst [1] : vector<16x128xf32> to vector<16xf32>
    %2 = vector.shape_cast %1 : vector<16xf32> to vector<16x1xf32>
    %cst_1 = arith.constant 1.280000e+02 : f32
    %3 = vector.broadcast %cst_1 : f32 to vector<16x1xf32>
    %4 = arith.divf %2, %3 : vector<16x1xf32>
    %5 = vector.broadcast %4 : vector<16x1xf32> to vector<16x128xf32>
    %6 = arith.subf %0, %5 : vector<16x128xf32>
    %7 = arith.mulf %6, %6 : vector<16x128xf32>
    %cst_2 = arith.constant dense<0.000000e+00> : vector<16xf32>
    %8 = vector.multi_reduction <add>, %7, %cst_2 [1] : vector<16x128xf32> to vector<16xf32>
    %9 = vector.shape_cast %8 : vector<16xf32> to vector<16x1xf32>
    %cst_3 = arith.constant 1.280000e+02 : f32
    %10 = vector.broadcast %cst_3 : f32 to vector<16x1xf32>
    %11 = arith.divf %9, %10 : vector<16x1xf32>
    %12 = vector.broadcast %4 : vector<16x1xf32> to vector<16x128xf32>
    %13 = arith.subf %0, %12 : vector<16x128xf32>
    %cst_4 = arith.constant 9.99999974E-6 : f32
    %14 = vector.broadcast %cst_4 : f32 to vector<16x1xf32>
    %15 = arith.addf %11, %14 : vector<16x1xf32>
    %16 = math.rsqrt %15 : vector<16x1xf32>
    %17 = vector.broadcast %16 : vector<16x1xf32> to vector<16x128xf32>
    %18 = arith.mulf %13, %17 : vector<16x128xf32>
    %c0_5 = arith.constant 0 : index
    %c0_6 = arith.constant 0 : index
    %19 = vector.load %arg2[%c0_5, %c0_6] : memref<128x1536xf32, #tpu.memory_space<vmem>>, vector<128x1536xf32>
    %cst_7 = arith.constant dense<0.000000e+00> : vector<16x1536xf32>
    %20 = tpu.matmul %18, %19, %cst_7 {dimension_numbers = #tpu.dot_dimension_numbers<[1], [0], [0], [1], [0, 0, 1, 1], [], []>} : vector<16x128xf32>, vector<128x1536xf32>, vector<16x1536xf32> -> vector<16x1536xf32>
    %c0_8 = arith.constant 0 : index
    %c0_9 = arith.constant 0 : index
    %21 = vector.load %arg3[%c0_8, %c0_9] : memref<1x1536xf32, #tpu.memory_space<vmem>>, vector<1x1536xf32>
    %22 = vector.broadcast %21 : vector<1x1536xf32> to vector<16x1536xf32>
    %23 = arith.addf %20, %22 : vector<16x1536xf32>
    %24 = vector.extract_strided_slice %23 {offsets = [0, 0], sizes = [16, 512], strides = [1, 1]} : vector<16x1536xf32> to vector<16x512xf32>
    %25 = vector.extract_strided_slice %24 {offsets = [0, 0], sizes = [16, 64], strides = [1, 1]} : vector<16x512xf32> to vector<16x64xf32>
    %26 = vector.extract_strided_slice %24 {offsets = [0, 64], sizes = [16, 64], strides = [1, 1]} : vector<16x512xf32> to vector<16x64xf32>
    %27 = vector.extract_strided_slice %24 {offsets = [0, 128], sizes = [16, 64], strides = [1, 1]} : vector<16x512xf32> to vector<16x64xf32>
    %28 = vector.extract_strided_slice %24 {offsets = [0, 192], sizes = [16, 64], strides = [1, 1]} : vector<16x512xf32> to vector<16x64xf32>
    %29 = vector.extract_strided_slice %24 {offsets = [0, 256], sizes = [16, 64], strides = [1, 1]} : vector<16x512xf32> to vector<16x64xf32>
    %30 = vector.extract_strided_slice %24 {offsets = [0, 320], sizes = [16, 64], strides = [1, 1]} : vector<16x512xf32> to vector<16x64xf32>
    %31 = vector.extract_strided_slice %24 {offsets = [0, 384], sizes = [16, 64], strides = [1, 1]} : vector<16x512xf32> to vector<16x64xf32>
    %32 = vector.extract_strided_slice %24 {offsets = [0, 448], sizes = [16, 64], strides = [1, 1]} : vector<16x512xf32> to vector<16x64xf32>
    %33 = vector.shape_cast %25 : vector<16x64xf32> to vector<1x16x64xf32>
    %34 = vector.shape_cast %26 : vector<16x64xf32> to vector<1x16x64xf32>
    %35 = vector.shape_cast %27 : vector<16x64xf32> to vector<1x16x64xf32>
    %36 = vector.shape_cast %28 : vector<16x64xf32> to vector<1x16x64xf32>
    %37 = vector.shape_cast %29 : vector<16x64xf32> to vector<1x16x64xf32>
    %38 = vector.shape_cast %30 : vector<16x64xf32> to vector<1x16x64xf32>
    %39 = vector.shape_cast %31 : vector<16x64xf32> to vector<1x16x64xf32>
    %40 = vector.shape_cast %32 : vector<16x64xf32> to vector<1x16x64xf32>
    %41 = tpu.concatenate %33, %34, %35, %36, %37, %38, %39, %40 in 0 : vector<1x16x64xf32>, vector<1x16x64xf32>, vector<1x16x64xf32>, vector<1x16x64xf32>, vector<1x16x64xf32>, vector<1x16x64xf32>, vector<1x16x64xf32>, vector<1x16x64xf32> -> vector<8x16x64xf32>
    %42 = vector.extract_strided_slice %23 {offsets = [0, 512], sizes = [16, 512], strides = [1, 1]} : vector<16x1536xf32> to vector<16x512xf32>
    %43 = vector.extract_strided_slice %42 {offsets = [0, 0], sizes = [16, 64], strides = [1, 1]} : vector<16x512xf32> to vector<16x64xf32>
    %44 = vector.extract_strided_slice %42 {offsets = [0, 64], sizes = [16, 64], strides = [1, 1]} : vector<16x512xf32> to vector<16x64xf32>
    %45 = vector.extract_strided_slice %42 {offsets = [0, 128], sizes = [16, 64], strides = [1, 1]} : vector<16x512xf32> to vector<16x64xf32>
    %46 = vector.extract_strided_slice %42 {offsets = [0, 192], sizes = [16, 64], strides = [1, 1]} : vector<16x512xf32> to vector<16x64xf32>
    %47 = vector.extract_strided_slice %42 {offsets = [0, 256], sizes = [16, 64], strides = [1, 1]} : vector<16x512xf32> to vector<16x64xf32>
    %48 = vector.extract_strided_slice %42 {offsets = [0, 320], sizes = [16, 64], strides = [1, 1]} : vector<16x512xf32> to vector<16x64xf32>
    %49 = vector.extract_strided_slice %42 {offsets = [0, 384], sizes = [16, 64], strides = [1, 1]} : vector<16x512xf32> to vector<16x64xf32>
    %50 = vector.extract_strided_slice %42 {offsets = [0, 448], sizes = [16, 64], strides = [1, 1]} : vector<16x512xf32> to vector<16x64xf32>
    %51 = vector.shape_cast %43 : vector<16x64xf32> to vector<1x16x64xf32>
    %52 = vector.shape_cast %44 : vector<16x64xf32> to vector<1x16x64xf32>
    %53 = vector.shape_cast %45 : vector<16x64xf32> to vector<1x16x64xf32>
    %54 = vector.shape_cast %46 : vector<16x64xf32> to vector<1x16x64xf32>
    %55 = vector.shape_cast %47 : vector<16x64xf32> to vector<1x16x64xf32>
    %56 = vector.shape_cast %48 : vector<16x64xf32> to vector<1x16x64xf32>
    %57 = vector.shape_cast %49 : vector<16x64xf32> to vector<1x16x64xf32>
    %58 = vector.shape_cast %50 : vector<16x64xf32> to vector<1x16x64xf32>
    %59 = tpu.concatenate %51, %52, %53, %54, %55, %56, %57, %58 in 0 : vector<1x16x64xf32>, vector<1x16x64xf32>, vector<1x16x64xf32>, vector<1x16x64xf32>, vector<1x16x64xf32>, vector<1x16x64xf32>, vector<1x16x64xf32>, vector<1x16x64xf32> -> vector<8x16x64xf32>
    %60 = vector.extract_strided_slice %23 {offsets = [0, 1024], sizes = [16, 512], strides = [1, 1]} : vector<16x1536xf32> to vector<16x512xf32>
    %61 = vector.extract_strided_slice %60 {offsets = [0, 0], sizes = [16, 64], strides = [1, 1]} : vector<16x512xf32> to vector<16x64xf32>
    %62 = vector.extract_strided_slice %60 {offsets = [0, 64], sizes = [16, 64], strides = [1, 1]} : vector<16x512xf32> to vector<16x64xf32>
    %63 = vector.extract_strided_slice %60 {offsets = [0, 128], sizes = [16, 64], strides = [1, 1]} : vector<16x512xf32> to vector<16x64xf32>
    %64 = vector.extract_strided_slice %60 {offsets = [0, 192], sizes = [16, 64], strides = [1, 1]} : vector<16x512xf32> to vector<16x64xf32>
    %65 = vector.extract_strided_slice %60 {offsets = [0, 256], sizes = [16, 64], strides = [1, 1]} : vector<16x512xf32> to vector<16x64xf32>
    %66 = vector.extract_strided_slice %60 {offsets = [0, 320], sizes = [16, 64], strides = [1, 1]} : vector<16x512xf32> to vector<16x64xf32>
    %67 = vector.extract_strided_slice %60 {offsets = [0, 384], sizes = [16, 64], strides = [1, 1]} : vector<16x512xf32> to vector<16x64xf32>
    %68 = vector.extract_strided_slice %60 {offsets = [0, 448], sizes = [16, 64], strides = [1, 1]} : vector<16x512xf32> to vector<16x64xf32>
    %69 = vector.shape_cast %61 : vector<16x64xf32> to vector<1x16x64xf32>
    %70 = vector.shape_cast %62 : vector<16x64xf32> to vector<1x16x64xf32>
    %71 = vector.shape_cast %63 : vector<16x64xf32> to vector<1x16x64xf32>
    %72 = vector.shape_cast %64 : vector<16x64xf32> to vector<1x16x64xf32>
    %73 = vector.shape_cast %65 : vector<16x64xf32> to vector<1x16x64xf32>
    %74 = vector.shape_cast %66 : vector<16x64xf32> to vector<1x16x64xf32>
    %75 = vector.shape_cast %67 : vector<16x64xf32> to vector<1x16x64xf32>
    %76 = vector.shape_cast %68 : vector<16x64xf32> to vector<1x16x64xf32>
    %77 = tpu.concatenate %69, %70, %71, %72, %73, %74, %75, %76 in 0 : vector<1x16x64xf32>, vector<1x16x64xf32>, vector<1x16x64xf32>, vector<1x16x64xf32>, vector<1x16x64xf32>, vector<1x16x64xf32>, vector<1x16x64xf32>, vector<1x16x64xf32> -> vector<8x16x64xf32>
    "tpu.trace_start"() <{level = 10 : i32, message = "gnd,gmd->gnm"}> : () -> ()
    %cst_10 = arith.constant dense<0.000000e+00> : vector<8x16x16xf32>
    %78 = tpu.matmul %41, %59, %cst_10 {dimension_numbers = #tpu.dot_dimension_numbers<[2], [2], [1], [1], [0, 0, 0, 1, 1, 1], [0], [0]>} : vector<8x16x64xf32>, vector<8x16x64xf32>, vector<8x16x16xf32> -> vector<8x16x16xf32>
    "tpu.trace_stop"() : () -> ()
    %cst_11 = arith.constant dense<0xFF800000> : vector<8x16xf32>
    %79 = vector.multi_reduction <maximumf>, %78, %cst_11 [2] : vector<8x16x16xf32> to vector<8x16xf32>
    %80 = vector.shape_cast %79 : vector<8x16xf32> to vector<8x16x1xf32>
    %81 = vector.broadcast %80 : vector<8x16x1xf32> to vector<8x16x16xf32>
    %82 = arith.subf %78, %81 : vector<8x16x16xf32>
    %83 = math.exp %82 : vector<8x16x16xf32>
    %cst_12 = arith.constant dense<0.000000e+00> : vector<8x16xf32>
    %84 = vector.multi_reduction <add>, %83, %cst_12 [2] : vector<8x16x16xf32> to vector<8x16xf32>
    %85 = vector.shape_cast %84 : vector<8x16xf32> to vector<8x16x1xf32>
    "tpu.trace_start"() <{level = 10 : i32, message = "gnm,gmd->gnd"}> : () -> ()
    %cst_13 = arith.constant dense<0.000000e+00> : vector<8x16x64xf32>
    %86 = tpu.matmul %83, %77, %cst_13 {dimension_numbers = #tpu.dot_dimension_numbers<[2], [1], [1], [2], [0, 0, 0, 1, 1, 2], [0], [0]>} : vector<8x16x16xf32>, vector<8x16x64xf32>, vector<8x16x64xf32> -> vector<8x16x64xf32>
    "tpu.trace_stop"() : () -> ()
    %87 = tpu.reciprocal %85 : vector<8x16x1xf32> -> vector<8x16x1xf32>
    %88 = vector.broadcast %87 : vector<8x16x1xf32> to vector<8x16x64xf32>
    %89 = arith.mulf %86, %88 : vector<8x16x64xf32>
    %90 = vector.extract_strided_slice %89 {offsets = [0, 0, 0], sizes = [1, 16, 64], strides = [1, 1, 1]} : vector<8x16x64xf32> to vector<1x16x64xf32>
    %91 = vector.shape_cast %90 : vector<1x16x64xf32> to vector<16x64xf32>
    %92 = vector.extract_strided_slice %89 {offsets = [1, 0, 0], sizes = [1, 16, 64], strides = [1, 1, 1]} : vector<8x16x64xf32> to vector<1x16x64xf32>
    %93 = vector.shape_cast %92 : vector<1x16x64xf32> to vector<16x64xf32>
    %94 = vector.extract_strided_slice %89 {offsets = [2, 0, 0], sizes = [1, 16, 64], strides = [1, 1, 1]} : vector<8x16x64xf32> to vector<1x16x64xf32>
    %95 = vector.shape_cast %94 : vector<1x16x64xf32> to vector<16x64xf32>
    %96 = vector.extract_strided_slice %89 {offsets = [3, 0, 0], sizes = [1, 16, 64], strides = [1, 1, 1]} : vector<8x16x64xf32> to vector<1x16x64xf32>
    %97 = vector.shape_cast %96 : vector<1x16x64xf32> to vector<16x64xf32>
    %98 = vector.extract_strided_slice %89 {offsets = [4, 0, 0], sizes = [1, 16, 64], strides = [1, 1, 1]} : vector<8x16x64xf32> to vector<1x16x64xf32>
    %99 = vector.shape_cast %98 : vector<1x16x64xf32> to vector<16x64xf32>
    %100 = vector.extract_strided_slice %89 {offsets = [5, 0, 0], sizes = [1, 16, 64], strides = [1, 1, 1]} : vector<8x16x64xf32> to vector<1x16x64xf32>
    %101 = vector.shape_cast %100 : vector<1x16x64xf32> to vector<16x64xf32>
    %102 = vector.extract_strided_slice %89 {offsets = [6, 0, 0], sizes = [1, 16, 64], strides = [1, 1, 1]} : vector<8x16x64xf32> to vector<1x16x64xf32>
    %103 = vector.shape_cast %102 : vector<1x16x64xf32> to vector<16x64xf32>
    %104 = vector.extract_strided_slice %89 {offsets = [7, 0, 0], sizes = [1, 16, 64], strides = [1, 1, 1]} : vector<8x16x64xf32> to vector<1x16x64xf32>
    %105 = vector.shape_cast %104 : vector<1x16x64xf32> to vector<16x64xf32>
    %106 = tpu.concatenate %91, %93, %95, %97, %99, %101, %103, %105 in 1 : vector<16x64xf32>, vector<16x64xf32>, vector<16x64xf32>, vector<16x64xf32>, vector<16x64xf32>, vector<16x64xf32>, vector<16x64xf32>, vector<16x64xf32> -> vector<16x512xf32>
    %c0_14 = arith.constant 0 : index
    %c0_15 = arith.constant 0 : index
    %107 = vector.load %arg4[%c0_14, %c0_15] : memref<512x128xf32, #tpu.memory_space<vmem>>, vector<512x128xf32>
    %cst_16 = arith.constant dense<0.000000e+00> : vector<16x128xf32>
    %108 = tpu.matmul %106, %107, %cst_16 {dimension_numbers = #tpu.dot_dimension_numbers<[1], [0], [0], [1], [0, 0, 1, 1], [], []>} : vector<16x512xf32>, vector<512x128xf32>, vector<16x128xf32> -> vector<16x128xf32>
    %c0_17 = arith.constant 0 : index
    %c0_18 = arith.constant 0 : index
    %109 = vector.load %arg5[%c0_17, %c0_18] : memref<1x128xf32, #tpu.memory_space<vmem>>, vector<1x128xf32>
    %110 = vector.broadcast %109 : vector<1x128xf32> to vector<16x128xf32>
    %111 = arith.addf %108, %110 : vector<16x128xf32>
    %c0_19 = arith.constant 0 : index
    %c0_20 = arith.constant 0 : index
    %112 = vector.load %arg6[%c0_19, %c0_20] : memref<16x128xf32, #tpu.memory_space<vmem>>, vector<16x128xf32>
    tpu.vector_store %arg6[%c0_19, %c0_20], %111 {strides = array<i32>} : memref<16x128xf32, #tpu.memory_space<vmem>>, vector<16x128xf32>,
    return
  }
  func.func @transform_0(%arg0: i32) -> (i32, i32) {
    %c0_i32 = arith.constant 0 : i32
    %c0_i32_0 = arith.constant 0 : i32
    return %arg0, %c0_i32 : i32, i32
  }
  func.func @transform_1(%arg0: i32) -> (i32, i32) {
    %c0_i32 = arith.constant 0 : i32
    %c0_i32_0 = arith.constant 0 : i32
    %c0_i32_1 = arith.constant 0 : i32
    return %c0_i32, %c0_i32_0 : i32, i32
  }
  func.func @transform_2(%arg0: i32) -> (i32, i32) {
    %c0_i32 = arith.constant 0 : i32
    %c0_i32_0 = arith.constant 0 : i32
    %c0_i32_1 = arith.constant 0 : i32
    return %c0_i32, %c0_i32_0 : i32, i32
  }
  func.func @transform_3(%arg0: i32) -> (i32, i32) {
    %c0_i32 = arith.constant 0 : i32
    %c0_i32_0 = arith.constant 0 : i32
    %c0_i32_1 = arith.constant 0 : i32
    return %c0_i32, %c0_i32_0 : i32, i32
  }
  func.func @transform_4(%arg0: i32) -> (i32, i32) {
    %c0_i32 = arith.constant 0 : i32
    %c0_i32_0 = arith.constant 0 : i32
    %c0_i32_1 = arith.constant 0 : i32
    return %c0_i32, %c0_i32_0 : i32, i32
  }
  func.func @transform_5(%arg0: i32) -> (i32, i32) {
    %c0_i32 = arith.constant 0 : i32
    %c0_i32_0 = arith.constant 0 : i32
    return %arg0, %c0_i32 : i32, i32
  }
}

</mosaic_0001>

<llo_original>
// kernel: tpu_custom_call.1
$region0: #{tpu_custom_call.1}
  #allocation0 [shape = 'u32[]', space=smem, size = 0x4, offset = 0x4, fixed_abs, tag = 'smem constant byte address 0x4 - core index']
  #allocation1 [shape = 'u32[144,128]{1,0:T(1,128)}', space=vmem, size = 0x12000, scoped, tag = 'internal scratch']
  %s0 = inlined_call_operand.hbm [shape: f32[512,128], index: 0, kind: input, shape index: {}]
  %s1 = inlined_call_operand.hbm [shape: f32[128,1536], index: 1, kind: input, shape index: {}]
  %s2 = inlined_call_operand.hbm [shape: f32[1,1536], index: 2, kind: input, shape index: {}]
  %s3 = inlined_call_operand.hbm [shape: f32[512,128], index: 3, kind: input, shape index: {}]
  %s4 = inlined_call_operand.vmem [shape: f32[1,128], index: 4, kind: input, shape index: {}]
  %s5 = inlined_call_operand.hbm [shape: f32[512,128], index: 5, kind: output, shape index: {}]
  %s6 = sld [smem:[#allocation0]]
  $region69: #{tpu_custom_call.1} parent=0
    _
  %s8 = ssub.s32 1, %s6
  %s9 = scalar_select 0, %s8, %s6
  $region1: #{tpu_custom_call.1} parent=0
    #allocation2 [shape = 'u8[16384]{0}', space=vmem, size = 0x4000, scoped, tag = 'input window, operand 0']
    #allocation3 [shape = 's32[2]{0}', space=sflag, size = 0x8, scoped, tag = 'scoped memory for tpu_custom_call.1']
    #allocation4 [shape = 's32[2]{0}', space=sflag, size = 0x8, scoped, tag = 'scoped memory for tpu_custom_call.1']
    #allocation5 [shape = 'u8[786432]{0}', space=vmem, size = 0xc0000, scoped, tag = 'input window, operand 1, single buffered']
    #allocation6 [shape = 's32[1]{0}', space=sflag, size = 0x4, scoped, tag = 'scoped memory for tpu_custom_call.1']
    #allocation7 [shape = 'u8[6144]{0}', space=vmem, size = 0x1800, scoped, tag = 'input window, operand 2, single buffered']
    #allocation8 [shape = 'u8[262144]{0}', space=vmem, size = 0x40000, scoped, tag = 'input window, operand 3, single buffered']
    #allocation9 [shape = 's32[1]{0}', space=sflag, size = 0x4, scoped, tag = 'scoped memory for tpu_custom_call.1']
    #allocation10 [shape = 'u8[16384]{0}', space=vmem, size = 0x4000, scoped, tag = 'output window, operand 0']
    %10 = vsyncpa [#allocation3], 0
    %s11 = scalar_lea.sflag [#allocation3], 1
    %12 = vsyncpa %s11, 0
    %13 = vsyncpa [#allocation6], 0
    %14 = vsyncpa [#allocation9], 0
    %15 = vsyncpa [#allocation4], 0
    %s16 = scalar_lea.sflag [#allocation4], 1
    %17 = vsyncpa %s16, 0
    loop: start=0, step=1, limit=34
    $region2: #{tpu_custom_call.1} parent=1 // loop_pre_header
      _
    $region3: #{tpu_custom_call.1} parent=1 // loop_header
      %s19 = sphi 0, %s23
      %p20 = scmp.ge.s32.totalorder %s19, 34
      %s29 = sphi 0, %s31
      %s32 = sphi 0, %s29
      %s33 = sphi 0, %s32
      %s49 = sphi 0, %s33
      %s53 = sphi 0, %s53
      %s55 = sphi 0, %s53
      %s56 = sphi 0, %s55
      %s70 = sphi 0, %s56
      %s74 = sphi 0, %s74
      %s76 = sphi 0, %s74
      %s77 = sphi 0, %s76
      %s91 = sphi 0, %s77
      %s95 = sphi 0, %s95
      %s97 = sphi 0, %s95
      %s98 = sphi 0, %s97
      %s112 = sphi 0, %s98
      %s116 = sphi 0, %s116
      %s118 = sphi 0, %s116
      %s119 = sphi 0, %s118
      %s133 = sphi 0, %s119
      %s139 = sphi 0, %s141
      %s142 = sphi 0, %s139
      %s143 = sphi 0, %s142
      %s159 = sphi 0, %s143
    $region4: #{tpu_custom_call.1} parent=1 // loop_header_branch
      %22 = sbr.rel (%p20) target = $region8
    $region5: #{tpu_custom_call.1} parent=1 // loop_body
      %s24 = ssub.s32 %s19, 1
      %s25 = ssub.s32 %s19, 2
      %s26 = sadd.s32 %s19, 1
      %s27 = ssub.s32 %s19, %s26
      %p28 = scmp.eq.s32.totalorder %s27, 0
      %s30 = sadd.s32 %s29, 1
      %s31 = scalar_select %p28, %s29, %s30
      %p34 = pneg %p28
      %p35 = scmp.eq.s32.totalorder %s19, 31
      %p36 = por %p34, %p35
      %p37 = scmp.ne.s32.totalorder %s29, %s32
      %p38 = scmp.eq.s32.totalorder %s19, 0
      %p39 = por %p37, %p38
      %p40 = scmp.ne.s32.totalorder %s29, %s32
      %p41 = scmp.eq.s32.totalorder %s24, 31
      %p42 = por %p40, %p41
      %p43 = scmp.ne.s32.totalorder %s32, %s33
      %p44 = scmp.eq.s32.totalorder %s24, 0
      %p45 = por %p43, %p44
      %p46 = scmp.ne.s32.totalorder %s32, %s33
      %p47 = scmp.eq.s32.totalorder %s25, 31
      %p48 = por %p46, %p47
      %p50 = scmp.ne.s32.totalorder %s33, %s49
      %p51 = scmp.eq.s32.totalorder %s25, 0
      %p52 = por %p50, %p51
      %s54 = sadd.s32 %s53, 1
      %p57 = scmp.eq.s32.totalorder %s19, 31
      %p58 = scmp.ne.s32.totalorder %s53, %s55
      %p59 = scmp.eq.s32.totalorder %s19, 0
      %p60 = por %p58, %p59
      %p61 = scmp.ne.s32.totalorder %s53, %s55
      %p62 = scmp.eq.s32.totalorder %s24, 31
      %p63 = por %p61, %p62
      %p64 = scmp.ne.s32.totalorder %s55, %s56
      %p65 = scmp.eq.s32.totalorder %s24, 0
      %p66 = por %p64, %p65
      %p67 = scmp.ne.s32.totalorder %s55, %s56
      %p68 = scmp.eq.s32.totalorder %s25, 31
      %p69 = por %p67, %p68
      %p71 = scmp.ne.s32.totalorder %s56, %s70
      %p72 = scmp.eq.s32.totalorder %s25, 0
      %p73 = por %p71, %p72
      %s75 = sadd.s32 %s74, 1
      %p78 = scmp.eq.s32.totalorder %s19, 31
      %p79 = scmp.ne.s32.totalorder %s74, %s76
      %p80 = scmp.eq.s32.totalorder %s19, 0
      %p81 = por %p79, %p80
      %p82 = scmp.ne.s32.totalorder %s74, %s76
      %p83 = scmp.eq.s32.totalorder %s24, 31
      %p84 = por %p82, %p83
      %p85 = scmp.ne.s32.totalorder %s76, %s77
      %p86 = scmp.eq.s32.totalorder %s24, 0
      %p87 = por %p85, %p86
      %p88 = scmp.ne.s32.totalorder %s76, %s77
      %p89 = scmp.eq.s32.totalorder %s25, 31
      %p90 = por %p88, %p89
      %p92 = scmp.ne.s32.totalorder %s77, %s91
      %p93 = scmp.eq.s32.totalorder %s25, 0
      %p94 = por %p92, %p93
      %s96 = sadd.s32 %s95, 1
      %p99 = scmp.eq.s32.totalorder %s19, 31
      %p100 = scmp.ne.s32.totalorder %s95, %s97
      %p101 = scmp.eq.s32.totalorder %s19, 0
      %p102 = por %p100, %p101
      %p103 = scmp.ne.s32.totalorder %s95, %s97
      %p104 = scmp.eq.s32.totalorder %s24, 31
      %p105 = por %p103, %p104
      %p106 = scmp.ne.s32.totalorder %s97, %s98
      %p107 = scmp.eq.s32.totalorder %s24, 0
      %p108 = por %p106, %p107
      %p109 = scmp.ne.s32.totalorder %s97, %s98
      %p110 = scmp.eq.s32.totalorder %s25, 31
      %p111 = por %p109, %p110
      %p113 = scmp.ne.s32.totalorder %s98, %s112
      %p114 = scmp.eq.s32.totalorder %s25, 0
      %p115 = por %p113, %p114
      %s117 = sadd.s32 %s116, 1
      %p120 = scmp.eq.s32.totalorder %s19, 31
      %p121 = scmp.ne.s32.totalorder %s116, %s118
      %p122 = scmp.eq.s32.totalorder %s19, 0
      %p123 = por %p121, %p122
      %p124 = scmp.ne.s32.totalorder %s116, %s118
      %p125 = scmp.eq.s32.totalorder %s24, 31
      %p126 = por %p124, %p125
      %p127 = scmp.ne.s32.totalorder %s118, %s119
      %p128 = scmp.eq.s32.totalorder %s24, 0
      %p129 = por %p127, %p128
      %p130 = scmp.ne.s32.totalorder %s118, %s119
      %p131 = scmp.eq.s32.totalorder %s25, 31
      %p132 = por %p130, %p131
      %p134 = scmp.ne.s32.totalorder %s119, %s133
      %p135 = scmp.eq.s32.totalorder %s25, 0
      %p136 = por %p134, %p135
      %s137 = ssub.s32 %s19, %s26
      %p138 = scmp.eq.s32.totalorder %s137, 0
      %s140 = sadd.s32 %s139, 1
      %s141 = scalar_select %p138, %s139, %s140
      %p144 = pneg %p138
      %p145 = scmp.eq.s32.totalorder %s19, 31
      %p146 = por %p144, %p145
      %p147 = scmp.ne.s32.totalorder %s139, %s142
      %p148 = scmp.eq.s32.totalorder %s19, 0
      %p149 = por %p147, %p148
      %p150 = scmp.ne.s32.totalorder %s139, %s142
      %p151 = scmp.eq.s32.totalorder %s24, 31
      %p152 = por %p150, %p151
      %p153 = scmp.ne.s32.totalorder %s142, %s143
      %p154 = scmp.eq.s32.totalorder %s24, 0
      %p155 = por %p153, %p154
      %p156 = scmp.ne.s32.totalorder %s142, %s143
      %p157 = scmp.eq.s32.totalorder %s25, 31
      %p158 = por %p156, %p157
      %p160 = scmp.ne.s32.totalorder %s143, %s159
      %p161 = scmp.eq.s32.totalorder %s25, 0
      %p162 = por %p160, %p161
      %p163 = scmp.le.s32.totalorder 1, %s19
      %p164 = scmp.lt.s32.totalorder %s19, 33
      %p165 = pnand %p163, %p164
      %p166 = pneg %p165
      // Predicated region
      $region9: #{tpu_custom_call.1} parent=5 // pred_check
        _
      $region10: #{tpu_custom_call.1} parent=5 // pred_check_branch
        %168 = sbr.rel (%p165) target = $region12
      $region11: #{tpu_custom_call.1} parent=5 // pred_region
        %s169 = ssub.s32 %s19, 1
        // Predicated region
        $region13: #{tpu_custom_call.1} parent=11 // pred_check
          %p170 = pneg %p66
        $region14: #{tpu_custom_call.1} parent=11 // pred_check_branch
          %172 = sbr.rel (%p170) target = $region16
        $region15: #{tpu_custom_call.1} parent=11 // pred_region
          %s174 = ssub.s32 24576, 24576
          %175 = vsyncadd [#allocation6], %s174
          %s176 = sshll.u32 [#allocation5], 4
          %s177 = int_to_ptr.vmem [resolvable:$true] %s176
          %182 = dma.hbm_to_vmem [thread:$0]  %s1, 24576, %s177, [#allocation6], 1536, 1536, 96
        $region16: #{tpu_custom_call.1} parent=11 // pred_fallthru
          _
        // Predicated region
        $region17: #{tpu_custom_call.1} parent=11 // pred_check
          %p183 = pneg %p87
        $region18: #{tpu_custom_call.1} parent=11 // pred_check_branch
          %185 = sbr.rel (%p183) target = $region20
        $region19: #{tpu_custom_call.1} parent=11 // pred_region
          %s187 = ssub.s32 192, 192
          %188 = vsyncadd [#allocation6], %s187
          %s190 = sshll.u32 [#allocation7], 4
          %s191 = int_to_ptr.vmem [resolvable:$true] %s190
          %193 = dma.hbm_to_vmem [thread:$0]  %s2, 192, %s191, [#allocation6]
        $region20: #{tpu_custom_call.1} parent=11 // pred_fallthru
          _
        // Predicated region
        $region21: #{tpu_custom_call.1} parent=11 // pred_check
          %p194 = pneg %p108
        $region22: #{tpu_custom_call.1} parent=11 // pred_check_branch
          %196 = sbr.rel (%p194) target = $region24
        $region23: #{tpu_custom_call.1} parent=11 // pred_region
          %s198 = ssub.s32 8192, 8192
          %199 = vsyncadd [#allocation9], %s198
          %s200 = sshll.u32 [#allocation8], 4
          %s201 = int_to_ptr.vmem [resolvable:$true] %s200
          %206 = dma.hbm_to_vmem [thread:$0]  %s3, 8192, %s201, [#allocation9], 128, 128, 8
        $region24: #{tpu_custom_call.1} parent=11 // pred_fallthru
          _
        // Predicated region
        $region25: #{tpu_custom_call.1} parent=11 // pred_check
          %p207 = pneg %p129
        $region26: #{tpu_custom_call.1} parent=11 // pred_check_branch
          %209 = sbr.rel (%p207) target = $region28
        $region27: #{tpu_custom_call.1} parent=11 // pred_region
          _
        $region28: #{tpu_custom_call.1} parent=11 // pred_fallthru
          _
      $region12: #{tpu_custom_call.1} parent=5 // pred_fallthru
        _
      %p210 = scmp.lt.s32.totalorder %s19, 32
      // Predicated region
      $region29: #{tpu_custom_call.1} parent=5 // pred_check
        %p211 = pneg %p210
      $region30: #{tpu_custom_call.1} parent=5 // pred_check_branch
        %213 = sbr.rel (%p211) target = $region32
      $region31: #{tpu_custom_call.1} parent=5 // pred_region
        // Predicated region
        $region33: #{tpu_custom_call.1} parent=31 // pred_check
          %p214 = pneg %p39
        $region34: #{tpu_custom_call.1} parent=31 // pred_check_branch
          %216 = sbr.rel (%p214) target = $region36
        $region35: #{tpu_custom_call.1} parent=31 // pred_region
          %s217 = sand.u32 %s29, 1
          %s218 = scalar_lea.sflag [#allocation3], %s217
          %s219 = sand.u32 %s29, 1
          %s220 = smul.addr %s219, 16
          %s221 = scalar_lea.vmem [#allocation2], %s220
          %s222 = smul.u32 2, %s19
          %s224 = ssub.s32 256, 256
          %225 = vsyncadd %s218, %s224
          %s226 = smul.addr %s222, 128
          %s227 = scalar_lea.hbm %s0, %s226
          %s228 = sshll.u32 %s221, 4
          %s229 = int_to_ptr.vmem [resolvable:$true] %s228
          %234 = dma.hbm_to_vmem [thread:$0]  %s227, 256, %s229, %s218, 128, 128, 8
        $region36: #{tpu_custom_call.1} parent=31 // pred_fallthru
          _
      $region32: #{tpu_custom_call.1} parent=5 // pred_fallthru
        _
      %p235 = scmp.le.s32.totalorder 1, %s19
      %p236 = scmp.lt.s32.totalorder %s19, 33
      %p237 = pnand %p235, %p236
      %p238 = pneg %p237
      // Predicated region
      $region37: #{tpu_custom_call.1} parent=5 // pred_check
        _
      $region38: #{tpu_custom_call.1} parent=5 // pred_check_branch
        %240 = sbr.rel (%p237) target = $region40
      $region39: #{tpu_custom_call.1} parent=5 // pred_region
        %s241 = ssub.s32 %s19, 1
        %s242 = sand.u32 %s32, 1
        %s243 = scalar_lea.sflag [#allocation3], %s242
        %s244 = sand.u32 %s32, 1
        %s245 = smul.addr %s244, 16
        %s246 = scalar_lea.vmem [#allocation2], %s245
        // Predicated region
        $region41: #{tpu_custom_call.1} parent=39 // pred_check
          %p247 = pneg %p45
        $region42: #{tpu_custom_call.1} parent=39 // pred_check_branch
          %249 = sbr.rel (%p247) target = $region44
        $region43: #{tpu_custom_call.1} parent=39 // pred_region
          %250 = dma.done %s243, 256
        $region44: #{tpu_custom_call.1} parent=39 // pred_fallthru
          _
        // Predicated region
        $region45: #{tpu_custom_call.1} parent=39 // pred_check
          %p251 = pneg %p66
        $region46: #{tpu_custom_call.1} parent=39 // pred_check_branch
          %253 = sbr.rel (%p251) target = $region48
        $region47: #{tpu_custom_call.1} parent=39 // pred_region
          %254 = dma.done [#allocation6], 24576
        $region48: #{tpu_custom_call.1} parent=39 // pred_fallthru
          _
        // Predicated region
        $region49: #{tpu_custom_call.1} parent=39 // pred_check
          %p255 = pneg %p87
        $region50: #{tpu_custom_call.1} parent=39 // pred_check_branch
          %257 = sbr.rel (%p255) target = $region52
        $region51: #{tpu_custom_call.1} parent=39 // pred_region
          %258 = dma.done [#allocation6], 192
        $region52: #{tpu_custom_call.1} parent=39 // pred_fallthru
          _
        // Predicated region
        $region53: #{tpu_custom_call.1} parent=39 // pred_check
          %p259 = pneg %p108
        $region54: #{tpu_custom_call.1} parent=39 // pred_check_branch
          %261 = sbr.rel (%p259) target = $region56
        $region55: #{tpu_custom_call.1} parent=39 // pred_region
          %262 = dma.done [#allocation9], 8192
        $region56: #{tpu_custom_call.1} parent=39 // pred_fallthru
          _
        %s263 = sand.u32 %s32, 1
        %s264 = scalar_lea.sflag [#allocation3], %s263
        %s265 = sand.u32 %s32, 1
        %s266 = smul.addr %s265, 16
        %s267 = scalar_lea.vmem [#allocation2], %s266
        %p268 = pneg %p45
        %p269 = pneg %p42
        %p270 = pneg %p66
        %p271 = pneg %p63
        %p272 = pneg %p87
        %p273 = pneg %p84
        %p274 = pneg %p108
        %p275 = pneg %p105
        %p276 = pneg %p129
        %p277 = pneg %p126
        %p278 = pneg %p155
        %p279 = pneg %p152
        %s280 = sand.u32 %s142, 1
        %s281 = scalar_lea.sflag [#allocation4], %s280
        %s282 = sand.u32 %s142, 1
        %s283 = smul.addr %s282, 16
        %s284 = scalar_lea.vmem [#allocation10], %s283
        %s285 = smul.u32 2, %s24
        %s286 = smul.u32 2, %s24
        %v287 = vld [vmem:[%s246] sm:$0xff]
        %v288 = vld [vmem:[%s246 + $0x8] sm:$0xff]
        %289 = vadd.xlane.f32.xlu0 %v287
        %v290 = vpop.xlane.xlu0 %289
        %291 = vadd.xlane.f32.xlu0 %v288
        %v292 = vpop.xlane.xlu0 %291
        %v293 = vrcp.pop 128.0
        %v294 = vmul.f32 %v290, %v293
        %v295 = vmul.f32 %v292, %v293
        %v296 = vsub.f32 %v287, %v294
        %v297 = vsub.f32 %v288, %v295
        %v298 = vmul.f32 %v296, %v296
        %v299 = vmul.f32 %v297, %v297
        %300 = vadd.xlane.f32.xlu0 %v298
        %v301 = vpop.xlane.xlu0 %300
        %302 = vadd.xlane.f32.xlu0 %v299
        %v303 = vpop.xlane.xlu0 %302
        %v304 = vmul.f32 %v301, %v293
        %v305 = vmul.f32 %v303, %v293
        %v306 = vadd.f32 %v304, 1e-05
        %v307 = vadd.f32 %v305, 1e-05
        %v308 = vrsqrt.pop %v306
        %v309 = vrsqrt.pop %v307
        %v310 = vmul.f32 %v296, %v308
        %v311 = vmul.f32 %v297, %v309
        %v312 = vld [vmem:[#allocation5] sm:$0xff]
        %v313 = vld [vmem:[#allocation5 + $0x8] sm:$0xff]
        %v314 = vld [vmem:[#allocation5 + $0x10] sm:$0xff]
        %v315 = vld [vmem:[#allocation5 + $0x18] sm:$0xff]
        %v316 = vld [vmem:[#allocation5 + $0x20] sm:$0xff]
        %v317 = vld [vmem:[#allocation5 + $0x28] sm:$0xff]
        %v318 = vld [vmem:[#allocation5 + $0x30] sm:$0xff]
        %v319 = vld [vmem:[#allocation5 + $0x38] sm:$0xff]
        %v320 = vld [vmem:[#allocation5 + $0x40] sm:$0xff]
        %v321 = vld [vmem:[#allocation5 + $0x48] sm:$0xff]
        %v322 = vld [vmem:[#allocation5 + $0x50] sm:$0xff]
        %v323 = vld [vmem:[#allocation5 + $0x58] sm:$0xff]
        %v324 = vld [vmem:[#allocation5 + $0x60] sm:$0xff]
        %v325 = vld [vmem:[#allocation5 + $0x68] sm:$0xff]
        %v326 = vld [vmem:[#allocation5 + $0x70] sm:$0xff]
        %v327 = vld [vmem:[#allocation5 + $0x78] sm:$0xff]
        %v328 = vld [vmem:[#allocation5 + $0x80] sm:$0xff]
        %v329 = vld [vmem:[#allocation5 + $0x88] sm:$0xff]
        %v330 = vld [vmem:[#allocation5 + $0x90] sm:$0xff]
        %v331 = vld [vmem:[#allocation5 + $0x98] sm:$0xff]
        %v332 = vld [vmem:[#allocation5 + $0xa0] sm:$0xff]
        %v333 = vld [vmem:[#allocation5 + $0xa8] sm:$0xff]
        %v334 = vld [vmem:[#allocation5 + $0xb0] sm:$0xff]
        %v335 = vld [vmem:[#allocation5 + $0xb8] sm:$0xff]
        %v336 = vld [vmem:[#allocation5 + $0xc0] sm:$0xff]
        %v337 = vld [vmem:[#allocation5 + $0xc8] sm:$0xff]
        %v338 = vld [vmem:[#allocation5 + $0xd0] sm:$0xff]
        %v339 = vld [vmem:[#allocation5 + $0xd8] sm:$0xff]
        %v340 = vld [vmem:[#allocation5 + $0xe0] sm:$0xff]
        %v341 = vld [vmem:[#allocation5 + $0xe8] sm:$0xff]
        %v342 = vld [vmem:[#allocation5 + $0xf0] sm:$0xff]
        %v343 = vld [vmem:[#allocation5 + $0xf8] sm:$0xff]
        %v344 = vld [vmem:[#allocation5 + $0x100] sm:$0xff]
        %v345 = vld [vmem:[#allocation5 + $0x108] sm:$0xff]
        %v346 = vld [vmem:[#allocation5 + $0x110] sm:$0xff]
        %v347 = vld [vmem:[#allocation5 + $0x118] sm:$0xff]
        %v348 = vld [vmem:[#allocation5 + $0x120] sm:$0xff]
        %v349 = vld [vmem:[#allocation5 + $0x128] sm:$0xff]
        %v350 = vld [vmem:[#allocation5 + $0x130] sm:$0xff]
        %v351 = vld [vmem:[#allocation5 + $0x138] sm:$0xff]
        %v352 = vld [vmem:[#allocation5 + $0x140] sm:$0xff]
        %v353 = vld [vmem:[#allocation5 + $0x148] sm:$0xff]
        %v354 = vld [vmem:[#allocation5 + $0x150] sm:$0xff]
        %v355 = vld [vmem:[#allocation5 + $0x158] sm:$0xff]
        %v356 = vld [vmem:[#allocation5 + $0x160] sm:$0xff]
        %v357 = vld [vmem:[#allocation5 + $0x168] sm:$0xff]
        %v358 = vld [vmem:[#allocation5 + $0x170] sm:$0xff]
        %v359 = vld [vmem:[#allocation5 + $0x178] sm:$0xff]
        %v360 = vld [vmem:[#allocation5 + $0x180] sm:$0xff]
        %v361 = vld [vmem:[#allocation5 + $0x188] sm:$0xff]
        %v362 = vld [vmem:[#allocation5 + $0x190] sm:$0xff]
        %v363 = vld [vmem:[#allocation5 + $0x198] sm:$0xff]
        %v364 = vld [vmem:[#allocation5 + $0x1a0] sm:$0xff]
        %v365 = vld [vmem:[#allocation5 + $0x1a8] sm:$0xff]
        %v366 = vld [vmem:[#allocation5 + $0x1b0] sm:$0xff]
        %v367 = vld [vmem:[#allocation5 + $0x1b8] sm:$0xff]
        %v368 = vld [vmem:[#allocation5 + $0x1c0] sm:$0xff]
        %v369 = vld [vmem:[#allocation5 + $0x1c8] sm:$0xff]
        %v370 = vld [vmem:[#allocation5 + $0x1d0] sm:$0xff]
        %v371 = vld [vmem:[#allocation5 + $0x1d8] sm:$0xff]
        %v372 = vld [vmem:[#allocation5 + $0x1e0] sm:$0xff]
        %v373 = vld [vmem:[#allocation5 + $0x1e8] sm:$0xff]
        %v374 = vld [vmem:[#allocation5 + $0x1f0] sm:$0xff]
        %v375 = vld [vmem:[#allocation5 + $0x1f8] sm:$0xff]
        %v376 = vld [vmem:[#allocation5 + $0x200] sm:$0xff]
        %v377 = vld [vmem:[#allocation5 + $0x208] sm:$0xff]
        %v378 = vld [vmem:[#allocation5 + $0x210] sm:$0xff]
        %v379 = vld [vmem:[#allocation5 + $0x218] sm:$0xff]
        %v380 = vld [vmem:[#allocation5 + $0x220] sm:$0xff]
        %v381 = vld [vmem:[#allocation5 + $0x228] sm:$0xff]
        %v382 = vld [vmem:[#allocation5 + $0x230] sm:$0xff]
        %v383 = vld [vmem:[#allocation5 + $0x238] sm:$0xff]
        %v384 = vld [vmem:[#allocation5 + $0x240] sm:$0xff]
        %v385 = vld [vmem:[#allocation5 + $0x248] sm:$0xff]
        %v386 = vld [vmem:[#allocation5 + $0x250] sm:$0xff]
        %v387 = vld [vmem:[#allocation5 + $0x258] sm:$0xff]
        %v388 = vld [vmem:[#allocation5 + $0x260] sm:$0xff]
        %v389 = vld [vmem:[#allocation5 + $0x268] sm:$0xff]
        %v390 = vld [vmem:[#allocation5 + $0x270] sm:$0xff]
        %v391 = vld [vmem:[#allocation5 + $0x278] sm:$0xff]
        %v392 = vld [vmem:[#allocation5 + $0x280] sm:$0xff]
        %v393 = vld [vmem:[#allocation5 + $0x288] sm:$0xff]
        %v394 = vld [vmem:[#allocation5 + $0x290] sm:$0xff]
        %v395 = vld [vmem:[#allocation5 + $0x298] sm:$0xff]
        %v396 = vld [vmem:[#allocation5 + $0x2a0] sm:$0xff]
        %v397 = vld [vmem:[#allocation5 + $0x2a8] sm:$0xff]
        %v398 = vld [vmem:[#allocation5 + $0x2b0] sm:$0xff]
        %v399 = vld [vmem:[#allocation5 + $0x2b8] sm:$0xff]
        %v400 = vld [vmem:[#allocation5 + $0x2c0] sm:$0xff]
        %v401 = vld [vmem:[#allocation5 + $0x2c8] sm:$0xff]
        %v402 = vld [vmem:[#allocation5 + $0x2d0] sm:$0xff]
        %v403 = vld [vmem:[#allocation5 + $0x2d8] sm:$0xff]
        %v404 = vld [vmem:[#allocation5 + $0x2e0] sm:$0xff]
        %v405 = vld [vmem:[#allocation5 + $0x2e8] sm:$0xff]
        %v406 = vld [vmem:[#allocation5 + $0x2f0] sm:$0xff]
        %v407 = vld [vmem:[#allocation5 + $0x2f8] sm:$0xff]
        %v408 = vld [vmem:[#allocation5 + $0x300] sm:$0xff]
        %v409 = vld [vmem:[#allocation5 + $0x308] sm:$0xff]
        %v410 = vld [vmem:[#allocation5 + $0x310] sm:$0xff]
        %v411 = vld [vmem:[#allocation5 + $0x318] sm:$0xff]
        %v412 = vld [vmem:[#allocation5 + $0x320] sm:$0xff]
        %v413 = vld [vmem:[#allocation5 + $0x328] sm:$0xff]
        %v414 = vld [vmem:[#allocation5 + $0x330] sm:$0xff]
        %v415 = vld [vmem:[#allocation5 + $0x338] sm:$0xff]
        %v416 = vld [vmem:[#allocation5 + $0x340] sm:$0xff]
        %v417 = vld [vmem:[#allocation5 + $0x348] sm:$0xff]
        %v418 = vld [vmem:[#allocation5 + $0x350] sm:$0xff]
        %v419 = vld [vmem:[#allocation5 + $0x358] sm:$0xff]
        %v420 = vld [vmem:[#allocation5 + $0x360] sm:$0xff]
        %v421 = vld [vmem:[#allocation5 + $0x368] sm:$0xff]
        %v422 = vld [vmem:[#allocation5 + $0x370] sm:$0xff]
        %v423 = vld [vmem:[#allocation5 + $0x378] sm:$0xff]
        %v424 = vld [vmem:[#allocation5 + $0x380] sm:$0xff]
        %v425 = vld [vmem:[#allocation5 + $0x388] sm:$0xff]
        %v426 = vld [vmem:[#allocation5 + $0x390] sm:$0xff]
        %v427 = vld [vmem:[#allocation5 + $0x398] sm:$0xff]
        %v428 = vld [vmem:[#allocation5 + $0x3a0] sm:$0xff]
        %v429 = vld [vmem:[#allocation5 + $0x3a8] sm:$0xff]
        %v430 = vld [vmem:[#allocation5 + $0x3b0] sm:$0xff]
        %v431 = vld [vmem:[#allocation5 + $0x3b8] sm:$0xff]
        %v432 = vld [vmem:[#allocation5 + $0x3c0] sm:$0xff]
        %v433 = vld [vmem:[#allocation5 + $0x3c8] sm:$0xff]
        %v434 = vld [vmem:[#allocation5 + $0x3d0] sm:$0xff]
        %v435 = vld [vmem:[#allocation5 + $0x3d8] sm:$0xff]
        %v436 = vld [vmem:[#allocation5 + $0x3e0] sm:$0xff]
        %v437 = vld [vmem:[#allocation5 + $0x3e8] sm:$0xff]
        %v438 = vld [vmem:[#allocation5 + $0x3f0] sm:$0xff]
        %v439 = vld [vmem:[#allocation5 + $0x3f8] sm:$0xff]
        %v440 = vld [vmem:[#allocation5 + $0x400] sm:$0xff]
        %v441 = vld [vmem:[#allocation5 + $0x408] sm:$0xff]
        %v442 = vld [vmem:[#allocation5 + $0x410] sm:$0xff]
        %v443 = vld [vmem:[#allocation5 + $0x418] sm:$0xff]
        %v444 = vld [vmem:[#allocation5 + $0x420] sm:$0xff]
        %v445 = vld [vmem:[#allocation5 + $0x428] sm:$0xff]
        %v446 = vld [vmem:[#allocation5 + $0x430] sm:$0xff]
        %v447 = vld [vmem:[#allocation5 + $0x438] sm:$0xff]
        %v448 = vld [vmem:[#allocation5 + $0x440] sm:$0xff]
        %v449 = vld [vmem:[#allocation5 + $0x448] sm:$0xff]
        %v450 = vld [vmem:[#allocation5 + $0x450] sm:$0xff]
        %v451 = vld [vmem:[#allocation5 + $0x458] sm:$0xff]
        %v452 = vld [vmem:[#allocation5 + $0x460] sm:$0xff]
        %v453 = vld [vmem:[#allocation5 + $0x468] sm:$0xff]
        %v454 = vld [vmem:[#allocation5 + $0x470] sm:$0xff]
        %v455 = vld [vmem:[#allocation5 + $0x478] sm:$0xff]
        %v456 = vld [vmem:[#allocation5 + $0x480] sm:$0xff]
        %v457 = vld [vmem:[#allocation5 + $0x488] sm:$0xff]
        %v458 = vld [vmem:[#allocation5 + $0x490] sm:$0xff]
        %v459 = vld [vmem:[#allocation5 + $0x498] sm:$0xff]
        %v460 = vld [vmem:[#allocation5 + $0x4a0] sm:$0xff]
        %v461 = vld [vmem:[#allocation5 + $0x4a8] sm:$0xff]
        %v462 = vld [vmem:[#allocation5 + $0x4b0] sm:$0xff]
        %v463 = vld [vmem:[#allocation5 + $0x4b8] sm:$0xff]
        %v464 = vld [vmem:[#allocation5 + $0x4c0] sm:$0xff]
        %v465 = vld [vmem:[#allocation5 + $0x4c8] sm:$0xff]
        %v466 = vld [vmem:[#allocation5 + $0x4d0] sm:$0xff]
        %v467 = vld [vmem:[#allocation5 + $0x4d8] sm:$0xff]
        %v468 = vld [vmem:[#allocation5 + $0x4e0] sm:$0xff]
        %v469 = vld [vmem:[#allocation5 + $0x4e8] sm:$0xff]
        %v470 = vld [vmem:[#allocation5 + $0x4f0] sm:$0xff]
        %v471 = vld [vmem:[#allocation5 + $0x4f8] sm:$0xff]
        %v472 = vld [vmem:[#allocation5 + $0x500] sm:$0xff]
        %v473 = vld [vmem:[#allocation5 + $0x508] sm:$0xff]
        %v474 = vld [vmem:[#allocation5 + $0x510] sm:$0xff]
        %v475 = vld [vmem:[#allocation5 + $0x518] sm:$0xff]
        %v476 = vld [vmem:[#allocation5 + $0x520] sm:$0xff]
        %v477 = vld [vmem:[#allocation5 + $0x528] sm:$0xff]
        %v478 = vld [vmem:[#allocation5 + $0x530] sm:$0xff]
        %v479 = vld [vmem:[#allocation5 + $0x538] sm:$0xff]
        %v480 = vld [vmem:[#allocation5 + $0x540] sm:$0xff]
        %v481 = vld [vmem:[#allocation5 + $0x548] sm:$0xff]
        %v482 = vld [vmem:[#allocation5 + $0x550] sm:$0xff]
        %v483 = vld [vmem:[#allocation5 + $0x558] sm:$0xff]
        %v484 = vld [vmem:[#allocation5 + $0x560] sm:$0xff]
        %v485 = vld [vmem:[#allocation5 + $0x568] sm:$0xff]
        %v486 = vld [vmem:[#allocation5 + $0x570] sm:$0xff]
        %v487 = vld [vmem:[#allocation5 + $0x578] sm:$0xff]
        %v488 = vld [vmem:[#allocation5 + $0x580] sm:$0xff]
        %v489 = vld [vmem:[#allocation5 + $0x588] sm:$0xff]
        %v490 = vld [vmem:[#allocation5 + $0x590] sm:$0xff]
        %v491 = vld [vmem:[#allocation5 + $0x598] sm:$0xff]
        %v492 = vld [vmem:[#allocation5 + $0x5a0] sm:$0xff]
        %v493 = vld [vmem:[#allocation5 + $0x5a8] sm:$0xff]
        %v494 = vld [vmem:[#allocation5 + $0x5b0] sm:$0xff]
        %v495 = vld [vmem:[#allocation5 + $0x5b8] sm:$0xff]
        %v496 = vld [vmem:[#allocation5 + $0x5c0] sm:$0xff]
        %v497 = vld [vmem:[#allocation5 + $0x5c8] sm:$0xff]
        %v498 = vld [vmem:[#allocation5 + $0x5d0] sm:$0xff]
        %v499 = vld [vmem:[#allocation5 + $0x5d8] sm:$0xff]
        %v500 = vld [vmem:[#allocation5 + $0x5e0] sm:$0xff]
        %v501 = vld [vmem:[#allocation5 + $0x5e8] sm:$0xff]
        %v502 = vld [vmem:[#allocation5 + $0x5f0] sm:$0xff]
        %v503 = vld [vmem:[#allocation5 + $0x5f8] sm:$0xff]
        %v504 = vld [vmem:[#allocation7] sm:$0xff]
        %v505 = vld [vmem:[#allocation7 + $0x8] sm:$0xf]
        %v508 = vlaneseq
        %v509 = vshrl.u32 %v508, 7
        %v510 = vsub.s32 0, %v509
        %v511 = vrot.slane %v504, %v510
        %v512 = vlaneseq
        %v513 = vshrl.u32 %v512, 7
        %v514 = vsub.s32 1, %v513
        %v515 = vrot.slane %v504, %v514
        %v516 = vlaneseq
        %v517 = vshrl.u32 %v516, 7
        %v518 = vsub.s32 2, %v517
        %v519 = vrot.slane %v504, %v518
        %v520 = vlaneseq
        %v521 = vshrl.u32 %v520, 7
        %v522 = vsub.s32 3, %v521
        %v523 = vrot.slane %v504, %v522
        %v524 = vlaneseq
        %v525 = vshrl.u32 %v524, 7
        %v526 = vsub.s32 4, %v525
        %v527 = vrot.slane %v504, %v526
        %v528 = vlaneseq
        %v529 = vshrl.u32 %v528, 7
        %v530 = vsub.s32 5, %v529
        %v531 = vrot.slane %v504, %v530
        %v532 = vlaneseq
        %v533 = vshrl.u32 %v532, 7
        %v534 = vsub.s32 6, %v533
        %v535 = vrot.slane %v504, %v534
        %v536 = vlaneseq
        %v537 = vshrl.u32 %v536, 7
        %v538 = vsub.s32 7, %v537
        %v539 = vrot.slane %v504, %v538
        %v540 = vlaneseq
        %v541 = vshrl.u32 %v540, 7
        %v542 = vsub.s32 0, %v541
        %v543 = vrot.slane %v505, %v542
        %v544 = vlaneseq
        %v545 = vshrl.u32 %v544, 7
        %v546 = vsub.s32 1, %v545
        %v547 = vrot.slane %v505, %v546
        %v548 = vlaneseq
        %v549 = vshrl.u32 %v548, 7
        %v550 = vsub.s32 2, %v549
        %v551 = vrot.slane %v505, %v550
        %v552 = vlaneseq
        %v553 = vshrl.u32 %v552, 7
        %v554 = vsub.s32 3, %v553
        %v555 = vrot.slane %v505, %v554
        %568 = vmatprep.subr.mxu0 %v313
        %569 = vmatpush1.msra.mxu0 %v312
        %570 = vmatprep.subr.mxu0 %v325
        %571 = vmatpush1.msra.mxu0 %v324
        %572 = vmatprep.subr.mxu0 %v337
        %573 = vmatpush1.msra.mxu0 %v336
        %574 = vmatprep.subr.mxu0 %v349
        %575 = vmatpush1.msra.mxu0 %v348
        %576 = vmatprep.subr.mxu0 %v361
        %577 = vmatpush1.msra.mxu0 %v360
        %578 = vmatprep.subr.mxu0 %v373
        %579 = vmatpush1.msra.mxu0 %v372
        %580 = vmatprep.subr.mxu0 %v385
        %581 = vmatpush1.msra.mxu0 %v384
        %582 = vmatprep.subr.mxu0 %v397
        %583 = vmatpush1.msra.mxu0 %v396
        %584 = vmatprep.subr.mxu0 %v409
        %585 = vmatpush1.msra.mxu0 %v408
        %586 = vmatprep.subr.mxu0 %v421
        %587 = vmatpush1.msra.mxu0 %v420
        %588 = vmatprep.subr.mxu0 %v433
        %589 = vmatpush1.msra.mxu0 %v432
        %590 = vmatprep.subr.mxu0 %v445
        %591 = vmatpush1.msra.mxu0 %v444
        %592 = vmatprep.subr.mxu0 %v457
        %593 = vmatpush1.msra.mxu0 %v456
        %594 = vmatprep.subr.mxu0 %v469
        %595 = vmatpush1.msra.mxu0 %v468
        %596 = vmatprep.subr.mxu0 %v481
        %597 = vmatpush1.msra.mxu0 %v480
        %598 = vmatprep.subr.mxu0 %v493
        %599 = vmatpush1.msra.mxu0 %v492
        %600 = vmatprep.subr.mxu0 0.0
        %601 = vmatpush1.msra.mxu0 0.0
        %602 = vmatprep.subr.mxu0 0.0
        %603 = vmatpush1.msra.mxu0 0.0
        %604 = vmatprep.subr.mxu0 0.0
        %605 = vmatpush1.msra.mxu0 0.0
        %606 = vmatprep.subr.mxu0 0.0
        %607 = vmatpush1.msra.mxu0 0.0
        %608 = vmatprep.subr.mxu0 0.0
        %609 = vmatpush1.msra.mxu0 0.0
        %610 = vmatprep.subr.mxu0 0.0
        %611 = vmatpush1.msra.mxu0 0.0
        %612 = vmatprep.subr.mxu0 0.0
        %613 = vmatpush1.msra.mxu0 0.0
        %614 = vmatprep.subr.mxu0 0.0
        %615 = vmatpush1.msra.mxu0 0.0
        %616 = vmatprep.subr.mxu0 0.0
        %617 = vmatpush1.msra.mxu0 0.0
        %618 = vmatprep.subr.mxu0 0.0
        %619 = vmatpush1.msra.mxu0 0.0
        %620 = vmatprep.subr.mxu0 0.0
        %621 = vmatpush1.msra.mxu0 0.0
        %622 = vmatprep.subr.mxu0 0.0
        %623 = vmatpush1.msra.mxu0 0.0
        %624 = vmatprep.subr.mxu0 0.0
        %625 = vmatpush1.msra.mxu0 0.0
        %626 = vmatprep.subr.mxu0 0.0
        %627 = vmatpush1.msra.mxu0 0.0
        %628 = vmatprep.subr.mxu0 0.0
        %629 = vmatpush1.msra.mxu0 0.0
        %630 = vmatprep.subr.mxu0 0.0
        %631 = vmatpush1.msra.mxu0 0.0
        %632 = vmatprep.mubr.f32.mxu0 0.0
        %633 = vmatmul.mubr.f32.gmra.mrb[0].mxu0 %v310
        %v634 = vpop.f32.mrb[0].mxu0
        %v635 = vadd.f32 %v511, %v634
        %v636 = vpop.f32.mrb[0].mxu0
        %v637 = vadd.f32 %v515, %v636
        %638 = vmatprep.mubr.f32.mxu0 0.0
        %639 = vmatmul.mubr.f32.gmra.mrb[0].mxu0 %v311
        %v640 = vpop.f32.mrb[0].mxu0
        %v641 = vadd.f32 %v511, %v640
        %v642 = vpop.f32.mrb[0].mxu0
        %v643 = vadd.f32 %v515, %v642
        %644 = vdwg.mxu0
        %645 = vmatprep.subr.mxu0 %v315
        %646 = vmatpush1.msra.mxu0 %v314
        %647 = vmatprep.subr.mxu0 %v327
        %648 = vmatpush1.msra.mxu0 %v326
        %649 = vmatprep.subr.mxu0 %v339
        %650 = vmatpush1.msra.mxu0 %v338
        %651 = vmatprep.subr.mxu0 %v351
        %652 = vmatpush1.msra.mxu0 %v350
        %653 = vmatprep.subr.mxu0 %v363
        %654 = vmatpush1.msra.mxu0 %v362
        %655 = vmatprep.subr.mxu0 %v375
        %656 = vmatpush1.msra.mxu0 %v374
        %657 = vmatprep.subr.mxu0 %v387
        %658 = vmatpush1.msra.mxu0 %v386
        %659 = vmatprep.subr.mxu0 %v399
        %660 = vmatpush1.msra.mxu0 %v398
        %661 = vmatprep.subr.mxu0 %v411
        %662 = vmatpush1.msra.mxu0 %v410
        %663 = vmatprep.subr.mxu0 %v423
        %664 = vmatpush1.msra.mxu0 %v422
        %665 = vmatprep.subr.mxu0 %v435
        %666 = vmatpush1.msra.mxu0 %v434
        %667 = vmatprep.subr.mxu0 %v447
        %668 = vmatpush1.msra.mxu0 %v446
        %669 = vmatprep.subr.mxu0 %v459
        %670 = vmatpush1.msra.mxu0 %v458
        %671 = vmatprep.subr.mxu0 %v471
        %672 = vmatpush1.msra.mxu0 %v470
        %673 = vmatprep.subr.mxu0 %v483
        %674 = vmatpush1.msra.mxu0 %v482
        %675 = vmatprep.subr.mxu0 %v495
        %676 = vmatpush1.msra.mxu0 %v494
        %677 = vmatprep.subr.mxu0 0.0
        %678 = vmatpush1.msra.mxu0 0.0
        %679 = vmatprep.subr.mxu0 0.0
        %680 = vmatpush1.msra.mxu0 0.0
        %681 = vmatprep.subr.mxu0 0.0
        %682 = vmatpush1.msra.mxu0 0.0
        %683 = vmatprep.subr.mxu0 0.0
        %684 = vmatpush1.msra.mxu0 0.0
        %685 = vmatprep.subr.mxu0 0.0
        %686 = vmatpush1.msra.mxu0 0.0
        %687 = vmatprep.subr.mxu0 0.0
        %688 = vmatpush1.msra.mxu0 0.0
        %689 = vmatprep.subr.mxu0 0.0
        %690 = vmatpush1.msra.mxu0 0.0
        %691 = vmatprep.subr.mxu0 0.0
        %692 = vmatpush1.msra.mxu0 0.0
        %693 = vmatprep.subr.mxu0 0.0
        %694 = vmatpush1.msra.mxu0 0.0
        %695 = vmatprep.subr.mxu0 0.0
        %696 = vmatpush1.msra.mxu0 0.0
        %697 = vmatprep.subr.mxu0 0.0
        %698 = vmatpush1.msra.mxu0 0.0
        %699 = vmatprep.subr.mxu0 0.0
        %700 = vmatpush1.msra.mxu0 0.0
        %701 = vmatprep.subr.mxu0 0.0
        %702 = vmatpush1.msra.mxu0 0.0
        %703 = vmatprep.subr.mxu0 0.0
        %704 = vmatpush1.msra.mxu0 0.0
        %705 = vmatprep.subr.mxu0 0.0
        %706 = vmatpush1.msra.mxu0 0.0
        %707 = vmatprep.subr.mxu0 0.0
        %708 = vmatpush1.msra.mxu0 0.0
        %709 = vmatprep.mubr.f32.mxu0 0.0
        %710 = vmatmul.mubr.f32.gmra.mrb[0].mxu0 %v310
        %v711 = vpop.f32.mrb[0].mxu0
        %v712 = vadd.f32 %v519, %v711
        %v713 = vpop.f32.mrb[0].mxu0
        %v714 = vadd.f32 %v523, %v713
        %715 = vmatprep.mubr.f32.mxu0 0.0
        %716 = vmatmul.mubr.f32.gmra.mrb[0].mxu0 %v311
        %v717 = vpop.f32.mrb[0].mxu0
        %v718 = vadd.f32 %v519, %v717
        %v719 = vpop.f32.mrb[0].mxu0
        %v720 = vadd.f32 %v523, %v719
        %721 = vdwg.mxu0
        %722 = vmatprep.subr.mxu0 %v317
        %723 = vmatpush1.msra.mxu0 %v316
        %724 = vmatprep.subr.mxu0 %v329
        %725 = vmatpush1.msra.mxu0 %v328
        %726 = vmatprep.subr.mxu0 %v341
        %727 = vmatpush1.msra.mxu0 %v340
        %728 = vmatprep.subr.mxu0 %v353
        %729 = vmatpush1.msra.mxu0 %v352
        %730 = vmatprep.subr.mxu0 %v365
        %731 = vmatpush1.msra.mxu0 %v364
        %732 = vmatprep.subr.mxu0 %v377
        %733 = vmatpush1.msra.mxu0 %v376
        %734 = vmatprep.subr.mxu0 %v389
        %735 = vmatpush1.msra.mxu0 %v388
        %736 = vmatprep.subr.mxu0 %v401
        %737 = vmatpush1.msra.mxu0 %v400
        %738 = vmatprep.subr.mxu0 %v413
        %739 = vmatpush1.msra.mxu0 %v412
        %740 = vmatprep.subr.mxu0 %v425
        %741 = vmatpush1.msra.mxu0 %v424
        %742 = vmatprep.subr.mxu0 %v437
        %743 = vmatpush1.msra.mxu0 %v436
        %744 = vmatprep.subr.mxu0 %v449
        %745 = vmatpush1.msra.mxu0 %v448
        %746 = vmatprep.subr.mxu0 %v461
        %747 = vmatpush1.msra.mxu0 %v460
        %748 = vmatprep.subr.mxu0 %v473
        %749 = vmatpush1.msra.mxu0 %v472
        %750 = vmatprep.subr.mxu0 %v485
        %751 = vmatpush1.msra.mxu0 %v484
        %752 = vmatprep.subr.mxu0 %v497
        %753 = vmatpush1.msra.mxu0 %v496
        %754 = vmatprep.subr.mxu0 0.0
        %755 = vmatpush1.msra.mxu0 0.0
        %756 = vmatprep.subr.mxu0 0.0
        %757 = vmatpush1.msra.mxu0 0.0
        %758 = vmatprep.subr.mxu0 0.0
        %759 = vmatpush1.msra.mxu0 0.0
        %760 = vmatprep.subr.mxu0 0.0
        %761 = vmatpush1.msra.mxu0 0.0
        %762 = vmatprep.subr.mxu0 0.0
        %763 = vmatpush1.msra.mxu0 0.0
        %764 = vmatprep.subr.mxu0 0.0
        %765 = vmatpush1.msra.mxu0 0.0
        %766 = vmatprep.subr.mxu0 0.0
        %767 = vmatpush1.msra.mxu0 0.0
        %768 = vmatprep.subr.mxu0 0.0
        %769 = vmatpush1.msra.mxu0 0.0
        %770 = vmatprep.subr.mxu0 0.0
        %771 = vmatpush1.msra.mxu0 0.0
        %772 = vmatprep.subr.mxu0 0.0
        %773 = vmatpush1.msra.mxu0 0.0
        %774 = vmatprep.subr.mxu0 0.0
        %775 = vmatpush1.msra.mxu0 0.0
        %776 = vmatprep.subr.mxu0 0.0
        %777 = vmatpush1.msra.mxu0 0.0
        %778 = vmatprep.subr.mxu0 0.0
        %779 = vmatpush1.msra.mxu0 0.0
        %780 = vmatprep.subr.mxu0 0.0
        %781 = vmatpush1.msra.mxu0 0.0
        %782 = vmatprep.subr.mxu0 0.0
        %783 = vmatpush1.msra.mxu0 0.0
        %784 = vmatprep.subr.mxu0 0.0
        %785 = vmatpush1.msra.mxu0 0.0
        %786 = vmatprep.mubr.f32.mxu0 0.0
        %787 = vmatmul.mubr.f32.gmra.mrb[0].mxu0 %v310
        %v788 = vpop.f32.mrb[0].mxu0
        %v789 = vadd.f32 %v527, %v788
        %v790 = vpop.f32.mrb[0].mxu0
        %v791 = vadd.f32 %v531, %v790
        %792 = vmatprep.mubr.f32.mxu0 0.0
        %793 = vmatmul.mubr.f32.gmra.mrb[0].mxu0 %v311
        %v794 = vpop.f32.mrb[0].mxu0
        %v795 = vadd.f32 %v527, %v794
        %v796 = vpop.f32.mrb[0].mxu0
        %v797 = vadd.f32 %v531, %v796
        %798 = vdwg.mxu0
        %799 = vmatprep.subr.mxu0 %v319
        %800 = vmatpush1.msra.mxu0 %v318
        %801 = vmatprep.subr.mxu0 %v331
        %802 = vmatpush1.msra.mxu0 %v330
        %803 = vmatprep.subr.mxu0 %v343
        %804 = vmatpush1.msra.mxu0 %v342
        %805 = vmatprep.subr.mxu0 %v355
        %806 = vmatpush1.msra.mxu0 %v354
        %807 = vmatprep.subr.mxu0 %v367
        %808 = vmatpush1.msra.mxu0 %v366
        %809 = vmatprep.subr.mxu0 %v379
        %810 = vmatpush1.msra.mxu0 %v378
        %811 = vmatprep.subr.mxu0 %v391
        %812 = vmatpush1.msra.mxu0 %v390
        %813 = vmatprep.subr.mxu0 %v403
        %814 = vmatpush1.msra.mxu0 %v402
        %815 = vmatprep.subr.mxu0 %v415
        %816 = vmatpush1.msra.mxu0 %v414
        %817 = vmatprep.subr.mxu0 %v427
        %818 = vmatpush1.msra.mxu0 %v426
        %819 = vmatprep.subr.mxu0 %v439
        %820 = vmatpush1.msra.mxu0 %v438
        %821 = vmatprep.subr.mxu0 %v451
        %822 = vmatpush1.msra.mxu0 %v450
        %823 = vmatprep.subr.mxu0 %v463
        %824 = vmatpush1.msra.mxu0 %v462
        %825 = vmatprep.subr.mxu0 %v475
        %826 = vmatpush1.msra.mxu0 %v474
        %827 = vmatprep.subr.mxu0 %v487
        %828 = vmatpush1.msra.mxu0 %v486
        %829 = vmatprep.subr.mxu0 %v499
        %830 = vmatpush1.msra.mxu0 %v498
        %831 = vmatprep.subr.mxu0 0.0
        %832 = vmatpush1.msra.mxu0 0.0
        %833 = vmatprep.subr.mxu0 0.0
        %834 = vmatpush1.msra.mxu0 0.0
        %835 = vmatprep.subr.mxu0 0.0
        %836 = vmatpush1.msra.mxu0 0.0
        %837 = vmatprep.subr.mxu0 0.0
        %838 = vmatpush1.msra.mxu0 0.0
        %839 = vmatprep.subr.mxu0 0.0
        %840 = vmatpush1.msra.mxu0 0.0
        %841 = vmatprep.subr.mxu0 0.0
        %842 = vmatpush1.msra.mxu0 0.0
        %843 = vmatprep.subr.mxu0 0.0
        %844 = vmatpush1.msra.mxu0 0.0
        %845 = vmatprep.subr.mxu0 0.0
        %846 = vmatpush1.msra.mxu0 0.0
        %847 = vmatprep.subr.mxu0 0.0
        %848 = vmatpush1.msra.mxu0 0.0
        %849 = vmatprep.subr.mxu0 0.0
        %850 = vmatpush1.msra.mxu0 0.0
        %851 = vmatprep.subr.mxu0 0.0
        %852 = vmatpush1.msra.mxu0 0.0
        %853 = vmatprep.subr.mxu0 0.0
        %854 = vmatpush1.msra.mxu0 0.0
        %855 = vmatprep.subr.mxu0 0.0
        %856 = vmatpush1.msra.mxu0 0.0
        %857 = vmatprep.subr.mxu0 0.0
        %858 = vmatpush1.msra.mxu0 0.0
        %859 = vmatprep.subr.mxu0 0.0
        %860 = vmatpush1.msra.mxu0 0.0
        %861 = vmatprep.subr.mxu0 0.0
        %862 = vmatpush1.msra.mxu0 0.0
        %863 = vmatprep.mubr.f32.mxu0 0.0
        %864 = vmatmul.mubr.f32.gmra.mrb[0].mxu0 %v310
        %v865 = vpop.f32.mrb[0].mxu0
        %v866 = vadd.f32 %v535, %v865
        %v867 = vpop.f32.mrb[0].mxu0
        %v868 = vadd.f32 %v539, %v867
        %869 = vmatprep.mubr.f32.mxu0 0.0
        %870 = vmatmul.mubr.f32.gmra.mrb[0].mxu0 %v311
        %v871 = vpop.f32.mrb[0].mxu0
        %v872 = vadd.f32 %v535, %v871
        %v873 = vpop.f32.mrb[0].mxu0
        %v874 = vadd.f32 %v539, %v873
        %875 = vdwg.mxu0
        %876 = vmatprep.subr.mxu0 %v321
        %877 = vmatpush1.msra.mxu0 %v320
        %878 = vmatprep.subr.mxu0 %v333
        %879 = vmatpush1.msra.mxu0 %v332
        %880 = vmatprep.subr.mxu0 %v345
        %881 = vmatpush1.msra.mxu0 %v344
        %882 = vmatprep.subr.mxu0 %v357
        %883 = vmatpush1.msra.mxu0 %v356
        %884 = vmatprep.subr.mxu0 %v369
        %885 = vmatpush1.msra.mxu0 %v368
        %886 = vmatprep.subr.mxu0 %v381
        %887 = vmatpush1.msra.mxu0 %v380
        %888 = vmatprep.subr.mxu0 %v393
        %889 = vmatpush1.msra.mxu0 %v392
        %890 = vmatprep.subr.mxu0 %v405
        %891 = vmatpush1.msra.mxu0 %v404
        %892 = vmatprep.subr.mxu0 %v417
        %893 = vmatpush1.msra.mxu0 %v416
        %894 = vmatprep.subr.mxu0 %v429
        %895 = vmatpush1.msra.mxu0 %v428
        %896 = vmatprep.subr.mxu0 %v441
        %897 = vmatpush1.msra.mxu0 %v440
        %898 = vmatprep.subr.mxu0 %v453
        %899 = vmatpush1.msra.mxu0 %v452
        %900 = vmatprep.subr.mxu0 %v465
        %901 = vmatpush1.msra.mxu0 %v464
        %902 = vmatprep.subr.mxu0 %v477
        %903 = vmatpush1.msra.mxu0 %v476
        %904 = vmatprep.subr.mxu0 %v489
        %905 = vmatpush1.msra.mxu0 %v488
        %906 = vmatprep.subr.mxu0 %v501
        %907 = vmatpush1.msra.mxu0 %v500
        %908 = vmatprep.subr.mxu0 0.0
        %909 = vmatpush1.msra.mxu0 0.0
        %910 = vmatprep.subr.mxu0 0.0
        %911 = vmatpush1.msra.mxu0 0.0
        %912 = vmatprep.subr.mxu0 0.0
        %913 = vmatpush1.msra.mxu0 0.0
        %914 = vmatprep.subr.mxu0 0.0
        %915 = vmatpush1.msra.mxu0 0.0
        %916 = vmatprep.subr.mxu0 0.0
        %917 = vmatpush1.msra.mxu0 0.0
        %918 = vmatprep.subr.mxu0 0.0
        %919 = vmatpush1.msra.mxu0 0.0
        %920 = vmatprep.subr.mxu0 0.0
        %921 = vmatpush1.msra.mxu0 0.0
        %922 = vmatprep.subr.mxu0 0.0
        %923 = vmatpush1.msra.mxu0 0.0
        %924 = vmatprep.subr.mxu0 0.0
        %925 = vmatpush1.msra.mxu0 0.0
        %926 = vmatprep.subr.mxu0 0.0
        %927 = vmatpush1.msra.mxu0 0.0
        %928 = vmatprep.subr.mxu0 0.0
        %929 = vmatpush1.msra.mxu0 0.0
        %930 = vmatprep.subr.mxu0 0.0
        %931 = vmatpush1.msra.mxu0 0.0
        %932 = vmatprep.subr.mxu0 0.0
        %933 = vmatpush1.msra.mxu0 0.0
        %934 = vmatprep.subr.mxu0 0.0
        %935 = vmatpush1.msra.mxu0 0.0
        %936 = vmatprep.subr.mxu0 0.0
        %937 = vmatpush1.msra.mxu0 0.0
        %938 = vmatprep.subr.mxu0 0.0
        %939 = vmatpush1.msra.mxu0 0.0
        %940 = vmatprep.mubr.f32.mxu0 0.0
        %941 = vmatmul.mubr.f32.gmra.mrb[0].mxu0 %v310
        %v942 = vpop.f32.mrb[0].mxu0
        %v943 = vadd.f32 %v543, %v942
        %v944 = vpop.f32.mrb[0].mxu0
        %v945 = vadd.f32 %v547, %v944
        %946 = vmatprep.mubr.f32.mxu0 0.0
        %947 = vmatmul.mubr.f32.gmra.mrb[0].mxu0 %v311
        %v948 = vpop.f32.mrb[0].mxu0
        %v949 = vadd.f32 %v543, %v948
        %v950 = vpop.f32.mrb[0].mxu0
        %v951 = vadd.f32 %v547, %v950
        %952 = vdwg.mxu0
        %953 = vmatprep.subr.mxu0 %v323
        %954 = vmatpush1.msra.mxu0 %v322
        %955 = vmatprep.subr.mxu0 %v335
        %956 = vmatpush1.msra.mxu0 %v334
        %957 = vmatprep.subr.mxu0 %v347
        %958 = vmatpush1.msra.mxu0 %v346
        %959 = vmatprep.subr.mxu0 %v359
        %960 = vmatpush1.msra.mxu0 %v358
        %961 = vmatprep.subr.mxu0 %v371
        %962 = vmatpush1.msra.mxu0 %v370
        %963 = vmatprep.subr.mxu0 %v383
        %964 = vmatpush1.msra.mxu0 %v382
        %965 = vmatprep.subr.mxu0 %v395
        %966 = vmatpush1.msra.mxu0 %v394
        %967 = vmatprep.subr.mxu0 %v407
        %968 = vmatpush1.msra.mxu0 %v406
        %969 = vmatprep.subr.mxu0 %v419
        %970 = vmatpush1.msra.mxu0 %v418
        %971 = vmatprep.subr.mxu0 %v431
        %972 = vmatpush1.msra.mxu0 %v430
        %973 = vmatprep.subr.mxu0 %v443
        %974 = vmatpush1.msra.mxu0 %v442
        %975 = vmatprep.subr.mxu0 %v455
        %976 = vmatpush1.msra.mxu0 %v454
        %977 = vmatprep.subr.mxu0 %v467
        %978 = vmatpush1.msra.mxu0 %v466
        %979 = vmatprep.subr.mxu0 %v479
        %980 = vmatpush1.msra.mxu0 %v478
        %981 = vmatprep.subr.mxu0 %v491
        %982 = vmatpush1.msra.mxu0 %v490
        %983 = vmatprep.subr.mxu0 %v503
        %984 = vmatpush1.msra.mxu0 %v502
        %985 = vmatprep.subr.mxu0 0.0
        %986 = vmatpush1.msra.mxu0 0.0
        %987 = vmatprep.subr.mxu0 0.0
        %988 = vmatpush1.msra.mxu0 0.0
        %989 = vmatprep.subr.mxu0 0.0
        %990 = vmatpush1.msra.mxu0 0.0
        %991 = vmatprep.subr.mxu0 0.0
        %992 = vmatpush1.msra.mxu0 0.0
        %993 = vmatprep.subr.mxu0 0.0
        %994 = vmatpush1.msra.mxu0 0.0
        %995 = vmatprep.subr.mxu0 0.0
        %996 = vmatpush1.msra.mxu0 0.0
        %997 = vmatprep.subr.mxu0 0.0
        %998 = vmatpush1.msra.mxu0 0.0
        %999 = vmatprep.subr.mxu0 0.0
        %1000 = vmatpush1.msra.mxu0 0.0
        %1001 = vmatprep.subr.mxu0 0.0
        %1002 = vmatpush1.msra.mxu0 0.0
        %1003 = vmatprep.subr.mxu0 0.0
        %1004 = vmatpush1.msra.mxu0 0.0
        %1005 = vmatprep.subr.mxu0 0.0
        %1006 = vmatpush1.msra.mxu0 0.0
        %1007 = vmatprep.subr.mxu0 0.0
        %1008 = vmatpush1.msra.mxu0 0.0
        %1009 = vmatprep.subr.mxu0 0.0
        %1010 = vmatpush1.msra.mxu0 0.0
        %1011 = vmatprep.subr.mxu0 0.0
        %1012 = vmatpush1.msra.mxu0 0.0
        %1013 = vmatprep.subr.mxu0 0.0
        %1014 = vmatpush1.msra.mxu0 0.0
        %1015 = vmatprep.subr.mxu0 0.0
        %1016 = vmatpush1.msra.mxu0 0.0
        %1017 = vmatprep.mubr.f32.mxu0 0.0
        %1018 = vmatmul.mubr.f32.gmra.mrb[0].mxu0 %v310
        %v1019 = vpop.f32.mrb[0].mxu0
        %v1020 = vadd.f32 %v551, %v1019
        %v1021 = vpop.f32.mrb[0].mxu0
        %v1022 = vadd.f32 %v555, %v1021
        %1023 = vmatprep.mubr.f32.mxu0 0.0
        %1024 = vmatmul.mubr.f32.gmra.mrb[0].mxu0 %v311
        %v1025 = vpop.f32.mrb[0].mxu0
        %v1026 = vadd.f32 %v551, %v1025
        %v1027 = vpop.f32.mrb[0].mxu0
        %v1028 = vadd.f32 %v555, %v1027
        %1029 = vdwg.mxu0
        %1032 = vrot.lane.b32.xlu0 %v635, 64
        %v1033 = vpop.permute.xlu0 %1032
        %1034 = vrot.lane.b32.xlu0 %v641, 64
        %v1035 = vpop.permute.xlu0 %1034
        %1038 = vrot.lane.b32.xlu0 %v637, 64
        %v1039 = vpop.permute.xlu0 %1038
        %1040 = vrot.lane.b32.xlu0 %v643, 64
        %v1041 = vpop.permute.xlu0 %1040
        %1044 = vrot.lane.b32.xlu0 %v712, 64
        %v1045 = vpop.permute.xlu0 %1044
        %1046 = vrot.lane.b32.xlu0 %v718, 64
        %v1047 = vpop.permute.xlu0 %1046
        %1050 = vrot.lane.b32.xlu0 %v714, 64
        %v1051 = vpop.permute.xlu0 %1050
        %1052 = vrot.lane.b32.xlu0 %v720, 64
        %v1053 = vpop.permute.xlu0 %1052
        %1056 = vrot.lane.b32.xlu0 %v789, 64
        %v1057 = vpop.permute.xlu0 %1056
        %1058 = vrot.lane.b32.xlu0 %v795, 64
        %v1059 = vpop.permute.xlu0 %1058
        %1062 = vrot.lane.b32.xlu0 %v791, 64
        %v1063 = vpop.permute.xlu0 %1062
        %1064 = vrot.lane.b32.xlu0 %v797, 64
        %v1065 = vpop.permute.xlu0 %1064
        %1068 = vrot.lane.b32.xlu0 %v866, 64
        %v1069 = vpop.permute.xlu0 %1068
        %1070 = vrot.lane.b32.xlu0 %v872, 64
        %v1071 = vpop.permute.xlu0 %1070
        %1074 = vrot.lane.b32.xlu0 %v868, 64
        %v1075 = vpop.permute.xlu0 %1074
        %1076 = vrot.lane.b32.xlu0 %v874, 64
        %v1077 = vpop.permute.xlu0 %1076
        %1080 = vrot.lane.b32.xlu0 %v943, 64
        %v1081 = vpop.permute.xlu0 %1080
        %1082 = vrot.lane.b32.xlu0 %v949, 64
        %v1083 = vpop.permute.xlu0 %1082
        %1088 = vrot.lane.b32.xlu0 %v945, 64
        %v1089 = vpop.permute.xlu0 %1088
        %1090 = vrot.lane.b32.xlu0 %v951, 64
        %v1091 = vpop.permute.xlu0 %1090
        %1096 = vrot.lane.b32.xlu0 %v1020, 64
        %v1097 = vpop.permute.xlu0 %1096
        %1098 = vrot.lane.b32.xlu0 %v1026, 64
        %v1099 = vpop.permute.xlu0 %1098
        %1104 = vrot.lane.b32.xlu0 %v1022, 64
        %v1105 = vpop.permute.xlu0 %1104
        %1106 = vrot.lane.b32.xlu0 %v1028, 64
        %v1107 = vpop.permute.xlu0 %1106
        %vm1110 = vcmask 523264
        %v1111 = vsel %vm1110, %v635, 0
        %v1113 = vsel %vm1110, %v641, 0
        %v1115 = vsel %vm1110, %v789, 0
        %v1117 = vsel %vm1110, %v795, 0
        %1119 = vmatprep.subr.mxu0 0.0
        %1120 = vmatpush1.xpose.msra.mxu0 %v1115
        %1121 = vmatprep.subr.mxu0 0.0
        %1122 = vmatpush1.xpose.msra.mxu0 %v1117
        %1123 = vmatprep.subr.mxu0 0.0
        %1124 = vmatpush1.xpose.msra.mxu0 0.0
        %1125 = vmatprep.subr.mxu0 0.0
        %1126 = vmatpush1.xpose.msra.mxu0 0.0
        %1127 = vmatprep.subr.mxu0 0.0
        %1128 = vmatpush1.xpose.msra.mxu0 0.0
        %1129 = vmatprep.subr.mxu0 0.0
        %1130 = vmatpush1.xpose.msra.mxu0 0.0
        %1131 = vmatprep.subr.mxu0 0.0
        %1132 = vmatpush1.xpose.msra.mxu0 0.0
        %1133 = vmatprep.subr.mxu0 0.0
        %1134 = vmatpush1.xpose.msra.mxu0 0.0
        %1135 = vmatprep.subr.mxu0 0.0
        %1136 = vmatpush1.xpose.msra.mxu0 0.0
        %1137 = vmatprep.subr.mxu0 0.0
        %1138 = vmatpush1.xpose.msra.mxu0 0.0
        %1139 = vmatprep.subr.mxu0 0.0
        %1140 = vmatpush1.xpose.msra.mxu0 0.0
        %1141 = vmatprep.subr.mxu0 0.0
        %1142 = vmatpush1.xpose.msra.mxu0 0.0
        %1143 = vmatprep.subr.mxu0 0.0
        %1144 = vmatpush1.xpose.msra.mxu0 0.0
        %1145 = vmatprep.subr.mxu0 0.0
        %1146 = vmatpush1.xpose.msra.mxu0 0.0
        %1147 = vmatprep.subr.mxu0 0.0
        %1148 = vmatpush1.xpose.msra.mxu0 0.0
        %1149 = vmatprep.subr.mxu0 0.0
        %1150 = vmatpush1.xpose.msra.mxu0 0.0
        %1151 = vmatprep.subr.mxu0 0.0
        %1152 = vmatpush1.xpose.msra.mxu0 0.0
        %1153 = vmatprep.subr.mxu0 0.0
        %1154 = vmatpush1.xpose.msra.mxu0 0.0
        %1155 = vmatprep.subr.mxu0 0.0
        %1156 = vmatpush1.xpose.msra.mxu0 0.0
        %1157 = vmatprep.subr.mxu0 0.0
        %1158 = vmatpush1.xpose.msra.mxu0 0.0
        %1159 = vmatprep.subr.mxu0 0.0
        %1160 = vmatpush1.xpose.msra.mxu0 0.0
        %1161 = vmatprep.subr.mxu0 0.0
        %1162 = vmatpush1.xpose.msra.mxu0 0.0
        %1163 = vmatprep.subr.mxu0 0.0
        %1164 = vmatpush1.xpose.msra.mxu0 0.0
        %1165 = vmatprep.subr.mxu0 0.0
        %1166 = vmatpush1.xpose.msra.mxu0 0.0
        %1167 = vmatprep.subr.mxu0 0.0
        %1168 = vmatpush1.xpose.msra.mxu0 0.0
        %1169 = vmatprep.subr.mxu0 0.0
        %1170 = vmatpush1.xpose.msra.mxu0 0.0
        %1171 = vmatprep.subr.mxu0 0.0
        %1172 = vmatpush1.xpose.msra.mxu0 0.0
        %1173 = vmatprep.subr.mxu0 0.0
        %1174 = vmatpush1.xpose.msra.mxu0 0.0
        %1175 = vmatprep.subr.mxu0 0.0
        %1176 = vmatpush1.xpose.msra.mxu0 0.0
        %1177 = vmatprep.subr.mxu0 0.0
        %1178 = vmatpush1.xpose.msra.mxu0 0.0
        %1179 = vmatprep.subr.mxu0 0.0
        %1180 = vmatpush1.xpose.msra.mxu0 0.0
        %1181 = vmatprep.subr.mxu0 0.0
        %1182 = vmatpush1.xpose.msra.mxu0 0.0
        %1183 = vmatprep.mubr.f32.mxu0 0.0
        %1184 = vmatmul.mubr.f32.gmra.mrb[0].mxu0 %v1111
        %v1185 = vpop.f32.mrb[0].mxu0
        %v1186 = vadd.f32 0.0, %v1185
        %v1187 = vpop.f32.mrb[0].mxu0
        %1188 = vmatprep.mubr.f32.mxu0 0.0
        %1189 = vmatmul.mubr.f32.gmra.mrb[0].mxu0 %v1113
        %v1190 = vpop.f32.mrb[0].mxu0
        %v1191 = vadd.f32 0.0, %v1190
        %v1192 = vpop.f32.mrb[0].mxu0
        %1193 = vdwg.mxu0
        %v1194 = vsel %vm1110, %v1033, 0
        %v1196 = vsel %vm1110, %v1035, 0
        %v1198 = vsel %vm1110, %v1057, 0
        %v1200 = vsel %vm1110, %v1059, 0
        %1202 = vmatprep.subr.mxu0 0.0
        %1203 = vmatpush1.xpose.msra.mxu0 %v1198
        %1204 = vmatprep.subr.mxu0 0.0
        %1205 = vmatpush1.xpose.msra.mxu0 %v1200
        %1206 = vmatprep.subr.mxu0 0.0
        %1207 = vmatpush1.xpose.msra.mxu0 0.0
        %1208 = vmatprep.subr.mxu0 0.0
        %1209 = vmatpush1.xpose.msra.mxu0 0.0
        %1210 = vmatprep.subr.mxu0 0.0
        %1211 = vmatpush1.xpose.msra.mxu0 0.0
        %1212 = vmatprep.subr.mxu0 0.0
        %1213 = vmatpush1.xpose.msra.mxu0 0.0
        %1214 = vmatprep.subr.mxu0 0.0
        %1215 = vmatpush1.xpose.msra.mxu0 0.0
        %1216 = vmatprep.subr.mxu0 0.0
        %1217 = vmatpush1.xpose.msra.mxu0 0.0
        %1218 = vmatprep.subr.mxu0 0.0
        %1219 = vmatpush1.xpose.msra.mxu0 0.0
        %1220 = vmatprep.subr.mxu0 0.0
        %1221 = vmatpush1.xpose.msra.mxu0 0.0
        %1222 = vmatprep.subr.mxu0 0.0
        %1223 = vmatpush1.xpose.msra.mxu0 0.0
        %1224 = vmatprep.subr.mxu0 0.0
        %1225 = vmatpush1.xpose.msra.mxu0 0.0
        %1226 = vmatprep.subr.mxu0 0.0
        %1227 = vmatpush1.xpose.msra.mxu0 0.0
        %1228 = vmatprep.subr.mxu0 0.0
        %1229 = vmatpush1.xpose.msra.mxu0 0.0
        %1230 = vmatprep.subr.mxu0 0.0
        %1231 = vmatpush1.xpose.msra.mxu0 0.0
        %1232 = vmatprep.subr.mxu0 0.0
        %1233 = vmatpush1.xpose.msra.mxu0 0.0
        %1234 = vmatprep.subr.mxu0 0.0
        %1235 = vmatpush1.xpose.msra.mxu0 0.0
        %1236 = vmatprep.subr.mxu0 0.0
        %1237 = vmatpush1.xpose.msra.mxu0 0.0
        %1238 = vmatprep.subr.mxu0 0.0
        %1239 = vmatpush1.xpose.msra.mxu0 0.0
        %1240 = vmatprep.subr.mxu0 0.0
        %1241 = vmatpush1.xpose.msra.mxu0 0.0
        %1242 = vmatprep.subr.mxu0 0.0
        %1243 = vmatpush1.xpose.msra.mxu0 0.0
        %1244 = vmatprep.subr.mxu0 0.0
        %1245 = vmatpush1.xpose.msra.mxu0 0.0
        %1246 = vmatprep.subr.mxu0 0.0
        %1247 = vmatpush1.xpose.msra.mxu0 0.0
        %1248 = vmatprep.subr.mxu0 0.0
        %1249 = vmatpush1.xpose.msra.mxu0 0.0
        %1250 = vmatprep.subr.mxu0 0.0
        %1251 = vmatpush1.xpose.msra.mxu0 0.0
        %1252 = vmatprep.subr.mxu0 0.0
        %1253 = vmatpush1.xpose.msra.mxu0 0.0
        %1254 = vmatprep.subr.mxu0 0.0
        %1255 = vmatpush1.xpose.msra.mxu0 0.0
        %1256 = vmatprep.subr.mxu0 0.0
        %1257 = vmatpush1.xpose.msra.mxu0 0.0
        %1258 = vmatprep.subr.mxu0 0.0
        %1259 = vmatpush1.xpose.msra.mxu0 0.0
        %1260 = vmatprep.subr.mxu0 0.0
        %1261 = vmatpush1.xpose.msra.mxu0 0.0
        %1262 = vmatprep.subr.mxu0 0.0
        %1263 = vmatpush1.xpose.msra.mxu0 0.0
        %1264 = vmatprep.subr.mxu0 0.0
        %1265 = vmatpush1.xpose.msra.mxu0 0.0
        %1266 = vmatprep.mubr.f32.mxu0 0.0
        %1267 = vmatmul.mubr.f32.gmra.mrb[0].mxu0 %v1194
        %v1268 = vpop.f32.mrb[0].mxu0
        %v1269 = vadd.f32 0.0, %v1268
        %v1270 = vpop.f32.mrb[0].mxu0
        %1271 = vmatprep.mubr.f32.mxu0 0.0
        %1272 = vmatmul.mubr.f32.gmra.mrb[0].mxu0 %v1196
        %v1273 = vpop.f32.mrb[0].mxu0
        %v1274 = vadd.f32 0.0, %v1273
        %v1275 = vpop.f32.mrb[0].mxu0
        %1276 = vdwg.mxu0
        %v1277 = vsel %vm1110, %v637, 0
        %v1279 = vsel %vm1110, %v643, 0
        %v1281 = vsel %vm1110, %v791, 0
        %v1283 = vsel %vm1110, %v797, 0
        %1285 = vmatprep.subr.mxu0 0.0
        %1286 = vmatpush1.xpose.msra.mxu0 %v1281
        %1287 = vmatprep.subr.mxu0 0.0
        %1288 = vmatpush1.xpose.msra.mxu0 %v1283
        %1289 = vmatprep.subr.mxu0 0.0
        %1290 = vmatpush1.xpose.msra.mxu0 0.0
        %1291 = vmatprep.subr.mxu0 0.0
        %1292 = vmatpush1.xpose.msra.mxu0 0.0
        %1293 = vmatprep.subr.mxu0 0.0
        %1294 = vmatpush1.xpose.msra.mxu0 0.0
        %1295 = vmatprep.subr.mxu0 0.0
        %1296 = vmatpush1.xpose.msra.mxu0 0.0
        %1297 = vmatprep.subr.mxu0 0.0
        %1298 = vmatpush1.xpose.msra.mxu0 0.0
        %1299 = vmatprep.subr.mxu0 0.0
        %1300 = vmatpush1.xpose.msra.mxu0 0.0
        %1301 = vmatprep.subr.mxu0 0.0
        %1302 = vmatpush1.xpose.msra.mxu0 0.0
        %1303 = vmatprep.subr.mxu0 0.0
        %1304 = vmatpush1.xpose.msra.mxu0 0.0
        %1305 = vmatprep.subr.mxu0 0.0
        %1306 = vmatpush1.xpose.msra.mxu0 0.0
        %1307 = vmatprep.subr.mxu0 0.0
        %1308 = vmatpush1.xpose.msra.mxu0 0.0
        %1309 = vmatprep.subr.mxu0 0.0
        %1310 = vmatpush1.xpose.msra.mxu0 0.0
        %1311 = vmatprep.subr.mxu0 0.0
        %1312 = vmatpush1.xpose.msra.mxu0 0.0
        %1313 = vmatprep.subr.mxu0 0.0
        %1314 = vmatpush1.xpose.msra.mxu0 0.0
        %1315 = vmatprep.subr.mxu0 0.0
        %1316 = vmatpush1.xpose.msra.mxu0 0.0
        %1317 = vmatprep.subr.mxu0 0.0
        %1318 = vmatpush1.xpose.msra.mxu0 0.0
        %1319 = vmatprep.subr.mxu0 0.0
        %1320 = vmatpush1.xpose.msra.mxu0 0.0
        %1321 = vmatprep.subr.mxu0 0.0
        %1322 = vmatpush1.xpose.msra.mxu0 0.0
        %1323 = vmatprep.subr.mxu0 0.0
        %1324 = vmatpush1.xpose.msra.mxu0 0.0
        %1325 = vmatprep.subr.mxu0 0.0
        %1326 = vmatpush1.xpose.msra.mxu0 0.0
        %1327 = vmatprep.subr.mxu0 0.0
        %1328 = vmatpush1.xpose.msra.mxu0 0.0
        %1329 = vmatprep.subr.mxu0 0.0
        %1330 = vmatpush1.xpose.msra.mxu0 0.0
        %1331 = vmatprep.subr.mxu0 0.0
        %1332 = vmatpush1.xpose.msra.mxu0 0.0
        %1333 = vmatprep.subr.mxu0 0.0
        %1334 = vmatpush1.xpose.msra.mxu0 0.0
        %1335 = vmatprep.subr.mxu0 0.0
        %1336 = vmatpush1.xpose.msra.mxu0 0.0
        %1337 = vmatprep.subr.mxu0 0.0
        %1338 = vmatpush1.xpose.msra.mxu0 0.0
        %1339 = vmatprep.subr.mxu0 0.0
        %1340 = vmatpush1.xpose.msra.mxu0 0.0
        %1341 = vmatprep.subr.mxu0 0.0
        %1342 = vmatpush1.xpose.msra.mxu0 0.0
        %1343 = vmatprep.subr.mxu0 0.0
        %1344 = vmatpush1.xpose.msra.mxu0 0.0
        %1345 = vmatprep.subr.mxu0 0.0
        %1346 = vmatpush1.xpose.msra.mxu0 0.0
        %1347 = vmatprep.subr.mxu0 0.0
        %1348 = vmatpush1.xpose.msra.mxu0 0.0
        %1349 = vmatprep.mubr.f32.mxu0 0.0
        %1350 = vmatmul.mubr.f32.gmra.mrb[0].mxu0 %v1277
        %v1351 = vpop.f32.mrb[0].mxu0
        %v1352 = vadd.f32 0.0, %v1351
        %v1353 = vpop.f32.mrb[0].mxu0
        %1354 = vmatprep.mubr.f32.mxu0 0.0
        %1355 = vmatmul.mubr.f32.gmra.mrb[0].mxu0 %v1279
        %v1356 = vpop.f32.mrb[0].mxu0
        %v1357 = vadd.f32 0.0, %v1356
        %v1358 = vpop.f32.mrb[0].mxu0
        %1359 = vdwg.mxu0
        %v1360 = vsel %vm1110, %v1039, 0
        %v1362 = vsel %vm1110, %v1041, 0
        %v1364 = vsel %vm1110, %v1063, 0
        %v1366 = vsel %vm1110, %v1065, 0
        %1368 = vmatprep.subr.mxu0 0.0
        %1369 = vmatpush1.xpose.msra.mxu0 %v1364
        %1370 = vmatprep.subr.mxu0 0.0
        %1371 = vmatpush1.xpose.msra.mxu0 %v1366
        %1372 = vmatprep.subr.mxu0 0.0
        %1373 = vmatpush1.xpose.msra.mxu0 0.0
        %1374 = vmatprep.subr.mxu0 0.0
        %1375 = vmatpush1.xpose.msra.mxu0 0.0
        %1376 = vmatprep.subr.mxu0 0.0
        %1377 = vmatpush1.xpose.msra.mxu0 0.0
        %1378 = vmatprep.subr.mxu0 0.0
        %1379 = vmatpush1.xpose.msra.mxu0 0.0
        %1380 = vmatprep.subr.mxu0 0.0
        %1381 = vmatpush1.xpose.msra.mxu0 0.0
        %1382 = vmatprep.subr.mxu0 0.0
        %1383 = vmatpush1.xpose.msra.mxu0 0.0
        %1384 = vmatprep.subr.mxu0 0.0
        %1385 = vmatpush1.xpose.msra.mxu0 0.0
        %1386 = vmatprep.subr.mxu0 0.0
        %1387 = vmatpush1.xpose.msra.mxu0 0.0
        %1388 = vmatprep.subr.mxu0 0.0
        %1389 = vmatpush1.xpose.msra.mxu0 0.0
        %1390 = vmatprep.subr.mxu0 0.0
        %1391 = vmatpush1.xpose.msra.mxu0 0.0
        %1392 = vmatprep.subr.mxu0 0.0
        %1393 = vmatpush1.xpose.msra.mxu0 0.0
        %1394 = vmatprep.subr.mxu0 0.0
        %1395 = vmatpush1.xpose.msra.mxu0 0.0
        %1396 = vmatprep.subr.mxu0 0.0
        %1397 = vmatpush1.xpose.msra.mxu0 0.0
        %1398 = vmatprep.subr.mxu0 0.0
        %1399 = vmatpush1.xpose.msra.mxu0 0.0
        %1400 = vmatprep.subr.mxu0 0.0
        %1401 = vmatpush1.xpose.msra.mxu0 0.0
        %1402 = vmatprep.subr.mxu0 0.0
        %1403 = vmatpush1.xpose.msra.mxu0 0.0
        %1404 = vmatprep.subr.mxu0 0.0
        %1405 = vmatpush1.xpose.msra.mxu0 0.0
        %1406 = vmatprep.subr.mxu0 0.0
        %1407 = vmatpush1.xpose.msra.mxu0 0.0
        %1408 = vmatprep.subr.mxu0 0.0
        %1409 = vmatpush1.xpose.msra.mxu0 0.0
        %1410 = vmatprep.subr.mxu0 0.0
        %1411 = vmatpush1.xpose.msra.mxu0 0.0
        %1412 = vmatprep.subr.mxu0 0.0
        %1413 = vmatpush1.xpose.msra.mxu0 0.0
        %1414 = vmatprep.subr.mxu0 0.0
        %1415 = vmatpush1.xpose.msra.mxu0 0.0
        %1416 = vmatprep.subr.mxu0 0.0
        %1417 = vmatpush1.xpose.msra.mxu0 0.0
        %1418 = vmatprep.subr.mxu0 0.0
        %1419 = vmatpush1.xpose.msra.mxu0 0.0
        %1420 = vmatprep.subr.mxu0 0.0
        %1421 = vmatpush1.xpose.msra.mxu0 0.0
        %1422 = vmatprep.subr.mxu0 0.0
        %1423 = vmatpush1.xpose.msra.mxu0 0.0
        %1424 = vmatprep.subr.mxu0 0.0
        %1425 = vmatpush1.xpose.msra.mxu0 0.0
        %1426 = vmatprep.subr.mxu0 0.0
        %1427 = vmatpush1.xpose.msra.mxu0 0.0
        %1428 = vmatprep.subr.mxu0 0.0
        %1429 = vmatpush1.xpose.msra.mxu0 0.0
        %1430 = vmatprep.subr.mxu0 0.0
        %1431 = vmatpush1.xpose.msra.mxu0 0.0
        %1432 = vmatprep.mubr.f32.mxu0 0.0
        %1433 = vmatmul.mubr.f32.gmra.mrb[0].mxu0 %v1360
        %v1434 = vpop.f32.mrb[0].mxu0
        %v1435 = vadd.f32 0.0, %v1434
        %v1436 = vpop.f32.mrb[0].mxu0
        %1437 = vmatprep.mubr.f32.mxu0 0.0
        %1438 = vmatmul.mubr.f32.gmra.mrb[0].mxu0 %v1362
        %v1439 = vpop.f32.mrb[0].mxu0
        %v1440 = vadd.f32 0.0, %v1439
        %v1441 = vpop.f32.mrb[0].mxu0
        %1442 = vdwg.mxu0
        %v1443 = vsel %vm1110, %v712, 0
        %v1445 = vsel %vm1110, %v718, 0
        %v1447 = vsel %vm1110, %v866, 0
        %v1449 = vsel %vm1110, %v872, 0
        %1451 = vmatprep.subr.mxu0 0.0
        %1452 = vmatpush1.xpose.msra.mxu0 %v1447
        %1453 = vmatprep.subr.mxu0 0.0
        %1454 = vmatpush1.xpose.msra.mxu0 %v1449
        %1455 = vmatprep.subr.mxu0 0.0
        %1456 = vmatpush1.xpose.msra.mxu0 0.0
        %1457 = vmatprep.subr.mxu0 0.0
        %1458 = vmatpush1.xpose.msra.mxu0 0.0
        %1459 = vmatprep.subr.mxu0 0.0
        %1460 = vmatpush1.xpose.msra.mxu0 0.0
        %1461 = vmatprep.subr.mxu0 0.0
        %1462 = vmatpush1.xpose.msra.mxu0 0.0
        %1463 = vmatprep.subr.mxu0 0.0
        %1464 = vmatpush1.xpose.msra.mxu0 0.0
        %1465 = vmatprep.subr.mxu0 0.0
        %1466 = vmatpush1.xpose.msra.mxu0 0.0
        %1467 = vmatprep.subr.mxu0 0.0
        %1468 = vmatpush1.xpose.msra.mxu0 0.0
        %1469 = vmatprep.subr.mxu0 0.0
        %1470 = vmatpush1.xpose.msra.mxu0 0.0
        %1471 = vmatprep.subr.mxu0 0.0
        %1472 = vmatpush1.xpose.msra.mxu0 0.0
        %1473 = vmatprep.subr.mxu0 0.0
        %1474 = vmatpush1.xpose.msra.mxu0 0.0
        %1475 = vmatprep.subr.mxu0 0.0
        %1476 = vmatpush1.xpose.msra.mxu0 0.0
        %1477 = vmatprep.subr.mxu0 0.0
        %1478 = vmatpush1.xpose.msra.mxu0 0.0
        %1479 = vmatprep.subr.mxu0 0.0
        %1480 = vmatpush1.xpose.msra.mxu0 0.0
        %1481 = vmatprep.subr.mxu0 0.0
        %1482 = vmatpush1.xpose.msra.mxu0 0.0
        %1483 = vmatprep.subr.mxu0 0.0
        %1484 = vmatpush1.xpose.msra.mxu0 0.0
        %1485 = vmatprep.subr.mxu0 0.0
        %1486 = vmatpush1.xpose.msra.mxu0 0.0
        %1487 = vmatprep.subr.mxu0 0.0
        %1488 = vmatpush1.xpose.msra.mxu0 0.0
        %1489 = vmatprep.subr.mxu0 0.0
        %1490 = vmatpush1.xpose.msra.mxu0 0.0
        %1491 = vmatprep.subr.mxu0 0.0
        %1492 = vmatpush1.xpose.msra.mxu0 0.0
        %1493 = vmatprep.subr.mxu0 0.0
        %1494 = vmatpush1.xpose.msra.mxu0 0.0
        %1495 = vmatprep.subr.mxu0 0.0
        %1496 = vmatpush1.xpose.msra.mxu0 0.0
        %1497 = vmatprep.subr.mxu0 0.0
        %1498 = vmatpush1.xpose.msra.mxu0 0.0
        %1499 = vmatprep.subr.mxu0 0.0
        %1500 = vmatpush1.xpose.msra.mxu0 0.0
        %1501 = vmatprep.subr.mxu0 0.0
        %1502 = vmatpush1.xpose.msra.mxu0 0.0
        %1503 = vmatprep.subr.mxu0 0.0
        %1504 = vmatpush1.xpose.msra.mxu0 0.0
        %1505 = vmatprep.subr.mxu0 0.0
        %1506 = vmatpush1.xpose.msra.mxu0 0.0
        %1507 = vmatprep.subr.mxu0 0.0
        %1508 = vmatpush1.xpose.msra.mxu0 0.0
        %1509 = vmatprep.subr.mxu0 0.0
        %1510 = vmatpush1.xpose.msra.mxu0 0.0
        %1511 = vmatprep.subr.mxu0 0.0
        %1512 = vmatpush1.xpose.msra.mxu0 0.0
        %1513 = vmatprep.subr.mxu0 0.0
        %1514 = vmatpush1.xpose.msra.mxu0 0.0
        %1515 = vmatprep.mubr.f32.mxu0 0.0
        %1516 = vmatmul.mubr.f32.gmra.mrb[0].mxu0 %v1443
        %v1517 = vpop.f32.mrb[0].mxu0
        %v1518 = vadd.f32 0.0, %v1517
        %v1519 = vpop.f32.mrb[0].mxu0
        %1520 = vmatprep.mubr.f32.mxu0 0.0
        %1521 = vmatmul.mubr.f32.gmra.mrb[0].mxu0 %v1445
        %v1522 = vpop.f32.mrb[0].mxu0
        %v1523 = vadd.f32 0.0, %v1522
        %v1524 = vpop.f32.mrb[0].mxu0
        %1525 = vdwg.mxu0
        %v1526 = vsel %vm1110, %v1045, 0
        %v1528 = vsel %vm1110, %v1047, 0
        %v1530 = vsel %vm1110, %v1069, 0
        %v1532 = vsel %vm1110, %v1071, 0
        %1534 = vmatprep.subr.mxu0 0.0
        %1535 = vmatpush1.xpose.msra.mxu0 %v1530
        %1536 = vmatprep.subr.mxu0 0.0
        %1537 = vmatpush1.xpose.msra.mxu0 %v1532
        %1538 = vmatprep.subr.mxu0 0.0
        %1539 = vmatpush1.xpose.msra.mxu0 0.0
        %1540 = vmatprep.subr.mxu0 0.0
        %1541 = vmatpush1.xpose.msra.mxu0 0.0
        %1542 = vmatprep.subr.mxu0 0.0
        %1543 = vmatpush1.xpose.msra.mxu0 0.0
        %1544 = vmatprep.subr.mxu0 0.0
        %1545 = vmatpush1.xpose.msra.mxu0 0.0
        %1546 = vmatprep.subr.mxu0 0.0
        %1547 = vmatpush1.xpose.msra.mxu0 0.0
        %1548 = vmatprep.subr.mxu0 0.0
        %1549 = vmatpush1.xpose.msra.mxu0 0.0
        %1550 = vmatprep.subr.mxu0 0.0
        %1551 = vmatpush1.xpose.msra.mxu0 0.0
        %1552 = vmatprep.subr.mxu0 0.0
        %1553 = vmatpush1.xpose.msra.mxu0 0.0
        %1554 = vmatprep.subr.mxu0 0.0
        %1555 = vmatpush1.xpose.msra.mxu0 0.0
        %1556 = vmatprep.subr.mxu0 0.0
        %1557 = vmatpush1.xpose.msra.mxu0 0.0
        %1558 = vmatprep.subr.mxu0 0.0
        %1559 = vmatpush1.xpose.msra.mxu0 0.0
        %1560 = vmatprep.subr.mxu0 0.0
        %1561 = vmatpush1.xpose.msra.mxu0 0.0
        %1562 = vmatprep.subr.mxu0 0.0
        %1563 = vmatpush1.xpose.msra.mxu0 0.0
        %1564 = vmatprep.subr.mxu0 0.0
        %1565 = vmatpush1.xpose.msra.mxu0 0.0
        %1566 = vmatprep.subr.mxu0 0.0
        %1567 = vmatpush1.xpose.msra.mxu0 0.0
        %1568 = vmatprep.subr.mxu0 0.0
        %1569 = vmatpush1.xpose.msra.mxu0 0.0
        %1570 = vmatprep.subr.mxu0 0.0
        %1571 = vmatpush1.xpose.msra.mxu0 0.0
        %1572 = vmatprep.subr.mxu0 0.0
        %1573 = vmatpush1.xpose.msra.mxu0 0.0
        %1574 = vmatprep.subr.mxu0 0.0
        %1575 = vmatpush1.xpose.msra.mxu0 0.0
        %1576 = vmatprep.subr.mxu0 0.0
        %1577 = vmatpush1.xpose.msra.mxu0 0.0
        %1578 = vmatprep.subr.mxu0 0.0
        %1579 = vmatpush1.xpose.msra.mxu0 0.0
        %1580 = vmatprep.subr.mxu0 0.0
        %1581 = vmatpush1.xpose.msra.mxu0 0.0
        %1582 = vmatprep.subr.mxu0 0.0
        %1583 = vmatpush1.xpose.msra.mxu0 0.0
        %1584 = vmatprep.subr.mxu0 0.0
        %1585 = vmatpush1.xpose.msra.mxu0 0.0
        %1586 = vmatprep.subr.mxu0 0.0
        %1587 = vmatpush1.xpose.msra.mxu0 0.0
        %1588 = vmatprep.subr.mxu0 0.0
        %1589 = vmatpush1.xpose.msra.mxu0 0.0
        %1590 = vmatprep.subr.mxu0 0.0
        %1591 = vmatpush1.xpose.msra.mxu0 0.0
        %1592 = vmatprep.subr.mxu0 0.0
        %1593 = vmatpush1.xpose.msra.mxu0 0.0
        %1594 = vmatprep.subr.mxu0 0.0
        %1595 = vmatpush1.xpose.msra.mxu0 0.0
        %1596 = vmatprep.subr.mxu0 0.0
        %1597 = vmatpush1.xpose.msra.mxu0 0.0
        %1598 = vmatprep.mubr.f32.mxu0 0.0
        %1599 = vmatmul.mubr.f32.gmra.mrb[0].mxu0 %v1526
        %v1600 = vpop.f32.mrb[0].mxu0
        %v1601 = vadd.f32 0.0, %v1600
        %v1602 = vpop.f32.mrb[0].mxu0
        %1603 = vmatprep.mubr.f32.mxu0 0.0
        %1604 = vmatmul.mubr.f32.gmra.mrb[0].mxu0 %v1528
        %v1605 = vpop.f32.mrb[0].mxu0
        %v1606 = vadd.f32 0.0, %v1605
        %v1607 = vpop.f32.mrb[0].mxu0
        %1608 = vdwg.mxu0
        %v1609 = vsel %vm1110, %v714, 0
        %v1611 = vsel %vm1110, %v720, 0
        %v1613 = vsel %vm1110, %v868, 0
        %v1615 = vsel %vm1110, %v874, 0
        %1617 = vmatprep.subr.mxu0 0.0
        %1618 = vmatpush1.xpose.msra.mxu0 %v1613
        %1619 = vmatprep.subr.mxu0 0.0
        %1620 = vmatpush1.xpose.msra.mxu0 %v1615
        %1621 = vmatprep.subr.mxu0 0.0
        %1622 = vmatpush1.xpose.msra.mxu0 0.0
        %1623 = vmatprep.subr.mxu0 0.0
        %1624 = vmatpush1.xpose.msra.mxu0 0.0
        %1625 = vmatprep.subr.mxu0 0.0
        %1626 = vmatpush1.xpose.msra.mxu0 0.0
        %1627 = vmatprep.subr.mxu0 0.0
        %1628 = vmatpush1.xpose.msra.mxu0 0.0
        %1629 = vmatprep.subr.mxu0 0.0
        %1630 = vmatpush1.xpose.msra.mxu0 0.0
        %1631 = vmatprep.subr.mxu0 0.0
        %1632 = vmatpush1.xpose.msra.mxu0 0.0
        %1633 = vmatprep.subr.mxu0 0.0
        %1634 = vmatpush1.xpose.msra.mxu0 0.0
        %1635 = vmatprep.subr.mxu0 0.0
        %1636 = vmatpush1.xpose.msra.mxu0 0.0
        %1637 = vmatprep.subr.mxu0 0.0
        %1638 = vmatpush1.xpose.msra.mxu0 0.0
        %1639 = vmatprep.subr.mxu0 0.0
        %1640 = vmatpush1.xpose.msra.mxu0 0.0
        %1641 = vmatprep.subr.mxu0 0.0
        %1642 = vmatpush1.xpose.msra.mxu0 0.0
        %1643 = vmatprep.subr.mxu0 0.0
        %1644 = vmatpush1.xpose.msra.mxu0 0.0
        %1645 = vmatprep.subr.mxu0 0.0
        %1646 = vmatpush1.xpose.msra.mxu0 0.0
        %1647 = vmatprep.subr.mxu0 0.0
        %1648 = vmatpush1.xpose.msra.mxu0 0.0
        %1649 = vmatprep.subr.mxu0 0.0
        %1650 = vmatpush1.xpose.msra.mxu0 0.0
        %1651 = vmatprep.subr.mxu0 0.0
        %1652 = vmatpush1.xpose.msra.mxu0 0.0
        %1653 = vmatprep.subr.mxu0 0.0
        %1654 = vmatpush1.xpose.msra.mxu0 0.0
        %1655 = vmatprep.subr.mxu0 0.0
        %1656 = vmatpush1.xpose.msra.mxu0 0.0
        %1657 = vmatprep.subr.mxu0 0.0
        %1658 = vmatpush1.xpose.msra.mxu0 0.0
        %1659 = vmatprep.subr.mxu0 0.0
        %1660 = vmatpush1.xpose.msra.mxu0 0.0
        %1661 = vmatprep.subr.mxu0 0.0
        %1662 = vmatpush1.xpose.msra.mxu0 0.0
        %1663 = vmatprep.subr.mxu0 0.0
        %1664 = vmatpush1.xpose.msra.mxu0 0.0
        %1665 = vmatprep.subr.mxu0 0.0
        %1666 = vmatpush1.xpose.msra.mxu0 0.0
        %1667 = vmatprep.subr.mxu0 0.0
        %1668 = vmatpush1.xpose.msra.mxu0 0.0
        %1669 = vmatprep.subr.mxu0 0.0
        %1670 = vmatpush1.xpose.msra.mxu0 0.0
        %1671 = vmatprep.subr.mxu0 0.0
        %1672 = vmatpush1.xpose.msra.mxu0 0.0
        %1673 = vmatprep.subr.mxu0 0.0
        %1674 = vmatpush1.xpose.msra.mxu0 0.0
        %1675 = vmatprep.subr.mxu0 0.0
        %1676 = vmatpush1.xpose.msra.mxu0 0.0
        %1677 = vmatprep.subr.mxu0 0.0
        %1678 = vmatpush1.xpose.msra.mxu0 0.0
        %1679 = vmatprep.subr.mxu0 0.0
        %1680 = vmatpush1.xpose.msra.mxu0 0.0
        %1681 = vmatprep.mubr.f32.mxu0 0.0
        %1682 = vmatmul.mubr.f32.gmra.mrb[0].mxu0 %v1609
        %v1683 = vpop.f32.mrb[0].mxu0
        %v1684 = vadd.f32 0.0, %v1683
        %v1685 = vpop.f32.mrb[0].mxu0
        %1686 = vmatprep.mubr.f32.mxu0 0.0
        %1687 = vmatmul.mubr.f32.gmra.mrb[0].mxu0 %v1611
        %v1688 = vpop.f32.mrb[0].mxu0
        %v1689 = vadd.f32 0.0, %v1688
        %v1690 = vpop.f32.mrb[0].mxu0
        %1691 = vdwg.mxu0
        %v1692 = vsel %vm1110, %v1051, 0
        %v1694 = vsel %vm1110, %v1053, 0
        %v1696 = vsel %vm1110, %v1075, 0
        %v1698 = vsel %vm1110, %v1077, 0
        %1700 = vmatprep.subr.mxu0 0.0
        %1701 = vmatpush1.xpose.msra.mxu0 %v1696
        %1702 = vmatprep.subr.mxu0 0.0
        %1703 = vmatpush1.xpose.msra.mxu0 %v1698
        %1704 = vmatprep.subr.mxu0 0.0
        %1705 = vmatpush1.xpose.msra.mxu0 0.0
        %1706 = vmatprep.subr.mxu0 0.0
        %1707 = vmatpush1.xpose.msra.mxu0 0.0
        %1708 = vmatprep.subr.mxu0 0.0
        %1709 = vmatpush1.xpose.msra.mxu0 0.0
        %1710 = vmatprep.subr.mxu0 0.0
        %1711 = vmatpush1.xpose.msra.mxu0 0.0
        %1712 = vmatprep.subr.mxu0 0.0
        %1713 = vmatpush1.xpose.msra.mxu0 0.0
        %1714 = vmatprep.subr.mxu0 0.0
        %1715 = vmatpush1.xpose.msra.mxu0 0.0
        %1716 = vmatprep.subr.mxu0 0.0
        %1717 = vmatpush1.xpose.msra.mxu0 0.0
        %1718 = vmatprep.subr.mxu0 0.0
        %1719 = vmatpush1.xpose.msra.mxu0 0.0
        %1720 = vmatprep.subr.mxu0 0.0
        %1721 = vmatpush1.xpose.msra.mxu0 0.0
        %1722 = vmatprep.subr.mxu0 0.0
        %1723 = vmatpush1.xpose.msra.mxu0 0.0
        %1724 = vmatprep.subr.mxu0 0.0
        %1725 = vmatpush1.xpose.msra.mxu0 0.0
        %1726 = vmatprep.subr.mxu0 0.0
        %1727 = vmatpush1.xpose.msra.mxu0 0.0
        %1728 = vmatprep.subr.mxu0 0.0
        %1729 = vmatpush1.xpose.msra.mxu0 0.0
        %1730 = vmatprep.subr.mxu0 0.0
        %1731 = vmatpush1.xpose.msra.mxu0 0.0
        %1732 = vmatprep.subr.mxu0 0.0
        %1733 = vmatpush1.xpose.msra.mxu0 0.0
        %1734 = vmatprep.subr.mxu0 0.0
        %1735 = vmatpush1.xpose.msra.mxu0 0.0
        %1736 = vmatprep.subr.mxu0 0.0
        %1737 = vmatpush1.xpose.msra.mxu0 0.0
        %1738 = vmatprep.subr.mxu0 0.0
        %1739 = vmatpush1.xpose.msra.mxu0 0.0
        %1740 = vmatprep.subr.mxu0 0.0
        %1741 = vmatpush1.xpose.msra.mxu0 0.0
        %1742 = vmatprep.subr.mxu0 0.0
        %1743 = vmatpush1.xpose.msra.mxu0 0.0
        %1744 = vmatprep.subr.mxu0 0.0
        %1745 = vmatpush1.xpose.msra.mxu0 0.0
        %1746 = vmatprep.subr.mxu0 0.0
        %1747 = vmatpush1.xpose.msra.mxu0 0.0
        %1748 = vmatprep.subr.mxu0 0.0
        %1749 = vmatpush1.xpose.msra.mxu0 0.0
        %1750 = vmatprep.subr.mxu0 0.0
        %1751 = vmatpush1.xpose.msra.mxu0 0.0
        %1752 = vmatprep.subr.mxu0 0.0
        %1753 = vmatpush1.xpose.msra.mxu0 0.0
        %1754 = vmatprep.subr.mxu0 0.0
        %1755 = vmatpush1.xpose.msra.mxu0 0.0
        %1756 = vmatprep.subr.mxu0 0.0
        %1757 = vmatpush1.xpose.msra.mxu0 0.0
        %1758 = vmatprep.subr.mxu0 0.0
        %1759 = vmatpush1.xpose.msra.mxu0 0.0
        %1760 = vmatprep.subr.mxu0 0.0
        %1761 = vmatpush1.xpose.msra.mxu0 0.0
        %1762 = vmatprep.subr.mxu0 0.0
        %1763 = vmatpush1.xpose.msra.mxu0 0.0
        %1764 = vmatprep.mubr.f32.mxu0 0.0
        %1765 = vmatmul.mubr.f32.gmra.mrb[0].mxu0 %v1692
        %v1766 = vpop.f32.mrb[0].mxu0
        %v1767 = vadd.f32 0.0, %v1766
        %v1768 = vpop.f32.mrb[0].mxu0
        %1769 = vmatprep.mubr.f32.mxu0 0.0
        %1770 = vmatmul.mubr.f32.gmra.mrb[0].mxu0 %v1694
        %v1771 = vpop.f32.mrb[0].mxu0
        %v1772 = vadd.f32 0.0, %v1771
        %v1773 = vpop.f32.mrb[0].mxu0
        %1774 = vdwg.mxu0
        %vm1775 = vcmask 130048
        %v1776 = vsel %vm1775, %v1186, -inf
        %1777 = vmax.xlane.f32.xlu0 %v1776
        %v1778 = vpop.xlane.xlu0 %1777
        %v1779 = vsel %vm1775, %v1191, -inf
        %1780 = vmax.xlane.f32.xlu0 %v1779
        %v1781 = vpop.xlane.xlu0 %1780
        %v1782 = vsel %vm1775, %v1269, -inf
        %1783 = vmax.xlane.f32.xlu0 %v1782
        %v1784 = vpop.xlane.xlu0 %1783
        %v1785 = vsel %vm1775, %v1274, -inf
        %1786 = vmax.xlane.f32.xlu0 %v1785
        %v1787 = vpop.xlane.xlu0 %1786
        %v1788 = vsel %vm1775, %v1352, -inf
        %1789 = vmax.xlane.f32.xlu0 %v1788
        %v1790 = vpop.xlane.xlu0 %1789
        %v1791 = vsel %vm1775, %v1357, -inf
        %1792 = vmax.xlane.f32.xlu0 %v1791
        %v1793 = vpop.xlane.xlu0 %1792
        %v1794 = vsel %vm1775, %v1435, -inf
        %1795 = vmax.xlane.f32.xlu0 %v1794
        %v1796 = vpop.xlane.xlu0 %1795
        %v1797 = vsel %vm1775, %v1440, -inf
        %1798 = vmax.xlane.f32.xlu0 %v1797
        %v1799 = vpop.xlane.xlu0 %1798
        %v1800 = vsel %vm1775, %v1518, -inf
        %1801 = vmax.xlane.f32.xlu0 %v1800
        %v1802 = vpop.xlane.xlu0 %1801
        %v1803 = vsel %vm1775, %v1523, -inf
        %1804 = vmax.xlane.f32.xlu0 %v1803
        %v1805 = vpop.xlane.xlu0 %1804
        %v1806 = vsel %vm1775, %v1601, -inf
        %1807 = vmax.xlane.f32.xlu0 %v1806
        %v1808 = vpop.xlane.xlu0 %1807
        %v1809 = vsel %vm1775, %v1606, -inf
        %1810 = vmax.xlane.f32.xlu0 %v1809
        %v1811 = vpop.xlane.xlu0 %1810
        %v1812 = vsel %vm1775, %v1684, -inf
        %1813 = vmax.xlane.f32.xlu0 %v1812
        %v1814 = vpop.xlane.xlu0 %1813
        %v1815 = vsel %vm1775, %v1689, -inf
        %1816 = vmax.xlane.f32.xlu0 %v1815
        %v1817 = vpop.xlane.xlu0 %1816
        %v1818 = vsel %vm1775, %v1767, -inf
        %1819 = vmax.xlane.f32.xlu0 %v1818
        %v1820 = vpop.xlane.xlu0 %1819
        %v1821 = vsel %vm1775, %v1772, -inf
        %1822 = vmax.xlane.f32.xlu0 %v1821
        %v1823 = vpop.xlane.xlu0 %1822
        %v1824 = vsub.f32 %v1186, %v1778
        %v1825 = vsub.f32 %v1191, %v1781
        %v1826 = vsub.f32 %v1269, %v1784
        %v1827 = vsub.f32 %v1274, %v1787
        %v1828 = vsub.f32 %v1352, %v1790
        %v1829 = vsub.f32 %v1357, %v1793
        %v1830 = vsub.f32 %v1435, %v1796
        %v1831 = vsub.f32 %v1440, %v1799
        %v1832 = vsub.f32 %v1518, %v1802
        %v1833 = vsub.f32 %v1523, %v1805
        %v1834 = vsub.f32 %v1601, %v1808
        %v1835 = vsub.f32 %v1606, %v1811
        %v1836 = vsub.f32 %v1684, %v1814
        %v1837 = vsub.f32 %v1689, %v1817
        %v1838 = vsub.f32 %v1767, %v1820
        %v1839 = vsub.f32 %v1772, %v1823
        %v1840 = vmul.f32 %v1824, 1.442695
        %v1841 = vpow.pop %v1840
        %v1842 = vmul.f32 %v1825, 1.442695
        %v1843 = vpow.pop %v1842
        %v1844 = vmul.f32 %v1826, 1.442695
        %v1845 = vpow.pop %v1844
        %v1846 = vmul.f32 %v1827, 1.442695
        %v1847 = vpow.pop %v1846
        %v1848 = vmul.f32 %v1828, 1.442695
        %v1849 = vpow.pop %v1848
        %v1850 = vmul.f32 %v1829, 1.442695
        %v1851 = vpow.pop %v1850
        %v1852 = vmul.f32 %v1830, 1.442695
        %v1853 = vpow.pop %v1852
        %v1854 = vmul.f32 %v1831, 1.442695
        %v1855 = vpow.pop %v1854
        %v1856 = vmul.f32 %v1832, 1.442695
        %v1857 = vpow.pop %v1856
        %v1858 = vmul.f32 %v1833, 1.442695
        %v1859 = vpow.pop %v1858
        %v1860 = vmul.f32 %v1834, 1.442695
        %v1861 = vpow.pop %v1860
        %v1862 = vmul.f32 %v1835, 1.442695
        %v1863 = vpow.pop %v1862
        %v1864 = vmul.f32 %v1836, 1.442695
        %v1865 = vpow.pop %v1864
        %v1866 = vmul.f32 %v1837, 1.442695
        %v1867 = vpow.pop %v1866
        %v1868 = vmul.f32 %v1838, 1.442695
        %v1869 = vpow.pop %v1868
        %v1870 = vmul.f32 %v1839, 1.442695
        %v1871 = vpow.pop %v1870
        %v1872 = vsel %vm1775, %v1841, 0.0
        %1873 = vadd.xlane.f32.xlu0 %v1872
        %v1874 = vpop.xlane.xlu0 %1873
        %v1875 = vsel %vm1775, %v1843, 0.0
        %1876 = vadd.xlane.f32.xlu0 %v1875
        %v1877 = vpop.xlane.xlu0 %1876
        %v1878 = vsel %vm1775, %v1845, 0.0
        %1879 = vadd.xlane.f32.xlu0 %v1878
        %v1880 = vpop.xlane.xlu0 %1879
        %v1881 = vsel %vm1775, %v1847, 0.0
        %1882 = vadd.xlane.f32.xlu0 %v1881
        %v1883 = vpop.xlane.xlu0 %1882
        %v1884 = vsel %vm1775, %v1849, 0.0
        %1885 = vadd.xlane.f32.xlu0 %v1884
        %v1886 = vpop.xlane.xlu0 %1885
        %v1887 = vsel %vm1775, %v1851, 0.0
        %1888 = vadd.xlane.f32.xlu0 %v1887
        %v1889 = vpop.xlane.xlu0 %1888
        %v1890 = vsel %vm1775, %v1853, 0.0
        %1891 = vadd.xlane.f32.xlu0 %v1890
        %v1892 = vpop.xlane.xlu0 %1891
        %v1893 = vsel %vm1775, %v1855, 0.0
        %1894 = vadd.xlane.f32.xlu0 %v1893
        %v1895 = vpop.xlane.xlu0 %1894
        %v1896 = vsel %vm1775, %v1857, 0.0
        %1897 = vadd.xlane.f32.xlu0 %v1896
        %v1898 = vpop.xlane.xlu0 %1897
        %v1899 = vsel %vm1775, %v1859, 0.0
        %1900 = vadd.xlane.f32.xlu0 %v1899
        %v1901 = vpop.xlane.xlu0 %1900
        %v1902 = vsel %vm1775, %v1861, 0.0
        %1903 = vadd.xlane.f32.xlu0 %v1902
        %v1904 = vpop.xlane.xlu0 %1903
        %v1905 = vsel %vm1775, %v1863, 0.0
        %1906 = vadd.xlane.f32.xlu0 %v1905
        %v1907 = vpop.xlane.xlu0 %1906
        %v1908 = vsel %vm1775, %v1865, 0.0
        %1909 = vadd.xlane.f32.xlu0 %v1908
        %v1910 = vpop.xlane.xlu0 %1909
        %v1911 = vsel %vm1775, %v1867, 0.0
        %1912 = vadd.xlane.f32.xlu0 %v1911
        %v1913 = vpop.xlane.xlu0 %1912
        %v1914 = vsel %vm1775, %v1869, 0.0
        %1915 = vadd.xlane.f32.xlu0 %v1914
        %v1916 = vpop.xlane.xlu0 %1915
        %v1917 = vsel %vm1775, %v1871, 0.0
        %1918 = vadd.xlane.f32.xlu0 %v1917
        %v1919 = vpop.xlane.xlu0 %1918
        %v1921 = vsel %vm1775, %v1841, 0
        %v1924 = vsel %vm1775, %v1843, 0
        %1926 = vmatprep.subr.mxu0 0.0
        %1927 = vmatpush1.msra.mxu0 %v943
        %1928 = vmatprep.subr.mxu0 0.0
        %1929 = vmatpush1.msra.mxu0 %v949
        %1930 = vmatprep.subr.mxu0 0.0
        %1931 = vmatpush1.msra.mxu0 0.0
        %1932 = vmatprep.subr.mxu0 0.0
        %1933 = vmatpush1.msra.mxu0 0.0
        %1934 = vmatprep.subr.mxu0 0.0
        %1935 = vmatpush1.msra.mxu0 0.0
        %1936 = vmatprep.subr.mxu0 0.0
        %1937 = vmatpush1.msra.mxu0 0.0
        %1938 = vmatprep.subr.mxu0 0.0
        %1939 = vmatpush1.msra.mxu0 0.0
        %1940 = vmatprep.subr.mxu0 0.0
        %1941 = vmatpush1.msra.mxu0 0.0
        %1942 = vmatprep.subr.mxu0 0.0
        %1943 = vmatpush1.msra.mxu0 0.0
        %1944 = vmatprep.subr.mxu0 0.0
        %1945 = vmatpush1.msra.mxu0 0.0
        %1946 = vmatprep.subr.mxu0 0.0
        %1947 = vmatpush1.msra.mxu0 0.0
        %1948 = vmatprep.subr.mxu0 0.0
        %1949 = vmatpush1.msra.mxu0 0.0
        %1950 = vmatprep.subr.mxu0 0.0
        %1951 = vmatpush1.msra.mxu0 0.0
        %1952 = vmatprep.subr.mxu0 0.0
        %1953 = vmatpush1.msra.mxu0 0.0
        %1954 = vmatprep.subr.mxu0 0.0
        %1955 = vmatpush1.msra.mxu0 0.0
        %1956 = vmatprep.subr.mxu0 0.0
        %1957 = vmatpush1.msra.mxu0 0.0
        %1958 = vmatprep.subr.mxu0 0.0
        %1959 = vmatpush1.msra.mxu0 0.0
        %1960 = vmatprep.subr.mxu0 0.0
        %1961 = vmatpush1.msra.mxu0 0.0
        %1962 = vmatprep.subr.mxu0 0.0
        %1963 = vmatpush1.msra.mxu0 0.0
        %1964 = vmatprep.subr.mxu0 0.0
        %1965 = vmatpush1.msra.mxu0 0.0
        %1966 = vmatprep.subr.mxu0 0.0
        %1967 = vmatpush1.msra.mxu0 0.0
        %1968 = vmatprep.subr.mxu0 0.0
        %1969 = vmatpush1.msra.mxu0 0.0
        %1970 = vmatprep.subr.mxu0 0.0
        %1971 = vmatpush1.msra.mxu0 0.0
        %1972 = vmatprep.subr.mxu0 0.0
        %1973 = vmatpush1.msra.mxu0 0.0
        %1974 = vmatprep.subr.mxu0 0.0
        %1975 = vmatpush1.msra.mxu0 0.0
        %1976 = vmatprep.subr.mxu0 0.0
        %1977 = vmatpush1.msra.mxu0 0.0
        %1978 = vmatprep.subr.mxu0 0.0
        %1979 = vmatpush1.msra.mxu0 0.0
        %1980 = vmatprep.subr.mxu0 0.0
        %1981 = vmatpush1.msra.mxu0 0.0
        %1982 = vmatprep.subr.mxu0 0.0
        %1983 = vmatpush1.msra.mxu0 0.0
        %1984 = vmatprep.subr.mxu0 0.0
        %1985 = vmatpush1.msra.mxu0 0.0
        %1986 = vmatprep.subr.mxu0 0.0
        %1987 = vmatpush1.msra.mxu0 0.0
        %1988 = vmatprep.subr.mxu0 0.0
        %1989 = vmatpush1.msra.mxu0 0.0
        %1990 = vmatprep.mubr.f32.mxu0 0.0
        %1991 = vmatmul.mubr.f32.gmra.mrb[0].mxu0 %v1921
        %v1992 = vpop.f32.mrb[0].mxu0
        %v1993 = vadd.f32 0.0, %v1992
        %v1994 = vpop.f32.mrb[0].mxu0
        %1995 = vmatprep.mubr.f32.mxu0 0.0
        %1996 = vmatmul.mubr.f32.gmra.mrb[0].mxu0 %v1924
        %v1997 = vpop.f32.mrb[0].mxu0
        %v1998 = vadd.f32 0.0, %v1997
        %v1999 = vpop.f32.mrb[0].mxu0
        %2000 = vdwg.mxu0
        %v2002 = vsel %vm1775, %v1845, 0
        %v2005 = vsel %vm1775, %v1847, 0
        %2007 = vmatprep.subr.mxu0 0.0
        %2008 = vmatpush1.msra.mxu0 %v1081
        %2009 = vmatprep.subr.mxu0 0.0
        %2010 = vmatpush1.msra.mxu0 %v1083
        %2011 = vmatprep.subr.mxu0 0.0
        %2012 = vmatpush1.msra.mxu0 0.0
        %2013 = vmatprep.subr.mxu0 0.0
        %2014 = vmatpush1.msra.mxu0 0.0
        %2015 = vmatprep.subr.mxu0 0.0
        %2016 = vmatpush1.msra.mxu0 0.0
        %2017 = vmatprep.subr.mxu0 0.0
        %2018 = vmatpush1.msra.mxu0 0.0
        %2019 = vmatprep.subr.mxu0 0.0
        %2020 = vmatpush1.msra.mxu0 0.0
        %2021 = vmatprep.subr.mxu0 0.0
        %2022 = vmatpush1.msra.mxu0 0.0
        %2023 = vmatprep.subr.mxu0 0.0
        %2024 = vmatpush1.msra.mxu0 0.0
        %2025 = vmatprep.subr.mxu0 0.0
        %2026 = vmatpush1.msra.mxu0 0.0
        %2027 = vmatprep.subr.mxu0 0.0
        %2028 = vmatpush1.msra.mxu0 0.0
        %2029 = vmatprep.subr.mxu0 0.0
        %2030 = vmatpush1.msra.mxu0 0.0
        %2031 = vmatprep.subr.mxu0 0.0
        %2032 = vmatpush1.msra.mxu0 0.0
        %2033 = vmatprep.subr.mxu0 0.0
        %2034 = vmatpush1.msra.mxu0 0.0
        %2035 = vmatprep.subr.mxu0 0.0
        %2036 = vmatpush1.msra.mxu0 0.0
        %2037 = vmatprep.subr.mxu0 0.0
        %2038 = vmatpush1.msra.mxu0 0.0
        %2039 = vmatprep.subr.mxu0 0.0
        %2040 = vmatpush1.msra.mxu0 0.0
        %2041 = vmatprep.subr.mxu0 0.0
        %2042 = vmatpush1.msra.mxu0 0.0
        %2043 = vmatprep.subr.mxu0 0.0
        %2044 = vmatpush1.msra.mxu0 0.0
        %2045 = vmatprep.subr.mxu0 0.0
        %2046 = vmatpush1.msra.mxu0 0.0
        %2047 = vmatprep.subr.mxu0 0.0
        %2048 = vmatpush1.msra.mxu0 0.0
        %2049 = vmatprep.subr.mxu0 0.0
        %2050 = vmatpush1.msra.mxu0 0.0
        %2051 = vmatprep.subr.mxu0 0.0
        %2052 = vmatpush1.msra.mxu0 0.0
        %2053 = vmatprep.subr.mxu0 0.0
        %2054 = vmatpush1.msra.mxu0 0.0
        %2055 = vmatprep.subr.mxu0 0.0
        %2056 = vmatpush1.msra.mxu0 0.0
        %2057 = vmatprep.subr.mxu0 0.0
        %2058 = vmatpush1.msra.mxu0 0.0
        %2059 = vmatprep.subr.mxu0 0.0
        %2060 = vmatpush1.msra.mxu0 0.0
        %2061 = vmatprep.subr.mxu0 0.0
        %2062 = vmatpush1.msra.mxu0 0.0
        %2063 = vmatprep.subr.mxu0 0.0
        %2064 = vmatpush1.msra.mxu0 0.0
        %2065 = vmatprep.subr.mxu0 0.0
        %2066 = vmatpush1.msra.mxu0 0.0
        %2067 = vmatprep.subr.mxu0 0.0
        %2068 = vmatpush1.msra.mxu0 0.0
        %2069 = vmatprep.subr.mxu0 0.0
        %2070 = vmatpush1.msra.mxu0 0.0
        %2071 = vmatprep.mubr.f32.mxu0 0.0
        %2072 = vmatmul.mubr.f32.gmra.mrb[0].mxu0 %v2002
        %v2073 = vpop.f32.mrb[0].mxu0
        %v2074 = vadd.f32 0.0, %v2073
        %v2075 = vpop.f32.mrb[0].mxu0
        %2076 = vmatprep.mubr.f32.mxu0 0.0
        %2077 = vmatmul.mubr.f32.gmra.mrb[0].mxu0 %v2005
        %v2078 = vpop.f32.mrb[0].mxu0
        %v2079 = vadd.f32 0.0, %v2078
        %v2080 = vpop.f32.mrb[0].mxu0
        %2081 = vdwg.mxu0
        %v2083 = vsel %vm1775, %v1849, 0
        %v2086 = vsel %vm1775, %v1851, 0
        %2088 = vmatprep.subr.mxu0 0.0
        %2089 = vmatpush1.msra.mxu0 %v945
        %2090 = vmatprep.subr.mxu0 0.0
        %2091 = vmatpush1.msra.mxu0 %v951
        %2092 = vmatprep.subr.mxu0 0.0
        %2093 = vmatpush1.msra.mxu0 0.0
        %2094 = vmatprep.subr.mxu0 0.0
        %2095 = vmatpush1.msra.mxu0 0.0
        %2096 = vmatprep.subr.mxu0 0.0
        %2097 = vmatpush1.msra.mxu0 0.0
        %2098 = vmatprep.subr.mxu0 0.0
        %2099 = vmatpush1.msra.mxu0 0.0
        %2100 = vmatprep.subr.mxu0 0.0
        %2101 = vmatpush1.msra.mxu0 0.0
        %2102 = vmatprep.subr.mxu0 0.0
        %2103 = vmatpush1.msra.mxu0 0.0
        %2104 = vmatprep.subr.mxu0 0.0
        %2105 = vmatpush1.msra.mxu0 0.0
        %2106 = vmatprep.subr.mxu0 0.0
        %2107 = vmatpush1.msra.mxu0 0.0
        %2108 = vmatprep.subr.mxu0 0.0
        %2109 = vmatpush1.msra.mxu0 0.0
        %2110 = vmatprep.subr.mxu0 0.0
        %2111 = vmatpush1.msra.mxu0 0.0
        %2112 = vmatprep.subr.mxu0 0.0
        %2113 = vmatpush1.msra.mxu0 0.0
        %2114 = vmatprep.subr.mxu0 0.0
        %2115 = vmatpush1.msra.mxu0 0.0
        %2116 = vmatprep.subr.mxu0 0.0
        %2117 = vmatpush1.msra.mxu0 0.0
        %2118 = vmatprep.subr.mxu0 0.0
        %2119 = vmatpush1.msra.mxu0 0.0
        %2120 = vmatprep.subr.mxu0 0.0
        %2121 = vmatpush1.msra.mxu0 0.0
        %2122 = vmatprep.subr.mxu0 0.0
        %2123 = vmatpush1.msra.mxu0 0.0
        %2124 = vmatprep.subr.mxu0 0.0
        %2125 = vmatpush1.msra.mxu0 0.0
        %2126 = vmatprep.subr.mxu0 0.0
        %2127 = vmatpush1.msra.mxu0 0.0
        %2128 = vmatprep.subr.mxu0 0.0
        %2129 = vmatpush1.msra.mxu0 0.0
        %2130 = vmatprep.subr.mxu0 0.0
        %2131 = vmatpush1.msra.mxu0 0.0
        %2132 = vmatprep.subr.mxu0 0.0
        %2133 = vmatpush1.msra.mxu0 0.0
        %2134 = vmatprep.subr.mxu0 0.0
        %2135 = vmatpush1.msra.mxu0 0.0
        %2136 = vmatprep.subr.mxu0 0.0
        %2137 = vmatpush1.msra.mxu0 0.0
        %2138 = vmatprep.subr.mxu0 0.0
        %2139 = vmatpush1.msra.mxu0 0.0
        %2140 = vmatprep.subr.mxu0 0.0
        %2141 = vmatpush1.msra.mxu0 0.0
        %2142 = vmatprep.subr.mxu0 0.0
        %2143 = vmatpush1.msra.mxu0 0.0
        %2144 = vmatprep.subr.mxu0 0.0
        %2145 = vmatpush1.msra.mxu0 0.0
        %2146 = vmatprep.subr.mxu0 0.0
        %2147 = vmatpush1.msra.mxu0 0.0
        %2148 = vmatprep.subr.mxu0 0.0
        %2149 = vmatpush1.msra.mxu0 0.0
        %2150 = vmatprep.subr.mxu0 0.0
        %2151 = vmatpush1.msra.mxu0 0.0
        %2152 = vmatprep.mubr.f32.mxu0 0.0
        %2153 = vmatmul.mubr.f32.gmra.mrb[0].mxu0 %v2083
        %v2154 = vpop.f32.mrb[0].mxu0
        %v2155 = vadd.f32 0.0, %v2154
        %v2156 = vpop.f32.mrb[0].mxu0
        %2157 = vmatprep.mubr.f32.mxu0 0.0
        %2158 = vmatmul.mubr.f32.gmra.mrb[0].mxu0 %v2086
        %v2159 = vpop.f32.mrb[0].mxu0
        %v2160 = vadd.f32 0.0, %v2159
        %v2161 = vpop.f32.mrb[0].mxu0
        %2162 = vdwg.mxu0
        %v2164 = vsel %vm1775, %v1853, 0
        %v2167 = vsel %vm1775, %v1855, 0
        %2169 = vmatprep.subr.mxu0 0.0
        %2170 = vmatpush1.msra.mxu0 %v1089
        %2171 = vmatprep.subr.mxu0 0.0
        %2172 = vmatpush1.msra.mxu0 %v1091
        %2173 = vmatprep.subr.mxu0 0.0
        %2174 = vmatpush1.msra.mxu0 0.0
        %2175 = vmatprep.subr.mxu0 0.0
        %2176 = vmatpush1.msra.mxu0 0.0
        %2177 = vmatprep.subr.mxu0 0.0
        %2178 = vmatpush1.msra.mxu0 0.0
        %2179 = vmatprep.subr.mxu0 0.0
        %2180 = vmatpush1.msra.mxu0 0.0
        %2181 = vmatprep.subr.mxu0 0.0
        %2182 = vmatpush1.msra.mxu0 0.0
        %2183 = vmatprep.subr.mxu0 0.0
        %2184 = vmatpush1.msra.mxu0 0.0
        %2185 = vmatprep.subr.mxu0 0.0
        %2186 = vmatpush1.msra.mxu0 0.0
        %2187 = vmatprep.subr.mxu0 0.0
        %2188 = vmatpush1.msra.mxu0 0.0
        %2189 = vmatprep.subr.mxu0 0.0
        %2190 = vmatpush1.msra.mxu0 0.0
        %2191 = vmatprep.subr.mxu0 0.0
        %2192 = vmatpush1.msra.mxu0 0.0
        %2193 = vmatprep.subr.mxu0 0.0
        %2194 = vmatpush1.msra.mxu0 0.0
        %2195 = vmatprep.subr.mxu0 0.0
        %2196 = vmatpush1.msra.mxu0 0.0
        %2197 = vmatprep.subr.mxu0 0.0
        %2198 = vmatpush1.msra.mxu0 0.0
        %2199 = vmatprep.subr.mxu0 0.0
        %2200 = vmatpush1.msra.mxu0 0.0
        %2201 = vmatprep.subr.mxu0 0.0
        %2202 = vmatpush1.msra.mxu0 0.0
        %2203 = vmatprep.subr.mxu0 0.0
        %2204 = vmatpush1.msra.mxu0 0.0
        %2205 = vmatprep.subr.mxu0 0.0
        %2206 = vmatpush1.msra.mxu0 0.0
        %2207 = vmatprep.subr.mxu0 0.0
        %2208 = vmatpush1.msra.mxu0 0.0
        %2209 = vmatprep.subr.mxu0 0.0
        %2210 = vmatpush1.msra.mxu0 0.0
        %2211 = vmatprep.subr.mxu0 0.0
        %2212 = vmatpush1.msra.mxu0 0.0
        %2213 = vmatprep.subr.mxu0 0.0
        %2214 = vmatpush1.msra.mxu0 0.0
        %2215 = vmatprep.subr.mxu0 0.0
        %2216 = vmatpush1.msra.mxu0 0.0
        %2217 = vmatprep.subr.mxu0 0.0
        %2218 = vmatpush1.msra.mxu0 0.0
        %2219 = vmatprep.subr.mxu0 0.0
        %2220 = vmatpush1.msra.mxu0 0.0
        %2221 = vmatprep.subr.mxu0 0.0
        %2222 = vmatpush1.msra.mxu0 0.0
        %2223 = vmatprep.subr.mxu0 0.0
        %2224 = vmatpush1.msra.mxu0 0.0
        %2225 = vmatprep.subr.mxu0 0.0
        %2226 = vmatpush1.msra.mxu0 0.0
        %2227 = vmatprep.subr.mxu0 0.0
        %2228 = vmatpush1.msra.mxu0 0.0
        %2229 = vmatprep.subr.mxu0 0.0
        %2230 = vmatpush1.msra.mxu0 0.0
        %2231 = vmatprep.subr.mxu0 0.0
        %2232 = vmatpush1.msra.mxu0 0.0
        %2233 = vmatprep.mubr.f32.mxu0 0.0
        %2234 = vmatmul.mubr.f32.gmra.mrb[0].mxu0 %v2164
        %v2235 = vpop.f32.mrb[0].mxu0
        %v2236 = vadd.f32 0.0, %v2235
        %v2237 = vpop.f32.mrb[0].mxu0
        %2238 = vmatprep.mubr.f32.mxu0 0.0
        %2239 = vmatmul.mubr.f32.gmra.mrb[0].mxu0 %v2167
        %v2240 = vpop.f32.mrb[0].mxu0
        %v2241 = vadd.f32 0.0, %v2240
        %v2242 = vpop.f32.mrb[0].mxu0
        %2243 = vdwg.mxu0
        %v2245 = vsel %vm1775, %v1857, 0
        %v2248 = vsel %vm1775, %v1859, 0
        %2250 = vmatprep.subr.mxu0 0.0
        %2251 = vmatpush1.msra.mxu0 %v1020
        %2252 = vmatprep.subr.mxu0 0.0
        %2253 = vmatpush1.msra.mxu0 %v1026
        %2254 = vmatprep.subr.mxu0 0.0
        %2255 = vmatpush1.msra.mxu0 0.0
        %2256 = vmatprep.subr.mxu0 0.0
        %2257 = vmatpush1.msra.mxu0 0.0
        %2258 = vmatprep.subr.mxu0 0.0
        %2259 = vmatpush1.msra.mxu0 0.0
        %2260 = vmatprep.subr.mxu0 0.0
        %2261 = vmatpush1.msra.mxu0 0.0
        %2262 = vmatprep.subr.mxu0 0.0
        %2263 = vmatpush1.msra.mxu0 0.0
        %2264 = vmatprep.subr.mxu0 0.0
        %2265 = vmatpush1.msra.mxu0 0.0
        %2266 = vmatprep.subr.mxu0 0.0
        %2267 = vmatpush1.msra.mxu0 0.0
        %2268 = vmatprep.subr.mxu0 0.0
        %2269 = vmatpush1.msra.mxu0 0.0
        %2270 = vmatprep.subr.mxu0 0.0
        %2271 = vmatpush1.msra.mxu0 0.0
        %2272 = vmatprep.subr.mxu0 0.0
        %2273 = vmatpush1.msra.mxu0 0.0
        %2274 = vmatprep.subr.mxu0 0.0
        %2275 = vmatpush1.msra.mxu0 0.0
        %2276 = vmatprep.subr.mxu0 0.0
        %2277 = vmatpush1.msra.mxu0 0.0
        %2278 = vmatprep.subr.mxu0 0.0
        %2279 = vmatpush1.msra.mxu0 0.0
        %2280 = vmatprep.subr.mxu0 0.0
        %2281 = vmatpush1.msra.mxu0 0.0
        %2282 = vmatprep.subr.mxu0 0.0
        %2283 = vmatpush1.msra.mxu0 0.0
        %2284 = vmatprep.subr.mxu0 0.0
        %2285 = vmatpush1.msra.mxu0 0.0
        %2286 = vmatprep.subr.mxu0 0.0
        %2287 = vmatpush1.msra.mxu0 0.0
        %2288 = vmatprep.subr.mxu0 0.0
        %2289 = vmatpush1.msra.mxu0 0.0
        %2290 = vmatprep.subr.mxu0 0.0
        %2291 = vmatpush1.msra.mxu0 0.0
        %2292 = vmatprep.subr.mxu0 0.0
        %2293 = vmatpush1.msra.mxu0 0.0
        %2294 = vmatprep.subr.mxu0 0.0
        %2295 = vmatpush1.msra.mxu0 0.0
        %2296 = vmatprep.subr.mxu0 0.0
        %2297 = vmatpush1.msra.mxu0 0.0
        %2298 = vmatprep.subr.mxu0 0.0
        %2299 = vmatpush1.msra.mxu0 0.0
        %2300 = vmatprep.subr.mxu0 0.0
        %2301 = vmatpush1.msra.mxu0 0.0
        %2302 = vmatprep.subr.mxu0 0.0
        %2303 = vmatpush1.msra.mxu0 0.0
        %2304 = vmatprep.subr.mxu0 0.0
        %2305 = vmatpush1.msra.mxu0 0.0
        %2306 = vmatprep.subr.mxu0 0.0
        %2307 = vmatpush1.msra.mxu0 0.0
        %2308 = vmatprep.subr.mxu0 0.0
        %2309 = vmatpush1.msra.mxu0 0.0
        %2310 = vmatprep.subr.mxu0 0.0
        %2311 = vmatpush1.msra.mxu0 0.0
        %2312 = vmatprep.subr.mxu0 0.0
        %2313 = vmatpush1.msra.mxu0 0.0
        %2314 = vmatprep.mubr.f32.mxu0 0.0
        %2315 = vmatmul.mubr.f32.gmra.mrb[0].mxu0 %v2245
        %v2316 = vpop.f32.mrb[0].mxu0
        %v2317 = vadd.f32 0.0, %v2316
        %v2318 = vpop.f32.mrb[0].mxu0
        %2319 = vmatprep.mubr.f32.mxu0 0.0
        %2320 = vmatmul.mubr.f32.gmra.mrb[0].mxu0 %v2248
        %v2321 = vpop.f32.mrb[0].mxu0
        %v2322 = vadd.f32 0.0, %v2321
        %v2323 = vpop.f32.mrb[0].mxu0
        %2324 = vdwg.mxu0
        %v2326 = vsel %vm1775, %v1861, 0
        %v2329 = vsel %vm1775, %v1863, 0
        %2331 = vmatprep.subr.mxu0 0.0
        %2332 = vmatpush1.msra.mxu0 %v1097
        %2333 = vmatprep.subr.mxu0 0.0
        %2334 = vmatpush1.msra.mxu0 %v1099
        %2335 = vmatprep.subr.mxu0 0.0
        %2336 = vmatpush1.msra.mxu0 0.0
        %2337 = vmatprep.subr.mxu0 0.0
        %2338 = vmatpush1.msra.mxu0 0.0
        %2339 = vmatprep.subr.mxu0 0.0
        %2340 = vmatpush1.msra.mxu0 0.0
        %2341 = vmatprep.subr.mxu0 0.0
        %2342 = vmatpush1.msra.mxu0 0.0
        %2343 = vmatprep.subr.mxu0 0.0
        %2344 = vmatpush1.msra.mxu0 0.0
        %2345 = vmatprep.subr.mxu0 0.0
        %2346 = vmatpush1.msra.mxu0 0.0
        %2347 = vmatprep.subr.mxu0 0.0
        %2348 = vmatpush1.msra.mxu0 0.0
        %2349 = vmatprep.subr.mxu0 0.0
        %2350 = vmatpush1.msra.mxu0 0.0
        %2351 = vmatprep.subr.mxu0 0.0
        %2352 = vmatpush1.msra.mxu0 0.0
        %2353 = vmatprep.subr.mxu0 0.0
        %2354 = vmatpush1.msra.mxu0 0.0
        %2355 = vmatprep.subr.mxu0 0.0
        %2356 = vmatpush1.msra.mxu0 0.0
        %2357 = vmatprep.subr.mxu0 0.0
        %2358 = vmatpush1.msra.mxu0 0.0
        %2359 = vmatprep.subr.mxu0 0.0
        %2360 = vmatpush1.msra.mxu0 0.0
        %2361 = vmatprep.subr.mxu0 0.0
        %2362 = vmatpush1.msra.mxu0 0.0
        %2363 = vmatprep.subr.mxu0 0.0
        %2364 = vmatpush1.msra.mxu0 0.0
        %2365 = vmatprep.subr.mxu0 0.0
        %2366 = vmatpush1.msra.mxu0 0.0
        %2367 = vmatprep.subr.mxu0 0.0
        %2368 = vmatpush1.msra.mxu0 0.0
        %2369 = vmatprep.subr.mxu0 0.0
        %2370 = vmatpush1.msra.mxu0 0.0
        %2371 = vmatprep.subr.mxu0 0.0
        %2372 = vmatpush1.msra.mxu0 0.0
        %2373 = vmatprep.subr.mxu0 0.0
        %2374 = vmatpush1.msra.mxu0 0.0
        %2375 = vmatprep.subr.mxu0 0.0
        %2376 = vmatpush1.msra.mxu0 0.0
        %2377 = vmatprep.subr.mxu0 0.0
        %2378 = vmatpush1.msra.mxu0 0.0
        %2379 = vmatprep.subr.mxu0 0.0
        %2380 = vmatpush1.msra.mxu0 0.0
        %2381 = vmatprep.subr.mxu0 0.0
        %2382 = vmatpush1.msra.mxu0 0.0
        %2383 = vmatprep.subr.mxu0 0.0
        %2384 = vmatpush1.msra.mxu0 0.0
        %2385 = vmatprep.subr.mxu0 0.0
        %2386 = vmatpush1.msra.mxu0 0.0
        %2387 = vmatprep.subr.mxu0 0.0
        %2388 = vmatpush1.msra.mxu0 0.0
        %2389 = vmatprep.subr.mxu0 0.0
        %2390 = vmatpush1.msra.mxu0 0.0
        %2391 = vmatprep.subr.mxu0 0.0
        %2392 = vmatpush1.msra.mxu0 0.0
        %2393 = vmatprep.subr.mxu0 0.0
        %2394 = vmatpush1.msra.mxu0 0.0
        %2395 = vmatprep.mubr.f32.mxu0 0.0
        %2396 = vmatmul.mubr.f32.gmra.mrb[0].mxu0 %v2326
        %v2397 = vpop.f32.mrb[0].mxu0
        %v2398 = vadd.f32 0.0, %v2397
        %v2399 = vpop.f32.mrb[0].mxu0
        %2400 = vmatprep.mubr.f32.mxu0 0.0
        %2401 = vmatmul.mubr.f32.gmra.mrb[0].mxu0 %v2329
        %v2402 = vpop.f32.mrb[0].mxu0
        %v2403 = vadd.f32 0.0, %v2402
        %v2404 = vpop.f32.mrb[0].mxu0
        %2405 = vdwg.mxu0
        %v2407 = vsel %vm1775, %v1865, 0
        %v2410 = vsel %vm1775, %v1867, 0
        %2412 = vmatprep.subr.mxu0 0.0
        %2413 = vmatpush1.msra.mxu0 %v1022
        %2414 = vmatprep.subr.mxu0 0.0
        %2415 = vmatpush1.msra.mxu0 %v1028
        %2416 = vmatprep.subr.mxu0 0.0
        %2417 = vmatpush1.msra.mxu0 0.0
        %2418 = vmatprep.subr.mxu0 0.0
        %2419 = vmatpush1.msra.mxu0 0.0
        %2420 = vmatprep.subr.mxu0 0.0
        %2421 = vmatpush1.msra.mxu0 0.0
        %2422 = vmatprep.subr.mxu0 0.0
        %2423 = vmatpush1.msra.mxu0 0.0
        %2424 = vmatprep.subr.mxu0 0.0
        %2425 = vmatpush1.msra.mxu0 0.0
        %2426 = vmatprep.subr.mxu0 0.0
        %2427 = vmatpush1.msra.mxu0 0.0
        %2428 = vmatprep.subr.mxu0 0.0
        %2429 = vmatpush1.msra.mxu0 0.0
        %2430 = vmatprep.subr.mxu0 0.0
        %2431 = vmatpush1.msra.mxu0 0.0
        %2432 = vmatprep.subr.mxu0 0.0
        %2433 = vmatpush1.msra.mxu0 0.0
        %2434 = vmatprep.subr.mxu0 0.0
        %2435 = vmatpush1.msra.mxu0 0.0
        %2436 = vmatprep.subr.mxu0 0.0
        %2437 = vmatpush1.msra.mxu0 0.0
        %2438 = vmatprep.subr.mxu0 0.0
        %2439 = vmatpush1.msra.mxu0 0.0
        %2440 = vmatprep.subr.mxu0 0.0
        %2441 = vmatpush1.msra.mxu0 0.0
        %2442 = vmatprep.subr.mxu0 0.0
        %2443 = vmatpush1.msra.mxu0 0.0
        %2444 = vmatprep.subr.mxu0 0.0
        %2445 = vmatpush1.msra.mxu0 0.0
        %2446 = vmatprep.subr.mxu0 0.0
        %2447 = vmatpush1.msra.mxu0 0.0
        %2448 = vmatprep.subr.mxu0 0.0
        %2449 = vmatpush1.msra.mxu0 0.0
        %2450 = vmatprep.subr.mxu0 0.0
        %2451 = vmatpush1.msra.mxu0 0.0
        %2452 = vmatprep.subr.mxu0 0.0
        %2453 = vmatpush1.msra.mxu0 0.0
        %2454 = vmatprep.subr.mxu0 0.0
        %2455 = vmatpush1.msra.mxu0 0.0
        %2456 = vmatprep.subr.mxu0 0.0
        %2457 = vmatpush1.msra.mxu0 0.0
        %2458 = vmatprep.subr.mxu0 0.0
        %2459 = vmatpush1.msra.mxu0 0.0
        %2460 = vmatprep.subr.mxu0 0.0
        %2461 = vmatpush1.msra.mxu0 0.0
        %2462 = vmatprep.subr.mxu0 0.0
        %2463 = vmatpush1.msra.mxu0 0.0
        %2464 = vmatprep.subr.mxu0 0.0
        %2465 = vmatpush1.msra.mxu0 0.0
        %2466 = vmatprep.subr.mxu0 0.0
        %2467 = vmatpush1.msra.mxu0 0.0
        %2468 = vmatprep.subr.mxu0 0.0
        %2469 = vmatpush1.msra.mxu0 0.0
        %2470 = vmatprep.subr.mxu0 0.0
        %2471 = vmatpush1.msra.mxu0 0.0
        %2472 = vmatprep.subr.mxu0 0.0
        %2473 = vmatpush1.msra.mxu0 0.0
        %2474 = vmatprep.subr.mxu0 0.0
        %2475 = vmatpush1.msra.mxu0 0.0
        %2476 = vmatprep.mubr.f32.mxu0 0.0
        %2477 = vmatmul.mubr.f32.gmra.mrb[0].mxu0 %v2407
        %v2478 = vpop.f32.mrb[0].mxu0
        %v2479 = vadd.f32 0.0, %v2478
        %v2480 = vpop.f32.mrb[0].mxu0
        %2481 = vmatprep.mubr.f32.mxu0 0.0
        %2482 = vmatmul.mubr.f32.gmra.mrb[0].mxu0 %v2410
        %v2483 = vpop.f32.mrb[0].mxu0
        %v2484 = vadd.f32 0.0, %v2483
        %v2485 = vpop.f32.mrb[0].mxu0
        %2486 = vdwg.mxu0
        %v2488 = vsel %vm1775, %v1869, 0
        %v2491 = vsel %vm1775, %v1871, 0
        %2493 = vmatprep.subr.mxu0 0.0
        %2494 = vmatpush1.msra.mxu0 %v1105
        %2495 = vmatprep.subr.mxu0 0.0
        %2496 = vmatpush1.msra.mxu0 %v1107
        %2497 = vmatprep.subr.mxu0 0.0
        %2498 = vmatpush1.msra.mxu0 0.0
        %2499 = vmatprep.subr.mxu0 0.0
        %2500 = vmatpush1.msra.mxu0 0.0
        %2501 = vmatprep.subr.mxu0 0.0
        %2502 = vmatpush1.msra.mxu0 0.0
        %2503 = vmatprep.subr.mxu0 0.0
        %2504 = vmatpush1.msra.mxu0 0.0
        %2505 = vmatprep.subr.mxu0 0.0
        %2506 = vmatpush1.msra.mxu0 0.0
        %2507 = vmatprep.subr.mxu0 0.0
        %2508 = vmatpush1.msra.mxu0 0.0
        %2509 = vmatprep.subr.mxu0 0.0
        %2510 = vmatpush1.msra.mxu0 0.0
        %2511 = vmatprep.subr.mxu0 0.0
        %2512 = vmatpush1.msra.mxu0 0.0
        %2513 = vmatprep.subr.mxu0 0.0
        %2514 = vmatpush1.msra.mxu0 0.0
        %2515 = vmatprep.subr.mxu0 0.0
        %2516 = vmatpush1.msra.mxu0 0.0
        %2517 = vmatprep.subr.mxu0 0.0
        %2518 = vmatpush1.msra.mxu0 0.0
        %2519 = vmatprep.subr.mxu0 0.0
        %2520 = vmatpush1.msra.mxu0 0.0
        %2521 = vmatprep.subr.mxu0 0.0
        %2522 = vmatpush1.msra.mxu0 0.0
        %2523 = vmatprep.subr.mxu0 0.0
        %2524 = vmatpush1.msra.mxu0 0.0
        %2525 = vmatprep.subr.mxu0 0.0
        %2526 = vmatpush1.msra.mxu0 0.0
        %2527 = vmatprep.subr.mxu0 0.0
        %2528 = vmatpush1.msra.mxu0 0.0
        %2529 = vmatprep.subr.mxu0 0.0
        %2530 = vmatpush1.msra.mxu0 0.0
        %2531 = vmatprep.subr.mxu0 0.0
        %2532 = vmatpush1.msra.mxu0 0.0
        %2533 = vmatprep.subr.mxu0 0.0
        %2534 = vmatpush1.msra.mxu0 0.0
        %2535 = vmatprep.subr.mxu0 0.0
        %2536 = vmatpush1.msra.mxu0 0.0
        %2537 = vmatprep.subr.mxu0 0.0
        %2538 = vmatpush1.msra.mxu0 0.0
        %2539 = vmatprep.subr.mxu0 0.0
        %2540 = vmatpush1.msra.mxu0 0.0
        %2541 = vmatprep.subr.mxu0 0.0
        %2542 = vmatpush1.msra.mxu0 0.0
        %2543 = vmatprep.subr.mxu0 0.0
        %2544 = vmatpush1.msra.mxu0 0.0
        %2545 = vmatprep.subr.mxu0 0.0
        %2546 = vmatpush1.msra.mxu0 0.0
        %2547 = vmatprep.subr.mxu0 0.0
        %2548 = vmatpush1.msra.mxu0 0.0
        %2549 = vmatprep.subr.mxu0 0.0
        %2550 = vmatpush1.msra.mxu0 0.0
        %2551 = vmatprep.subr.mxu0 0.0
        %2552 = vmatpush1.msra.mxu0 0.0
        %2553 = vmatprep.subr.mxu0 0.0
        %2554 = vmatpush1.msra.mxu0 0.0
        %2555 = vmatprep.subr.mxu0 0.0
        %2556 = vmatpush1.msra.mxu0 0.0
        %2557 = vmatprep.mubr.f32.mxu0 0.0
        %2558 = vmatmul.mubr.f32.gmra.mrb[0].mxu0 %v2488
        %v2559 = vpop.f32.mrb[0].mxu0
        %v2560 = vadd.f32 0.0, %v2559
        %v2561 = vpop.f32.mrb[0].mxu0
        %2562 = vmatprep.mubr.f32.mxu0 0.0
        %2563 = vmatmul.mubr.f32.gmra.mrb[0].mxu0 %v2491
        %v2564 = vpop.f32.mrb[0].mxu0
        %v2565 = vadd.f32 0.0, %v2564
        %v2566 = vpop.f32.mrb[0].mxu0
        %2567 = vdwg.mxu0
        %v2568 = vrcp.pop %v1874
        %v2569 = vrcp.pop %v1877
        %v2570 = vrcp.pop %v1880
        %v2571 = vrcp.pop %v1883
        %v2572 = vrcp.pop %v1886
        %v2573 = vrcp.pop %v1889
        %v2574 = vrcp.pop %v1892
        %v2575 = vrcp.pop %v1895
        %v2576 = vrcp.pop %v1898
        %v2577 = vrcp.pop %v1901
        %v2578 = vrcp.pop %v1904
        %v2579 = vrcp.pop %v1907
        %v2580 = vrcp.pop %v1910
        %v2581 = vrcp.pop %v1913
        %v2582 = vrcp.pop %v1916
        %v2583 = vrcp.pop %v1919
        %v2584 = vmul.f32 %v1993, %v2568
        %v2585 = vmul.f32 %v1998, %v2569
        %v2586 = vmul.f32 %v2074, %v2570
        %v2587 = vmul.f32 %v2079, %v2571
        %v2588 = vmul.f32 %v2155, %v2572
        %v2589 = vmul.f32 %v2160, %v2573
        %v2590 = vmul.f32 %v2236, %v2574
        %v2591 = vmul.f32 %v2241, %v2575
        %v2592 = vmul.f32 %v2317, %v2576
        %v2593 = vmul.f32 %v2322, %v2577
        %v2594 = vmul.f32 %v2398, %v2578
        %v2595 = vmul.f32 %v2403, %v2579
        %v2596 = vmul.f32 %v2479, %v2580
        %v2597 = vmul.f32 %v2484, %v2581
        %v2598 = vmul.f32 %v2560, %v2582
        %v2599 = vmul.f32 %v2565, %v2583
        %2602 = vrot.lane.b32.xlu0 %v2586, 64
        %v2603 = vpop.permute.xlu0 %2602
        %2604 = vrot.lane.b32.xlu0 %v2587, 64
        %v2605 = vpop.permute.xlu0 %2604
        %2610 = vrot.lane.b32.xlu0 %v2590, 64
        %v2611 = vpop.permute.xlu0 %2610
        %2612 = vrot.lane.b32.xlu0 %v2591, 64
        %v2613 = vpop.permute.xlu0 %2612
        %2618 = vrot.lane.b32.xlu0 %v2594, 64
        %v2619 = vpop.permute.xlu0 %2618
        %2620 = vrot.lane.b32.xlu0 %v2595, 64
        %v2621 = vpop.permute.xlu0 %2620
        %2626 = vrot.lane.b32.xlu0 %v2598, 64
        %v2627 = vpop.permute.xlu0 %2626
        %2628 = vrot.lane.b32.xlu0 %v2599, 64
        %v2629 = vpop.permute.xlu0 %2628
        %v2632 = vsel %vm1110, %v2584, %v2603
        %v2633 = vsel %vm1110, %v2585, %v2605
        %v2634 = vsel %vm1110, %v2588, %v2611
        %v2635 = vsel %vm1110, %v2589, %v2613
        %v2636 = vsel %vm1110, %v2592, %v2619
        %v2637 = vsel %vm1110, %v2593, %v2621
        %v2638 = vsel %vm1110, %v2596, %v2627
        %v2639 = vsel %vm1110, %v2597, %v2629
        %v2640 = vld [vmem:[#allocation8] sm:$0xff]
        %v2641 = vld [vmem:[#allocation8 + $0x8] sm:$0xff]
        %v2642 = vld [vmem:[#allocation8 + $0x10] sm:$0xff]
        %v2643 = vld [vmem:[#allocation8 + $0x18] sm:$0xff]
        %v2644 = vld [vmem:[#allocation8 + $0x20] sm:$0xff]
        %v2645 = vld [vmem:[#allocation8 + $0x28] sm:$0xff]
        %v2646 = vld [vmem:[#allocation8 + $0x30] sm:$0xff]
        %v2647 = vld [vmem:[#allocation8 + $0x38] sm:$0xff]
        %v2648 = vld [vmem:[#allocation8 + $0x40] sm:$0xff]
        %v2649 = vld [vmem:[#allocation8 + $0x48] sm:$0xff]
        %v2650 = vld [vmem:[#allocation8 + $0x50] sm:$0xff]
        %v2651 = vld [vmem:[#allocation8 + $0x58] sm:$0xff]
        %v2652 = vld [vmem:[#allocation8 + $0x60] sm:$0xff]
        %v2653 = vld [vmem:[#allocation8 + $0x68] sm:$0xff]
        %v2654 = vld [vmem:[#allocation8 + $0x70] sm:$0xff]
        %v2655 = vld [vmem:[#allocation8 + $0x78] sm:$0xff]
        %v2656 = vld [vmem:[#allocation8 + $0x80] sm:$0xff]
        %v2657 = vld [vmem:[#allocation8 + $0x88] sm:$0xff]
        %v2658 = vld [vmem:[#allocation8 + $0x90] sm:$0xff]
        %v2659 = vld [vmem:[#allocation8 + $0x98] sm:$0xff]
        %v2660 = vld [vmem:[#allocation8 + $0xa0] sm:$0xff]
        %v2661 = vld [vmem:[#allocation8 + $0xa8] sm:$0xff]
        %v2662 = vld [vmem:[#allocation8 + $0xb0] sm:$0xff]
        %v2663 = vld [vmem:[#allocation8 + $0xb8] sm:$0xff]
        %v2664 = vld [vmem:[#allocation8 + $0xc0] sm:$0xff]
        %v2665 = vld [vmem:[#allocation8 + $0xc8] sm:$0xff]
        %v2666 = vld [vmem:[#allocation8 + $0xd0] sm:$0xff]
        %v2667 = vld [vmem:[#allocation8 + $0xd8] sm:$0xff]
        %v2668 = vld [vmem:[#allocation8 + $0xe0] sm:$0xff]
        %v2669 = vld [vmem:[#allocation8 + $0xe8] sm:$0xff]
        %v2670 = vld [vmem:[#allocation8 + $0xf0] sm:$0xff]
        %v2671 = vld [vmem:[#allocation8 + $0xf8] sm:$0xff]
        %v2672 = vld [vmem:[#allocation8 + $0x100] sm:$0xff]
        %v2673 = vld [vmem:[#allocation8 + $0x108] sm:$0xff]
        %v2674 = vld [vmem:[#allocation8 + $0x110] sm:$0xff]
        %v2675 = vld [vmem:[#allocation8 + $0x118] sm:$0xff]
        %v2676 = vld [vmem:[#allocation8 + $0x120] sm:$0xff]
        %v2677 = vld [vmem:[#allocation8 + $0x128] sm:$0xff]
        %v2678 = vld [vmem:[#allocation8 + $0x130] sm:$0xff]
        %v2679 = vld [vmem:[#allocation8 + $0x138] sm:$0xff]
        %v2680 = vld [vmem:[#allocation8 + $0x140] sm:$0xff]
        %v2681 = vld [vmem:[#allocation8 + $0x148] sm:$0xff]
        %v2682 = vld [vmem:[#allocation8 + $0x150] sm:$0xff]
        %v2683 = vld [vmem:[#allocation8 + $0x158] sm:$0xff]
        %v2684 = vld [vmem:[#allocation8 + $0x160] sm:$0xff]
        %v2685 = vld [vmem:[#allocation8 + $0x168] sm:$0xff]
        %v2686 = vld [vmem:[#allocation8 + $0x170] sm:$0xff]
        %v2687 = vld [vmem:[#allocation8 + $0x178] sm:$0xff]
        %v2688 = vld [vmem:[#allocation8 + $0x180] sm:$0xff]
        %v2689 = vld [vmem:[#allocation8 + $0x188] sm:$0xff]
        %v2690 = vld [vmem:[#allocation8 + $0x190] sm:$0xff]
        %v2691 = vld [vmem:[#allocation8 + $0x198] sm:$0xff]
        %v2692 = vld [vmem:[#allocation8 + $0x1a0] sm:$0xff]
        %v2693 = vld [vmem:[#allocation8 + $0x1a8] sm:$0xff]
        %v2694 = vld [vmem:[#allocation8 + $0x1b0] sm:$0xff]
        %v2695 = vld [vmem:[#allocation8 + $0x1b8] sm:$0xff]
        %v2696 = vld [vmem:[#allocation8 + $0x1c0] sm:$0xff]
        %v2697 = vld [vmem:[#allocation8 + $0x1c8] sm:$0xff]
        %v2698 = vld [vmem:[#allocation8 + $0x1d0] sm:$0xff]
        %v2699 = vld [vmem:[#allocation8 + $0x1d8] sm:$0xff]
        %v2700 = vld [vmem:[#allocation8 + $0x1e0] sm:$0xff]
        %v2701 = vld [vmem:[#allocation8 + $0x1e8] sm:$0xff]
        %v2702 = vld [vmem:[#allocation8 + $0x1f0] sm:$0xff]
        %v2703 = vld [vmem:[#allocation8 + $0x1f8] sm:$0xff]
        %v2704 = vld [vmem:[%s4] sm:$0x1]
        %v2706 = vlaneseq
        %v2707 = vshrl.u32 %v2706, 7
        %v2708 = vsub.s32 0, %v2707
        %v2709 = vrot.slane %v2704, %v2708
        %2711 = vmatprep.subr.mxu0 0.0
        %2712 = vmatpush1.msra.mxu0 %v2640
        %2713 = vmatprep.subr.mxu0 0.0
        %2714 = vmatpush1.msra.mxu0 %v2641
        %2715 = vmatprep.subr.mxu0 0.0
        %2716 = vmatpush1.msra.mxu0 %v2642
        %2717 = vmatprep.subr.mxu0 0.0
        %2718 = vmatpush1.msra.mxu0 %v2643
        %2719 = vmatprep.subr.mxu0 0.0
        %2720 = vmatpush1.msra.mxu0 %v2644
        %2721 = vmatprep.subr.mxu0 0.0
        %2722 = vmatpush1.msra.mxu0 %v2645
        %2723 = vmatprep.subr.mxu0 0.0
        %2724 = vmatpush1.msra.mxu0 %v2646
        %2725 = vmatprep.subr.mxu0 0.0
        %2726 = vmatpush1.msra.mxu0 %v2647
        %2727 = vmatprep.subr.mxu0 0.0
        %2728 = vmatpush1.msra.mxu0 %v2648
        %2729 = vmatprep.subr.mxu0 0.0
        %2730 = vmatpush1.msra.mxu0 %v2649
        %2731 = vmatprep.subr.mxu0 0.0
        %2732 = vmatpush1.msra.mxu0 %v2650
        %2733 = vmatprep.subr.mxu0 0.0
        %2734 = vmatpush1.msra.mxu0 %v2651
        %2735 = vmatprep.subr.mxu0 0.0
        %2736 = vmatpush1.msra.mxu0 %v2652
        %2737 = vmatprep.subr.mxu0 0.0
        %2738 = vmatpush1.msra.mxu0 %v2653
        %2739 = vmatprep.subr.mxu0 0.0
        %2740 = vmatpush1.msra.mxu0 %v2654
        %2741 = vmatprep.subr.mxu0 0.0
        %2742 = vmatpush1.msra.mxu0 %v2655
        %2743 = vmatprep.subr.mxu0 0.0
        %2744 = vmatpush1.msra.mxu0 %v2656
        %2745 = vmatprep.subr.mxu0 0.0
        %2746 = vmatpush1.msra.mxu0 %v2657
        %2747 = vmatprep.subr.mxu0 0.0
        %2748 = vmatpush1.msra.mxu0 %v2658
        %2749 = vmatprep.subr.mxu0 0.0
        %2750 = vmatpush1.msra.mxu0 %v2659
        %2751 = vmatprep.subr.mxu0 0.0
        %2752 = vmatpush1.msra.mxu0 %v2660
        %2753 = vmatprep.subr.mxu0 0.0
        %2754 = vmatpush1.msra.mxu0 %v2661
        %2755 = vmatprep.subr.mxu0 0.0
        %2756 = vmatpush1.msra.mxu0 %v2662
        %2757 = vmatprep.subr.mxu0 0.0
        %2758 = vmatpush1.msra.mxu0 %v2663
        %2759 = vmatprep.subr.mxu0 0.0
        %2760 = vmatpush1.msra.mxu0 %v2664
        %2761 = vmatprep.subr.mxu0 0.0
        %2762 = vmatpush1.msra.mxu0 %v2665
        %2763 = vmatprep.subr.mxu0 0.0
        %2764 = vmatpush1.msra.mxu0 %v2666
        %2765 = vmatprep.subr.mxu0 0.0
        %2766 = vmatpush1.msra.mxu0 %v2667
        %2767 = vmatprep.subr.mxu0 0.0
        %2768 = vmatpush1.msra.mxu0 %v2668
        %2769 = vmatprep.subr.mxu0 0.0
        %2770 = vmatpush1.msra.mxu0 %v2669
        %2771 = vmatprep.subr.mxu0 0.0
        %2772 = vmatpush1.msra.mxu0 %v2670
        %2773 = vmatprep.subr.mxu0 0.0
        %2774 = vmatpush1.msra.mxu0 %v2671
        %2775 = vmatprep.mubr.f32.mxu0 %v2634
        %2776 = vmatmul.mubr.f32.gmra.mrb[0].mxu0 %v2632
        %v2777 = vpop.f32.mrb[0].mxu0
        %v2778 = vadd.f32 %v2709, %v2777
        %v2779 = vpop.f32.mrb[0].mxu0
        %2780 = vmatprep.mubr.f32.mxu0 %v2635
        %2781 = vmatmul.mubr.f32.gmra.mrb[0].mxu0 %v2633
        %v2782 = vpop.f32.mrb[0].mxu0
        %v2783 = vadd.f32 %v2709, %v2782
        %v2784 = vpop.f32.mrb[0].mxu0
        %2785 = vdwg.mxu0
        %2786 = vmatprep.subr.mxu0 0.0
        %2787 = vmatpush1.msra.mxu0 %v2672
        %2788 = vmatprep.subr.mxu0 0.0
        %2789 = vmatpush1.msra.mxu0 %v2673
        %2790 = vmatprep.subr.mxu0 0.0
        %2791 = vmatpush1.msra.mxu0 %v2674
        %2792 = vmatprep.subr.mxu0 0.0
        %2793 = vmatpush1.msra.mxu0 %v2675
        %2794 = vmatprep.subr.mxu0 0.0
        %2795 = vmatpush1.msra.mxu0 %v2676
        %2796 = vmatprep.subr.mxu0 0.0
        %2797 = vmatpush1.msra.mxu0 %v2677
        %2798 = vmatprep.subr.mxu0 0.0
        %2799 = vmatpush1.msra.mxu0 %v2678
        %2800 = vmatprep.subr.mxu0 0.0
        %2801 = vmatpush1.msra.mxu0 %v2679
        %2802 = vmatprep.subr.mxu0 0.0
        %2803 = vmatpush1.msra.mxu0 %v2680
        %2804 = vmatprep.subr.mxu0 0.0
        %2805 = vmatpush1.msra.mxu0 %v2681
        %2806 = vmatprep.subr.mxu0 0.0
        %2807 = vmatpush1.msra.mxu0 %v2682
        %2808 = vmatprep.subr.mxu0 0.0
        %2809 = vmatpush1.msra.mxu0 %v2683
        %2810 = vmatprep.subr.mxu0 0.0
        %2811 = vmatpush1.msra.mxu0 %v2684
        %2812 = vmatprep.subr.mxu0 0.0
        %2813 = vmatpush1.msra.mxu0 %v2685
        %2814 = vmatprep.subr.mxu0 0.0
        %2815 = vmatpush1.msra.mxu0 %v2686
        %2816 = vmatprep.subr.mxu0 0.0
        %2817 = vmatpush1.msra.mxu0 %v2687
        %2818 = vmatprep.subr.mxu0 0.0
        %2819 = vmatpush1.msra.mxu0 %v2688
        %2820 = vmatprep.subr.mxu0 0.0
        %2821 = vmatpush1.msra.mxu0 %v2689
        %2822 = vmatprep.subr.mxu0 0.0
        %2823 = vmatpush1.msra.mxu0 %v2690
        %2824 = vmatprep.subr.mxu0 0.0
        %2825 = vmatpush1.msra.mxu0 %v2691
        %2826 = vmatprep.subr.mxu0 0.0
        %2827 = vmatpush1.msra.mxu0 %v2692
        %2828 = vmatprep.subr.mxu0 0.0
        %2829 = vmatpush1.msra.mxu0 %v2693
        %2830 = vmatprep.subr.mxu0 0.0
        %2831 = vmatpush1.msra.mxu0 %v2694
        %2832 = vmatprep.subr.mxu0 0.0
        %2833 = vmatpush1.msra.mxu0 %v2695
        %2834 = vmatprep.subr.mxu0 0.0
        %2835 = vmatpush1.msra.mxu0 %v2696
        %2836 = vmatprep.subr.mxu0 0.0
        %2837 = vmatpush1.msra.mxu0 %v2697
        %2838 = vmatprep.subr.mxu0 0.0
        %2839 = vmatpush1.msra.mxu0 %v2698
        %2840 = vmatprep.subr.mxu0 0.0
        %2841 = vmatpush1.msra.mxu0 %v2699
        %2842 = vmatprep.subr.mxu0 0.0
        %2843 = vmatpush1.msra.mxu0 %v2700
        %2844 = vmatprep.subr.mxu0 0.0
        %2845 = vmatpush1.msra.mxu0 %v2701
        %2846 = vmatprep.subr.mxu0 0.0
        %2847 = vmatpush1.msra.mxu0 %v2702
        %2848 = vmatprep.subr.mxu0 0.0
        %2849 = vmatpush1.msra.mxu0 %v2703
        %2850 = vmatprep.mubr.f32.mxu0 %v2638
        %2851 = vmatmul.mubr.f32.gmra.mrb[0].mxu0 %v2636
        %v2852 = vpop.f32.mrb[0].mxu0
        %v2853 = vadd.f32 %v2778, %v2852
        %v2854 = vpop.f32.mrb[0].mxu0
        %2855 = vmatprep.mubr.f32.mxu0 %v2639
        %2856 = vmatmul.mubr.f32.gmra.mrb[0].mxu0 %v2637
        %v2857 = vpop.f32.mrb[0].mxu0
        %v2858 = vadd.f32 %v2783, %v2857
        %v2859 = vpop.f32.mrb[0].mxu0
        %2860 = vdwg.mxu0
        %2861 = vst [vmem:[%s284] sm:$0xff] %v2853
        %2862 = vst [vmem:[%s284 + $0x8] sm:$0xff] %v2858
        %s2863 = sand.u32 %s142, 1
        %s2864 = scalar_lea.sflag [#allocation4], %s2863
        %s2865 = sand.u32 %s142, 1
        %s2866 = smul.addr %s2865, 16
        %s2867 = scalar_lea.vmem [#allocation10], %s2866
        // Predicated region
        $region57: #{tpu_custom_call.1} parent=39 // pred_check
          %p2868 = pneg %p152
        $region58: #{tpu_custom_call.1} parent=39 // pred_check_branch
          %2870 = sbr.rel (%p2868) target = $region60
        $region59: #{tpu_custom_call.1} parent=39 // pred_region
          %s2871 = smul.u32 2, %s24
          %s2873 = ssub.s32 256, 256
          %2874 = vsyncadd %s2864, %s2873
          %s2875 = smul.addr %s2871, 128
          %s2876 = scalar_lea.hbm %s5, %s2875
          %s2877 = sshll.u32 %s2867, 4
          %s2878 = int_to_ptr.vmem [resolvable:$true] %s2877
          %2883 = dma.vmem_to_hbm [thread:$0]  %s2878, 256, %s2876, %s2864, 128, 128, 8
        $region60: #{tpu_custom_call.1} parent=39 // pred_fallthru
          _
      $region40: #{tpu_custom_call.1} parent=5 // pred_fallthru
        _
      %p2884 = scmp.le.s32.totalorder 2, %s19
      // Predicated region
      $region61: #{tpu_custom_call.1} parent=5 // pred_check
        %p2885 = pneg %p2884
      $region62: #{tpu_custom_call.1} parent=5 // pred_check_branch
        %2887 = sbr.rel (%p2885) target = $region64
      $region63: #{tpu_custom_call.1} parent=5 // pred_region
        %s2888 = ssub.s32 %s19, 2
        // Predicated region
        $region65: #{tpu_custom_call.1} parent=63 // pred_check
          %p2889 = pneg %p158
        $region66: #{tpu_custom_call.1} parent=63 // pred_check_branch
          %2891 = sbr.rel (%p2889) target = $region68
        $region67: #{tpu_custom_call.1} parent=63 // pred_region
          %s2892 = sand.u32 %s143, 1
          %s2893 = scalar_lea.sflag [#allocation4], %s2892
          %s2894 = sand.u32 %s143, 1
          %s2895 = smul.addr %s2894, 16
          %s2896 = scalar_lea.vmem [#allocation10], %s2895
          %2897 = dma.done %s2893, 256
        $region68: #{tpu_custom_call.1} parent=63 // pred_fallthru
          _
      $region64: #{tpu_custom_call.1} parent=5 // pred_fallthru
        _
    $region6: #{tpu_custom_call.1} parent=1 // loop_footer
      %s23 = sadd.s32 1, %s19
    $region7: #{tpu_custom_call.1} parent=1 // loop_footer_branch
      %18 = sbr.rel target = $region3
    $region8: #{tpu_custom_call.1} parent=1 // loop_exit
      _
    %2898 = vsyncpa [#allocation3], 1
    %s2899 = scalar_lea.sflag [#allocation3], 1
    %2900 = vsyncpa %s2899, 1
    %2901 = vsyncpa [#allocation6], 1
    %2902 = vsyncpa [#allocation9], 1
    %2903 = vsyncpa [#allocation4], 1
    %s2904 = scalar_lea.sflag [#allocation4], 1
    %2905 = vsyncpa %s2904, 1

</llo_original>
